<compile_context>
chip_gen: v6e
topology: v6e:2x2x1
jax: 0.10.0
libtpu: 0.0.40
codegen_flags: <defaults>
</compile_context>

<pallas_src>
import jax
import jax.numpy as jnp
from jax.experimental import pallas as pl
from jax.experimental.pallas import tpu as pltpu

FEAT_DIM = 512
HID_DIM = 256
SB_WIDTH = 4096            # packed scale/bias lane width (sum of all layer widths)

# Lane offsets of each (fused) layer inside the packed [2, 4096] scale/bias rows.
# All offsets and widths are multiples of 128 (lane-aligned).
OFF_MOD0 = 0               # mod[0]                       width 256
OFF_MOD1 = 256             # mod[2]                       width 256
OFF_MOD2 = 512             # mod[5]                       width 512
OFF_H0 = 1024              # block_{mu,alpha,beta}[0]     width 1536 (fused)
OFF_MU1 = 2560             # block_mu[2]                  width 512
OFF_A1 = 3072              # block_alpha[2]               width 512
OFF_B1 = 3584              # block_beta[2]                width 512

VMEM_LIMIT = 24 * 1024 * 1024

_CORE_PARALLEL = getattr(pltpu, "CORE_PARALLEL", "parallel")
_ARBITRARY = getattr(pltpu, "ARBITRARY", "arbitrary")


def _relu(v):
    return jnp.maximum(v, 0.0)


def _round_up(n, m):
    return ((n + m - 1) // m) * m


# ----------------------------------------------------------------------------
# Fused kernel: grid = (head, batch_tile).  One step == one head x one B-tile.
# ----------------------------------------------------------------------------
def _bayescap_pair_kernel(x_ref,
                          w0_ref, w1_ref, w2_ref, wh0_ref, wh1_ref, sb_ref,
                          mu_ref, alpha_ref, beta_ref):

    def lin(v_bf16, w_i8, off, width):
        # int8 weights -> exact bf16 -> MXU matmul with f32 accumulation, then
        # per-output-channel dequant scale + bias applied to the f32 accumulator.
        acc = jnp.dot(v_bf16, w_i8.astype(jnp.bfloat16),
                      preferred_element_type=jnp.float32)
        scale = sb_ref[0, 0:1, off:off + width]   # [1, width] f32
        bias = sb_ref[0, 1:2, off:off + width]    # [1, width] f32
        return acc * scale + bias

    x = x_ref[0]                                   # [TB, 512] f32
    xb = x.astype(jnp.bfloat16)

    # self.mod: Linear+ReLU -> Linear+ReLU(+Dropout: identity at inference) -> Linear
    # TODO(synk): training-mode Dropout(p=0.1) RNG mask is not emitted here.
    h = _relu(lin(xb, w0_ref[0], OFF_MOD0, HID_DIM)).astype(jnp.bfloat16)
    h = _relu(lin(h, w1_ref[0], OFF_MOD1, HID_DIM)).astype(jnp.bfloat16)
    x_intr = lin(h, w2_ref[0], OFF_MOD2, FEAT_DIM) + x        # f32 residual
    xi = x_intr.astype(jnp.bfloat16)

    # Fused first layers of block_mu | block_alpha | block_beta: one [512,1536].
    hh = _relu(lin(xi, wh0_ref[0], OFF_H0, 3 * FEAT_DIM)).astype(jnp.bfloat16)

    # Coalesced second layers: slice the [512,1536] weight at 512-aligned cols.
    mu_ref[0] = lin(hh[:, 0:FEAT_DIM],
                    wh1_ref[0, :, 0:FEAT_DIM], OFF_MU1, FEAT_DIM)
    alpha_ref[0] = _relu(lin(hh[:, FEAT_DIM:2 * FEAT_DIM],
                             wh1_ref[0, :, FEAT_DIM:2 * FEAT_DIM],
                             OFF_A1, FEAT_DIM))
    beta_ref[0] = _relu(lin(hh[:, 2 * FEAT_DIM:3 * FEAT_DIM],
                            wh1_ref[0, :, 2 * FEAT_DIM:3 * FEAT_DIM],
                            OFF_B1, FEAT_DIM))


def bayescap_for_clip(i_features, t_features, packed_params, *,
                      dim_sems=("parallel", "arbitrary"), max_tile_b=256):
    """Runs both BayesCap heads in one pallas_call; returns
    ((img_mu, img_1alpha, img_beta), (txt_mu, txt_1alpha, txt_beta))."""
    B, d = i_features.shape
    assert d == FEAT_DIM
    w0, w1, w2, wh0, wh1, sb = packed_params

    # Batch tiling: pad to a sublane multiple, tile so VMEM stays bounded as B
    # grows (TB ~256 is a good default on v7x; raise on v5e/v6e if desired).
    tb = min(max_tile_b, _round_up(B, 8))
    b_pad = _round_up(B, tb)
    nb = b_pad // tb

    x = jnp.stack([i_features, t_features], axis=0).astype(jnp.float32)
    if b_pad != B:
        x = jnp.pad(x, ((0, 0), (0, b_pad - B), (0, 0)))

    batch_map = lambda h, b: (h, b, 0)     # x / outputs: vary per batch tile
    head_map = lambda h, b: (h, 0, 0)      # weights: head-only => stay resident

    def wspec(arr):
        return pl.BlockSpec((1,) + arr.shape[1:], head_map)

    x_spec = pl.BlockSpec((1, tb, d), batch_map)
    out_spec = pl.BlockSpec((1, tb, d), batch_map)
    out_shape = jax.ShapeDtypeStruct((2, b_pad, d), jnp.float32)

    mu, alpha, beta = pl.pallas_call(
        _bayescap_pair_kernel,
        out_shape=(out_shape, out_shape, out_shape),
        grid=(2, nb),
        in_specs=[x_spec, wspec(w0), wspec(w1), wspec(w2),
                  wspec(wh0), wspec(wh1), wspec(sb)],
        out_specs=(out_spec, out_spec, out_spec),
        compiler_params=pltpu.CompilerParams(
            dimension_semantics=tuple(dim_sems),
            vmem_limit_bytes=VMEM_LIMIT),
    )(x, w0, w1, w2, wh0, wh1, sb)

    mu, alpha, beta = mu[:, :B], alpha[:, :B], beta[:, :B]
    return (mu[0], alpha[0], beta[0]), (mu[1], alpha[1], beta[1])


# ----------------------------------------------------------------------------
# Deterministic parameter init (torch.nn.Linear-style uniform), quantization,
# and packing helpers.
# ----------------------------------------------------------------------------
_LAYER_SHAPES = [
    (FEAT_DIM, HID_DIM),    # 0: mod[0]
    (HID_DIM, HID_DIM),     # 1: mod[2]
    (HID_DIM, FEAT_DIM),    # 2: mod[5]
    (FEAT_DIM, FEAT_DIM),   # 3: block_mu[0]
    (FEAT_DIM, FEAT_DIM),   # 4: block_mu[2]
    (FEAT_DIM, FEAT_DIM),   # 5: block_alpha[0]
    (FEAT_DIM, FEAT_DIM),   # 6: block_alpha[2]
    (FEAT_DIM, FEAT_DIM),   # 7: block_beta[0]
    (FEAT_DIM, FEAT_DIM),   # 8: block_beta[2]
]

# Order in which per-layer scale/bias vectors are concatenated into the packed
# [2, 4096] rows (must match the kernel offsets above).
_SB_ORDER = (0, 1, 2, 3, 5, 7, 4, 6, 8)


def _init_linear(key, din, dout):
    # Stored as [in, out] (transpose of torch.nn.Linear.weight), bias [1, out].
    kw, kb = jax.random.split(key)
    bound = 1.0 / (float(din) ** 0.5)
    w = jax.random.uniform(kw, (din, dout), jnp.float32, -bound, bound)
    b = jax.random.uniform(kb, (1, dout), jnp.float32, -bound, bound)
    return w, b


def _init_bayescap_head(key):
    keys = jax.random.split(key, len(_LAYER_SHAPES))
    return [_init_linear(k, din, dout)
            for k, (din, dout) in zip(keys, _LAYER_SHAPES)]


def _quantize_linear(w, b):
    # Symmetric per-output-channel int8; the scale is applied to the f32
    # accumulator after the matmul inside the kernel.
    amax = jnp.max(jnp.abs(w), axis=0, keepdims=True)           # [1, out]
    scale = jnp.maximum(amax, 1e-12) / 127.0
    q = jnp.clip(jnp.round(w / scale), -127.0, 127.0).astype(jnp.int8)
    return q, scale.astype(jnp.float32), b.astype(jnp.float32)


def _quantize_head(params):
    return [_quantize_linear(w, b) for (w, b) in params]


def _pack_heads(img_q, txt_q):
    """Stack image/text heads on a leading head axis:
       w0,w1,w2: per-layer int8 weights of self.mod,
       wh0: fused first layers of mu|alpha|beta [2,512,1536] int8,
       wh1: coalesced second layers of mu|alpha|beta [2,512,1536] int8,
       sb : [2, 2, 4096] f32 (row 0 = dequant scales, row 1 = biases)."""

    def stack_cat(idxs):
        return jnp.stack(
            [jnp.concatenate([p[i][0] for i in idxs], axis=1)
             for p in (img_q, txt_q)], axis=0)

    def sb_rows(p):
        scales = jnp.concatenate([p[i][1] for i in _SB_ORDER], axis=1)  # [1,4096]
        biases = jnp.concatenate([p[i][2] for i in _SB_ORDER], axis=1)  # [1,4096]
        return jnp.concatenate([scales, biases], axis=0)                # [2,4096]

    sb = jnp.stack([sb_rows(img_q), sb_rows(txt_q)], axis=0)            # [2,2,4096]
    assert sb.shape == (2, 2, SB_WIDTH)

    return (stack_cat([0]), stack_cat([1]), stack_cat([2]),
            stack_cat([3, 5, 7]), stack_cat([4, 6, 8]), sb)


# ----------------------------------------------------------------------------
# Pure-JAX reference over the same quantized per-layer weights.
# ----------------------------------------------------------------------------
def _reference_head(x, head_q):
    def lin(v, layer):
        q, s, b = layer
        acc = jnp.dot(v.astype(jnp.bfloat16), q.astype(jnp.bfloat16),
                      preferred_element_type=jnp.float32)
        return acc * s + b

    h = jax.nn.relu(lin(x, head_q[0]))
    h = jax.nn.relu(lin(h, head_q[1]))
    x_intr = lin(h, head_q[2]) + x
    mu = lin(jax.nn.relu(lin(x_intr, head_q[3])), head_q[4])
    alpha = jax.nn.relu(lin(jax.nn.relu(lin(x_intr, head_q[5])), head_q[6]))
    beta = jax.nn.relu(lin(jax.nn.relu(lin(x_intr, head_q[7])), head_q[8]))
    return mu, alpha, beta


if __name__ == "__main__":
    B = 2   # small harness batch; wrapper pads to 8 rows (f32 sublane) internally.

    root = jax.random.PRNGKey(0)
    k_if, k_tf, k_ih, k_th = jax.random.split(root, 4)

    i_features = jax.random.normal(k_if, (B, FEAT_DIM), jnp.float32)
    t_features = jax.random.normal(k_tf, (B, FEAT_DIM), jnp.float32)

    img_q = _quantize_head(_init_bayescap_head(k_ih))
    txt_q = _quantize_head(_init_bayescap_head(k_th))
    packed = _pack_heads(img_q, txt_q)

    ref_img = _reference_head(i_features, img_q)
    ref_txt = _reference_head(t_features, txt_q)

    def run_and_check(dim_sems):
        outs = jax.block_until_ready(
            bayescap_for_clip(i_features, t_features, packed, dim_sems=dim_sems))
        img, txt = outs
        for got, want in zip((*img, *txt), (*ref_img, *ref_txt)):
            assert got.shape == (B, FEAT_DIM)
            err = float(jnp.max(jnp.abs(got - want)))
            assert jnp.allclose(got, want, atol=2e-2, rtol=2e-2), err
        return outs

    try:
        # v7x: shard the two heads across the two TensorCores.
        run_and_check((_CORE_PARALLEL, _ARBITRARY))
    except Exception:
        # Fallback where core-parallel grid sharding is unavailable/rejected.
        run_and_check(("parallel", "arbitrary"))

    print("KERNEL_OK")
</pallas_src>

<mosaic_0001>
module attributes {stable_mosaic.version = 11 : i64} {
  func.func @_bayescap_pair_kernel(%arg0: i32, %arg1: i32, %arg2: memref<1x8x512xf32, #tpu.memory_space<vmem>>, %arg3: memref<1x512x256xi8, #tpu.memory_space<vmem>>, %arg4: memref<1x256x256xi8, #tpu.memory_space<vmem>>, %arg5: memref<1x256x512xi8, #tpu.memory_space<vmem>>, %arg6: memref<1x512x1536xi8, #tpu.memory_space<vmem>>, %arg7: memref<1x512x1536xi8, #tpu.memory_space<vmem>>, %arg8: memref<1x2x4096xf32, #tpu.memory_space<vmem>>, %arg9: memref<1x8x512xf32, #tpu.memory_space<vmem>>, %arg10: memref<1x8x512xf32, #tpu.memory_space<vmem>>, %arg11: memref<1x8x512xf32, #tpu.memory_space<vmem>>) attributes {dimension_semantics = [#tpu.dimension_semantics<core_parallel>, #tpu.dimension_semantics<arbitrary>], iteration_bounds = array<i64: 2, 1>, scalar_prefetch = 0 : i64, scratch_operands = 0 : i64, tpu.core_type = #tpu.core_type<tc>, window_params = [{transform_indices = @transform_0, window_bounds = array<i64: 1, 8, 512>}, {transform_indices = @transform_1, window_bounds = array<i64: 1, 512, 256>}, {transform_indices = @transform_2, window_bounds = array<i64: 1, 256, 256>}, {transform_indices = @transform_3, window_bounds = array<i64: 1, 256, 512>}, {transform_indices = @transform_4, window_bounds = array<i64: 1, 512, 1536>}, {transform_indices = @transform_5, window_bounds = array<i64: 1, 512, 1536>}, {transform_indices = @transform_6, window_bounds = array<i64: 1, 2, 4096>}, {transform_indices = @transform_7, window_bounds = array<i64: 1, 8, 512>}, {transform_indices = @transform_8, window_bounds = array<i64: 1, 8, 512>}, {transform_indices = @transform_9, window_bounds = array<i64: 1, 8, 512>}]} {
    %c0 = arith.constant 0 : index
    %c0_0 = arith.constant 0 : index
    %c0_1 = arith.constant 0 : index
    %0 = vector.load %arg2[%c0, %c0_0, %c0_1] : memref<1x8x512xf32, #tpu.memory_space<vmem>>, vector<1x8x512xf32>
    %1 = vector.shape_cast %0 : vector<1x8x512xf32> to vector<8x512xf32>
    %2 = arith.truncf %1 : vector<8x512xf32> to vector<8x512xbf16>
    %c0_2 = arith.constant 0 : index
    %c0_3 = arith.constant 0 : index
    %c0_4 = arith.constant 0 : index
    %3 = vector.load %arg3[%c0_2, %c0_3, %c0_4] : memref<1x512x256xi8, #tpu.memory_space<vmem>>, vector<1x512x256xi8>
    %4 = vector.shape_cast %3 : vector<1x512x256xi8> to vector<512x256xi8>
    %5 = arith.sitofp %4 : vector<512x256xi8> to vector<512x256xbf16>
    %cst = arith.constant dense<0.000000e+00> : vector<8x256xf32>
    %6 = tpu.matmul %2, %5, %cst {dimension_numbers = #tpu.dot_dimension_numbers<[1], [0], [0], [1], [0, 0, 1, 1], [], []>} : vector<8x512xbf16>, vector<512x256xbf16>, vector<8x256xf32> -> vector<8x256xf32>
    %c0_5 = arith.constant 0 : index
    %c0_6 = arith.constant 0 : index
    %c0_7 = arith.constant 0 : index
    %7 = vector.load %arg8[%c0_5, %c0_6, %c0_7] : memref<1x2x4096xf32, #tpu.memory_space<vmem>>, vector<1x1x256xf32>
    %8 = vector.shape_cast %7 : vector<1x1x256xf32> to vector<1x256xf32>
    %c0_8 = arith.constant 0 : index
    %c1 = arith.constant 1 : index
    %c0_9 = arith.constant 0 : index
    %9 = vector.load %arg8[%c0_8, %c1, %c0_9] : memref<1x2x4096xf32, #tpu.memory_space<vmem>>, vector<1x1x256xf32>
    %10 = vector.shape_cast %9 : vector<1x1x256xf32> to vector<1x256xf32>
    %11 = vector.broadcast %8 : vector<1x256xf32> to vector<8x256xf32>
    %12 = arith.mulf %6, %11 : vector<8x256xf32>
    %13 = vector.broadcast %10 : vector<1x256xf32> to vector<8x256xf32>
    %14 = arith.addf %12, %13 : vector<8x256xf32>
    %cst_10 = arith.constant 0.000000e+00 : f32
    %15 = vector.broadcast %cst_10 : f32 to vector<8x256xf32>
    %16 = arith.maximumf %14, %15 : vector<8x256xf32>
    %17 = arith.truncf %16 : vector<8x256xf32> to vector<8x256xbf16>
    %c0_11 = arith.constant 0 : index
    %c0_12 = arith.constant 0 : index
    %c0_13 = arith.constant 0 : index
    %18 = vector.load %arg4[%c0_11, %c0_12, %c0_13] : memref<1x256x256xi8, #tpu.memory_space<vmem>>, vector<1x256x256xi8>
    %19 = vector.shape_cast %18 : vector<1x256x256xi8> to vector<256x256xi8>
    %20 = arith.sitofp %19 : vector<256x256xi8> to vector<256x256xbf16>
    %cst_14 = arith.constant dense<0.000000e+00> : vector<8x256xf32>
    %21 = tpu.matmul %17, %20, %cst_14 {dimension_numbers = #tpu.dot_dimension_numbers<[1], [0], [0], [1], [0, 0, 1, 1], [], []>} : vector<8x256xbf16>, vector<256x256xbf16>, vector<8x256xf32> -> vector<8x256xf32>
    %c0_15 = arith.constant 0 : index
    %c0_16 = arith.constant 0 : index
    %c256 = arith.constant 256 : index
    %22 = vector.load %arg8[%c0_15, %c0_16, %c256] : memref<1x2x4096xf32, #tpu.memory_space<vmem>>, vector<1x1x256xf32>
    %23 = vector.shape_cast %22 : vector<1x1x256xf32> to vector<1x256xf32>
    %c0_17 = arith.constant 0 : index
    %c1_18 = arith.constant 1 : index
    %c256_19 = arith.constant 256 : index
    %24 = vector.load %arg8[%c0_17, %c1_18, %c256_19] : memref<1x2x4096xf32, #tpu.memory_space<vmem>>, vector<1x1x256xf32>
    %25 = vector.shape_cast %24 : vector<1x1x256xf32> to vector<1x256xf32>
    %26 = vector.broadcast %23 : vector<1x256xf32> to vector<8x256xf32>
    %27 = arith.mulf %21, %26 : vector<8x256xf32>
    %28 = vector.broadcast %25 : vector<1x256xf32> to vector<8x256xf32>
    %29 = arith.addf %27, %28 : vector<8x256xf32>
    %cst_20 = arith.constant 0.000000e+00 : f32
    %30 = vector.broadcast %cst_20 : f32 to vector<8x256xf32>
    %31 = arith.maximumf %29, %30 : vector<8x256xf32>
    %32 = arith.truncf %31 : vector<8x256xf32> to vector<8x256xbf16>
    %c0_21 = arith.constant 0 : index
    %c0_22 = arith.constant 0 : index
    %c0_23 = arith.constant 0 : index
    %33 = vector.load %arg5[%c0_21, %c0_22, %c0_23] : memref<1x256x512xi8, #tpu.memory_space<vmem>>, vector<1x256x512xi8>
    %34 = vector.shape_cast %33 : vector<1x256x512xi8> to vector<256x512xi8>
    %35 = arith.sitofp %34 : vector<256x512xi8> to vector<256x512xbf16>
    %cst_24 = arith.constant dense<0.000000e+00> : vector<8x512xf32>
    %36 = tpu.matmul %32, %35, %cst_24 {dimension_numbers = #tpu.dot_dimension_numbers<[1], [0], [0], [1], [0, 0, 1, 1], [], []>} : vector<8x256xbf16>, vector<256x512xbf16>, vector<8x512xf32> -> vector<8x512xf32>
    %c0_25 = arith.constant 0 : index
    %c0_26 = arith.constant 0 : index
    %c512 = arith.constant 512 : index
    %37 = vector.load %arg8[%c0_25, %c0_26, %c512] : memref<1x2x4096xf32, #tpu.memory_space<vmem>>, vector<1x1x512xf32>
    %38 = vector.shape_cast %37 : vector<1x1x512xf32> to vector<1x512xf32>
    %c0_27 = arith.constant 0 : index
    %c1_28 = arith.constant 1 : index
    %c512_29 = arith.constant 512 : index
    %39 = vector.load %arg8[%c0_27, %c1_28, %c512_29] : memref<1x2x4096xf32, #tpu.memory_space<vmem>>, vector<1x1x512xf32>
    %40 = vector.shape_cast %39 : vector<1x1x512xf32> to vector<1x512xf32>
    %41 = vector.broadcast %38 : vector<1x512xf32> to vector<8x512xf32>
    %42 = arith.mulf %36, %41 : vector<8x512xf32>
    %43 = vector.broadcast %40 : vector<1x512xf32> to vector<8x512xf32>
    %44 = arith.addf %42, %43 : vector<8x512xf32>
    %45 = arith.addf %44, %1 : vector<8x512xf32>
    %46 = arith.truncf %45 : vector<8x512xf32> to vector<8x512xbf16>
    %c0_30 = arith.constant 0 : index
    %c0_31 = arith.constant 0 : index
    %c0_32 = arith.constant 0 : index
    %47 = vector.load %arg6[%c0_30, %c0_31, %c0_32] : memref<1x512x1536xi8, #tpu.memory_space<vmem>>, vector<1x512x1536xi8>
    %48 = vector.shape_cast %47 : vector<1x512x1536xi8> to vector<512x1536xi8>
    %49 = arith.sitofp %48 : vector<512x1536xi8> to vector<512x1536xbf16>
    %cst_33 = arith.constant dense<0.000000e+00> : vector<8x1536xf32>
    %50 = tpu.matmul %46, %49, %cst_33 {dimension_numbers = #tpu.dot_dimension_numbers<[1], [0], [0], [1], [0, 0, 1, 1], [], []>} : vector<8x512xbf16>, vector<512x1536xbf16>, vector<8x1536xf32> -> vector<8x1536xf32>
    %c0_34 = arith.constant 0 : index
    %c0_35 = arith.constant 0 : index
    %c1024 = arith.constant 1024 : index
    %51 = vector.load %arg8[%c0_34, %c0_35, %c1024] : memref<1x2x4096xf32, #tpu.memory_space<vmem>>, vector<1x1x1536xf32>
    %52 = vector.shape_cast %51 : vector<1x1x1536xf32> to vector<1x1536xf32>
    %c0_36 = arith.constant 0 : index
    %c1_37 = arith.constant 1 : index
    %c1024_38 = arith.constant 1024 : index
    %53 = vector.load %arg8[%c0_36, %c1_37, %c1024_38] : memref<1x2x4096xf32, #tpu.memory_space<vmem>>, vector<1x1x1536xf32>
    %54 = vector.shape_cast %53 : vector<1x1x1536xf32> to vector<1x1536xf32>
    %55 = vector.broadcast %52 : vector<1x1536xf32> to vector<8x1536xf32>
    %56 = arith.mulf %50, %55 : vector<8x1536xf32>
    %57 = vector.broadcast %54 : vector<1x1536xf32> to vector<8x1536xf32>
    %58 = arith.addf %56, %57 : vector<8x1536xf32>
    %cst_39 = arith.constant 0.000000e+00 : f32
    %59 = vector.broadcast %cst_39 : f32 to vector<8x1536xf32>
    %60 = arith.maximumf %58, %59 : vector<8x1536xf32>
    %61 = arith.truncf %60 : vector<8x1536xf32> to vector<8x1536xbf16>
    %62 = vector.extract_strided_slice %61 {offsets = [0, 0], sizes = [8, 512], strides = [1, 1]} : vector<8x1536xbf16> to vector<8x512xbf16>
    %c0_40 = arith.constant 0 : index
    %c0_41 = arith.constant 0 : index
    %c0_42 = arith.constant 0 : index
    %63 = vector.load %arg7[%c0_40, %c0_41, %c0_42] : memref<1x512x1536xi8, #tpu.memory_space<vmem>>, vector<1x512x512xi8>
    %64 = vector.shape_cast %63 : vector<1x512x512xi8> to vector<512x512xi8>
    %65 = arith.sitofp %64 : vector<512x512xi8> to vector<512x512xbf16>
    %cst_43 = arith.constant dense<0.000000e+00> : vector<8x512xf32>
    %66 = tpu.matmul %62, %65, %cst_43 {dimension_numbers = #tpu.dot_dimension_numbers<[1], [0], [0], [1], [0, 0, 1, 1], [], []>} : vector<8x512xbf16>, vector<512x512xbf16>, vector<8x512xf32> -> vector<8x512xf32>
    %c0_44 = arith.constant 0 : index
    %c0_45 = arith.constant 0 : index
    %c2560 = arith.constant 2560 : index
    %67 = vector.load %arg8[%c0_44, %c0_45, %c2560] : memref<1x2x4096xf32, #tpu.memory_space<vmem>>, vector<1x1x512xf32>
    %68 = vector.shape_cast %67 : vector<1x1x512xf32> to vector<1x512xf32>
    %c0_46 = arith.constant 0 : index
    %c1_47 = arith.constant 1 : index
    %c2560_48 = arith.constant 2560 : index
    %69 = vector.load %arg8[%c0_46, %c1_47, %c2560_48] : memref<1x2x4096xf32, #tpu.memory_space<vmem>>, vector<1x1x512xf32>
    %70 = vector.shape_cast %69 : vector<1x1x512xf32> to vector<1x512xf32>
    %71 = vector.broadcast %68 : vector<1x512xf32> to vector<8x512xf32>
    %72 = arith.mulf %66, %71 : vector<8x512xf32>
    %73 = vector.broadcast %70 : vector<1x512xf32> to vector<8x512xf32>
    %74 = arith.addf %72, %73 : vector<8x512xf32>
    %c0_49 = arith.constant 0 : index
    %c0_50 = arith.constant 0 : index
    %c0_51 = arith.constant 0 : index
    %75 = vector.load %arg9[%c0_49, %c0_50, %c0_51] : memref<1x8x512xf32, #tpu.memory_space<vmem>>, vector<1x8x512xf32>
    %76 = vector.shape_cast %75 : vector<1x8x512xf32> to vector<8x512xf32>
    %77 = vector.shape_cast %74 : vector<8x512xf32> to vector<1x8x512xf32>
    tpu.vector_store %arg9[%c0_49, %c0_50, %c0_51], %77 {strides = array<i32>} : memref<1x8x512xf32, #tpu.memory_space<vmem>>, vector<1x8x512xf32>,
    %78 = vector.extract_strided_slice %61 {offsets = [0, 512], sizes = [8, 512], strides = [1, 1]} : vector<8x1536xbf16> to vector<8x512xbf16>
    %c0_52 = arith.constant 0 : index
    %c0_53 = arith.constant 0 : index
    %c512_54 = arith.constant 512 : index
    %79 = vector.load %arg7[%c0_52, %c0_53, %c512_54] : memref<1x512x1536xi8, #tpu.memory_space<vmem>>, vector<1x512x512xi8>
    %80 = vector.shape_cast %79 : vector<1x512x512xi8> to vector<512x512xi8>
    %81 = arith.sitofp %80 : vector<512x512xi8> to vector<512x512xbf16>
    %cst_55 = arith.constant dense<0.000000e+00> : vector<8x512xf32>
    %82 = tpu.matmul %78, %81, %cst_55 {dimension_numbers = #tpu.dot_dimension_numbers<[1], [0], [0], [1], [0, 0, 1, 1], [], []>} : vector<8x512xbf16>, vector<512x512xbf16>, vector<8x512xf32> -> vector<8x512xf32>
    %c0_56 = arith.constant 0 : index
    %c0_57 = arith.constant 0 : index
    %c3072 = arith.constant 3072 : index
    %83 = vector.load %arg8[%c0_56, %c0_57, %c3072] : memref<1x2x4096xf32, #tpu.memory_space<vmem>>, vector<1x1x512xf32>
    %84 = vector.shape_cast %83 : vector<1x1x512xf32> to vector<1x512xf32>
    %c0_58 = arith.constant 0 : index
    %c1_59 = arith.constant 1 : index
    %c3072_60 = arith.constant 3072 : index
    %85 = vector.load %arg8[%c0_58, %c1_59, %c3072_60] : memref<1x2x4096xf32, #tpu.memory_space<vmem>>, vector<1x1x512xf32>
    %86 = vector.shape_cast %85 : vector<1x1x512xf32> to vector<1x512xf32>
    %87 = vector.broadcast %84 : vector<1x512xf32> to vector<8x512xf32>
    %88 = arith.mulf %82, %87 : vector<8x512xf32>
    %89 = vector.broadcast %86 : vector<1x512xf32> to vector<8x512xf32>
    %90 = arith.addf %88, %89 : vector<8x512xf32>
    %cst_61 = arith.constant 0.000000e+00 : f32
    %91 = vector.broadcast %cst_61 : f32 to vector<8x512xf32>
    %92 = arith.maximumf %90, %91 : vector<8x512xf32>
    %c0_62 = arith.constant 0 : index
    %c0_63 = arith.constant 0 : index
    %c0_64 = arith.constant 0 : index
    %93 = vector.load %arg10[%c0_62, %c0_63, %c0_64] : memref<1x8x512xf32, #tpu.memory_space<vmem>>, vector<1x8x512xf32>
    %94 = vector.shape_cast %93 : vector<1x8x512xf32> to vector<8x512xf32>
    %95 = vector.shape_cast %92 : vector<8x512xf32> to vector<1x8x512xf32>
    tpu.vector_store %arg10[%c0_62, %c0_63, %c0_64], %95 {strides = array<i32>} : memref<1x8x512xf32, #tpu.memory_space<vmem>>, vector<1x8x512xf32>,
    %96 = vector.extract_strided_slice %61 {offsets = [0, 1024], sizes = [8, 512], strides = [1, 1]} : vector<8x1536xbf16> to vector<8x512xbf16>
    %c0_65 = arith.constant 0 : index
    %c0_66 = arith.constant 0 : index
    %c1024_67 = arith.constant 1024 : index
    %97 = vector.load %arg7[%c0_65, %c0_66, %c1024_67] : memref<1x512x1536xi8, #tpu.memory_space<vmem>>, vector<1x512x512xi8>
    %98 = vector.shape_cast %97 : vector<1x512x512xi8> to vector<512x512xi8>
    %99 = arith.sitofp %98 : vector<512x512xi8> to vector<512x512xbf16>
    %cst_68 = arith.constant dense<0.000000e+00> : vector<8x512xf32>
    %100 = tpu.matmul %96, %99, %cst_68 {dimension_numbers = #tpu.dot_dimension_numbers<[1], [0], [0], [1], [0, 0, 1, 1], [], []>} : vector<8x512xbf16>, vector<512x512xbf16>, vector<8x512xf32> -> vector<8x512xf32>
    %c0_69 = arith.constant 0 : index
    %c0_70 = arith.constant 0 : index
    %c3584 = arith.constant 3584 : index
    %101 = vector.load %arg8[%c0_69, %c0_70, %c3584] : memref<1x2x4096xf32, #tpu.memory_space<vmem>>, vector<1x1x512xf32>
    %102 = vector.shape_cast %101 : vector<1x1x512xf32> to vector<1x512xf32>
    %c0_71 = arith.constant 0 : index
    %c1_72 = arith.constant 1 : index
    %c3584_73 = arith.constant 3584 : index
    %103 = vector.load %arg8[%c0_71, %c1_72, %c3584_73] : memref<1x2x4096xf32, #tpu.memory_space<vmem>>, vector<1x1x512xf32>
    %104 = vector.shape_cast %103 : vector<1x1x512xf32> to vector<1x512xf32>
    %105 = vector.broadcast %102 : vector<1x512xf32> to vector<8x512xf32>
    %106 = arith.mulf %100, %105 : vector<8x512xf32>
    %107 = vector.broadcast %104 : vector<1x512xf32> to vector<8x512xf32>
    %108 = arith.addf %106, %107 : vector<8x512xf32>
    %cst_74 = arith.constant 0.000000e+00 : f32
    %109 = vector.broadcast %cst_74 : f32 to vector<8x512xf32>
    %110 = arith.maximumf %108, %109 : vector<8x512xf32>
    %c0_75 = arith.constant 0 : index
    %c0_76 = arith.constant 0 : index
    %c0_77 = arith.constant 0 : index
    %111 = vector.load %arg11[%c0_75, %c0_76, %c0_77] : memref<1x8x512xf32, #tpu.memory_space<vmem>>, vector<1x8x512xf32>
    %112 = vector.shape_cast %111 : vector<1x8x512xf32> to vector<8x512xf32>
    %113 = vector.shape_cast %110 : vector<8x512xf32> to vector<1x8x512xf32>
    tpu.vector_store %arg11[%c0_75, %c0_76, %c0_77], %113 {strides = array<i32>} : memref<1x8x512xf32, #tpu.memory_space<vmem>>, vector<1x8x512xf32>,
    return
  }
  func.func @transform_0(%arg0: i32, %arg1: i32) -> (i32, i32, i32) {
    %c0_i32 = arith.constant 0 : i32
    %c0_i32_0 = arith.constant 0 : i32
    return %arg0, %arg1, %c0_i32 : i32, i32, i32
  }
  func.func @transform_1(%arg0: i32, %arg1: i32) -> (i32, i32, i32) {
    %c0_i32 = arith.constant 0 : i32
    %c0_i32_0 = arith.constant 0 : i32
    %c0_i32_1 = arith.constant 0 : i32
    return %arg0, %c0_i32, %c0_i32_0 : i32, i32, i32
  }
  func.func @transform_2(%arg0: i32, %arg1: i32) -> (i32, i32, i32) {
    %c0_i32 = arith.constant 0 : i32
    %c0_i32_0 = arith.constant 0 : i32
    %c0_i32_1 = arith.constant 0 : i32
    return %arg0, %c0_i32, %c0_i32_0 : i32, i32, i32
  }
  func.func @transform_3(%arg0: i32, %arg1: i32) -> (i32, i32, i32) {
    %c0_i32 = arith.constant 0 : i32
    %c0_i32_0 = arith.constant 0 : i32
    %c0_i32_1 = arith.constant 0 : i32
    return %arg0, %c0_i32, %c0_i32_0 : i32, i32, i32
  }
  func.func @transform_4(%arg0: i32, %arg1: i32) -> (i32, i32, i32) {
    %c0_i32 = arith.constant 0 : i32
    %c0_i32_0 = arith.constant 0 : i32
    %c0_i32_1 = arith.constant 0 : i32
    return %arg0, %c0_i32, %c0_i32_0 : i32, i32, i32
  }
  func.func @transform_5(%arg0: i32, %arg1: i32) -> (i32, i32, i32) {
    %c0_i32 = arith.constant 0 : i32
    %c0_i32_0 = arith.constant 0 : i32
    %c0_i32_1 = arith.constant 0 : i32
    return %arg0, %c0_i32, %c0_i32_0 : i32, i32, i32
  }
  func.func @transform_6(%arg0: i32, %arg1: i32) -> (i32, i32, i32) {
    %c0_i32 = arith.constant 0 : i32
    %c0_i32_0 = arith.constant 0 : i32
    %c0_i32_1 = arith.constant 0 : i32
    return %arg0, %c0_i32, %c0_i32_0 : i32, i32, i32
  }
  func.func @transform_7(%arg0: i32, %arg1: i32) -> (i32, i32, i32) {
    %c0_i32 = arith.constant 0 : i32
    %c0_i32_0 = arith.constant 0 : i32
    return %arg0, %arg1, %c0_i32 : i32, i32, i32
  }
  func.func @transform_8(%arg0: i32, %arg1: i32) -> (i32, i32, i32) {
    %c0_i32 = arith.constant 0 : i32
    %c0_i32_0 = arith.constant 0 : i32
    return %arg0, %arg1, %c0_i32 : i32, i32, i32
  }
  func.func @transform_9(%arg0: i32, %arg1: i32) -> (i32, i32, i32) {
    %c0_i32 = arith.constant 0 : i32
    %c0_i32_0 = arith.constant 0 : i32
    return %arg0, %arg1, %c0_i32 : i32, i32, i32
  }
}

module attributes {stable_mosaic.version = 11 : i64} {
  func.func @_bayescap_pair_kernel(%arg0: i32, %arg1: i32, %arg2: memref<1x8x512xf32, #tpu.memory_space<vmem>>, %arg3: memref<1x512x256xi8, #tpu.memory_space<vmem>>, %arg4: memref<1x256x256xi8, #tpu.memory_space<vmem>>, %arg5: memref<1x256x512xi8, #tpu.memory_space<vmem>>, %arg6: memref<1x512x1536xi8, #tpu.memory_space<vmem>>, %arg7: memref<1x512x1536xi8, #tpu.memory_space<vmem>>, %arg8: memref<1x2x4096xf32, #tpu.memory_space<vmem>>, %arg9: memref<1x8x512xf32, #tpu.memory_space<vmem>>, %arg10: memref<1x8x512xf32, #tpu.memory_space<vmem>>, %arg11: memref<1x8x512xf32, #tpu.memory_space<vmem>>) attributes {dimension_semantics = [#tpu.dimension_semantics<parallel>, #tpu.dimension_semantics<arbitrary>], iteration_bounds = array<i64: 2, 1>, scalar_prefetch = 0 : i64, scratch_operands = 0 : i64, tpu.core_type = #tpu.core_type<tc>, window_params = [{transform_indices = @transform_0, window_bounds = array<i64: 1, 8, 512>}, {transform_indices = @transform_1, window_bounds = array<i64: 1, 512, 256>}, {transform_indices = @transform_2, window_bounds = array<i64: 1, 256, 256>}, {transform_indices = @transform_3, window_bounds = array<i64: 1, 256, 512>}, {transform_indices = @transform_4, window_bounds = array<i64: 1, 512, 1536>}, {transform_indices = @transform_5, window_bounds = array<i64: 1, 512, 1536>}, {transform_indices = @transform_6, window_bounds = array<i64: 1, 2, 4096>}, {transform_indices = @transform_7, window_bounds = array<i64: 1, 8, 512>}, {transform_indices = @transform_8, window_bounds = array<i64: 1, 8, 512>}, {transform_indices = @transform_9, window_bounds = array<i64: 1, 8, 512>}]} {
    %c0 = arith.constant 0 : index
    %c0_0 = arith.constant 0 : index
    %c0_1 = arith.constant 0 : index
    %0 = vector.load %arg2[%c0, %c0_0, %c0_1] : memref<1x8x512xf32, #tpu.memory_space<vmem>>, vector<1x8x512xf32>
    %1 = vector.shape_cast %0 : vector<1x8x512xf32> to vector<8x512xf32>
    %2 = arith.truncf %1 : vector<8x512xf32> to vector<8x512xbf16>
    %c0_2 = arith.constant 0 : index
    %c0_3 = arith.constant 0 : index
    %c0_4 = arith.constant 0 : index
    %3 = vector.load %arg3[%c0_2, %c0_3, %c0_4] : memref<1x512x256xi8, #tpu.memory_space<vmem>>, vector<1x512x256xi8>
    %4 = vector.shape_cast %3 : vector<1x512x256xi8> to vector<512x256xi8>
    %5 = arith.sitofp %4 : vector<512x256xi8> to vector<512x256xbf16>
    %cst = arith.constant dense<0.000000e+00> : vector<8x256xf32>
    %6 = tpu.matmul %2, %5, %cst {dimension_numbers = #tpu.dot_dimension_numbers<[1], [0], [0], [1], [0, 0, 1, 1], [], []>} : vector<8x512xbf16>, vector<512x256xbf16>, vector<8x256xf32> -> vector<8x256xf32>
    %c0_5 = arith.constant 0 : index
    %c0_6 = arith.constant 0 : index
    %c0_7 = arith.constant 0 : index
    %7 = vector.load %arg8[%c0_5, %c0_6, %c0_7] : memref<1x2x4096xf32, #tpu.memory_space<vmem>>, vector<1x1x256xf32>
    %8 = vector.shape_cast %7 : vector<1x1x256xf32> to vector<1x256xf32>
    %c0_8 = arith.constant 0 : index
    %c1 = arith.constant 1 : index
    %c0_9 = arith.constant 0 : index
    %9 = vector.load %arg8[%c0_8, %c1, %c0_9] : memref<1x2x4096xf32, #tpu.memory_space<vmem>>, vector<1x1x256xf32>
    %10 = vector.shape_cast %9 : vector<1x1x256xf32> to vector<1x256xf32>
    %11 = vector.broadcast %8 : vector<1x256xf32> to vector<8x256xf32>
    %12 = arith.mulf %6, %11 : vector<8x256xf32>
    %13 = vector.broadcast %10 : vector<1x256xf32> to vector<8x256xf32>
    %14 = arith.addf %12, %13 : vector<8x256xf32>
    %cst_10 = arith.constant 0.000000e+00 : f32
    %15 = vector.broadcast %cst_10 : f32 to vector<8x256xf32>
    %16 = arith.maximumf %14, %15 : vector<8x256xf32>
    %17 = arith.truncf %16 : vector<8x256xf32> to vector<8x256xbf16>
    %c0_11 = arith.constant 0 : index
    %c0_12 = arith.constant 0 : index
    %c0_13 = arith.constant 0 : index
    %18 = vector.load %arg4[%c0_11, %c0_12, %c0_13] : memref<1x256x256xi8, #tpu.memory_space<vmem>>, vector<1x256x256xi8>
    %19 = vector.shape_cast %18 : vector<1x256x256xi8> to vector<256x256xi8>
    %20 = arith.sitofp %19 : vector<256x256xi8> to vector<256x256xbf16>
    %cst_14 = arith.constant dense<0.000000e+00> : vector<8x256xf32>
    %21 = tpu.matmul %17, %20, %cst_14 {dimension_numbers = #tpu.dot_dimension_numbers<[1], [0], [0], [1], [0, 0, 1, 1], [], []>} : vector<8x256xbf16>, vector<256x256xbf16>, vector<8x256xf32> -> vector<8x256xf32>
    %c0_15 = arith.constant 0 : index
    %c0_16 = arith.constant 0 : index
    %c256 = arith.constant 256 : index
    %22 = vector.load %arg8[%c0_15, %c0_16, %c256] : memref<1x2x4096xf32, #tpu.memory_space<vmem>>, vector<1x1x256xf32>
    %23 = vector.shape_cast %22 : vector<1x1x256xf32> to vector<1x256xf32>
    %c0_17 = arith.constant 0 : index
    %c1_18 = arith.constant 1 : index
    %c256_19 = arith.constant 256 : index
    %24 = vector.load %arg8[%c0_17, %c1_18, %c256_19] : memref<1x2x4096xf32, #tpu.memory_space<vmem>>, vector<1x1x256xf32>
    %25 = vector.shape_cast %24 : vector<1x1x256xf32> to vector<1x256xf32>
    %26 = vector.broadcast %23 : vector<1x256xf32> to vector<8x256xf32>
    %27 = arith.mulf %21, %26 : vector<8x256xf32>
    %28 = vector.broadcast %25 : vector<1x256xf32> to vector<8x256xf32>
    %29 = arith.addf %27, %28 : vector<8x256xf32>
    %cst_20 = arith.constant 0.000000e+00 : f32
    %30 = vector.broadcast %cst_20 : f32 to vector<8x256xf32>
    %31 = arith.maximumf %29, %30 : vector<8x256xf32>
    %32 = arith.truncf %31 : vector<8x256xf32> to vector<8x256xbf16>
    %c0_21 = arith.constant 0 : index
    %c0_22 = arith.constant 0 : index
    %c0_23 = arith.constant 0 : index
    %33 = vector.load %arg5[%c0_21, %c0_22, %c0_23] : memref<1x256x512xi8, #tpu.memory_space<vmem>>, vector<1x256x512xi8>
    %34 = vector.shape_cast %33 : vector<1x256x512xi8> to vector<256x512xi8>
    %35 = arith.sitofp %34 : vector<256x512xi8> to vector<256x512xbf16>
    %cst_24 = arith.constant dense<0.000000e+00> : vector<8x512xf32>
    %36 = tpu.matmul %32, %35, %cst_24 {dimension_numbers = #tpu.dot_dimension_numbers<[1], [0], [0], [1], [0, 0, 1, 1], [], []>} : vector<8x256xbf16>, vector<256x512xbf16>, vector<8x512xf32> -> vector<8x512xf32>
    %c0_25 = arith.constant 0 : index
    %c0_26 = arith.constant 0 : index
    %c512 = arith.constant 512 : index
    %37 = vector.load %arg8[%c0_25, %c0_26, %c512] : memref<1x2x4096xf32, #tpu.memory_space<vmem>>, vector<1x1x512xf32>
    %38 = vector.shape_cast %37 : vector<1x1x512xf32> to vector<1x512xf32>
    %c0_27 = arith.constant 0 : index
    %c1_28 = arith.constant 1 : index
    %c512_29 = arith.constant 512 : index
    %39 = vector.load %arg8[%c0_27, %c1_28, %c512_29] : memref<1x2x4096xf32, #tpu.memory_space<vmem>>, vector<1x1x512xf32>
    %40 = vector.shape_cast %39 : vector<1x1x512xf32> to vector<1x512xf32>
    %41 = vector.broadcast %38 : vector<1x512xf32> to vector<8x512xf32>
    %42 = arith.mulf %36, %41 : vector<8x512xf32>
    %43 = vector.broadcast %40 : vector<1x512xf32> to vector<8x512xf32>
    %44 = arith.addf %42, %43 : vector<8x512xf32>
    %45 = arith.addf %44, %1 : vector<8x512xf32>
    %46 = arith.truncf %45 : vector<8x512xf32> to vector<8x512xbf16>
    %c0_30 = arith.constant 0 : index
    %c0_31 = arith.constant 0 : index
    %c0_32 = arith.constant 0 : index
    %47 = vector.load %arg6[%c0_30, %c0_31, %c0_32] : memref<1x512x1536xi8, #tpu.memory_space<vmem>>, vector<1x512x1536xi8>
    %48 = vector.shape_cast %47 : vector<1x512x1536xi8> to vector<512x1536xi8>
    %49 = arith.sitofp %48 : vector<512x1536xi8> to vector<512x1536xbf16>
    %cst_33 = arith.constant dense<0.000000e+00> : vector<8x1536xf32>
    %50 = tpu.matmul %46, %49, %cst_33 {dimension_numbers = #tpu.dot_dimension_numbers<[1], [0], [0], [1], [0, 0, 1, 1], [], []>} : vector<8x512xbf16>, vector<512x1536xbf16>, vector<8x1536xf32> -> vector<8x1536xf32>
    %c0_34 = arith.constant 0 : index
    %c0_35 = arith.constant 0 : index
    %c1024 = arith.constant 1024 : index
    %51 = vector.load %arg8[%c0_34, %c0_35, %c1024] : memref<1x2x4096xf32, #tpu.memory_space<vmem>>, vector<1x1x1536xf32>
    %52 = vector.shape_cast %51 : vector<1x1x1536xf32> to vector<1x1536xf32>
    %c0_36 = arith.constant 0 : index
    %c1_37 = arith.constant 1 : index
    %c1024_38 = arith.constant 1024 : index
    %53 = vector.load %arg8[%c0_36, %c1_37, %c1024_38] : memref<1x2x4096xf32, #tpu.memory_space<vmem>>, vector<1x1x1536xf32>
    %54 = vector.shape_cast %53 : vector<1x1x1536xf32> to vector<1x1536xf32>
    %55 = vector.broadcast %52 : vector<1x1536xf32> to vector<8x1536xf32>
    %56 = arith.mulf %50, %55 : vector<8x1536xf32>
    %57 = vector.broadcast %54 : vector<1x1536xf32> to vector<8x1536xf32>
    %58 = arith.addf %56, %57 : vector<8x1536xf32>
    %cst_39 = arith.constant 0.000000e+00 : f32
    %59 = vector.broadcast %cst_39 : f32 to vector<8x1536xf32>
    %60 = arith.maximumf %58, %59 : vector<8x1536xf32>
    %61 = arith.truncf %60 : vector<8x1536xf32> to vector<8x1536xbf16>
    %62 = vector.extract_strided_slice %61 {offsets = [0, 0], sizes = [8, 512], strides = [1, 1]} : vector<8x1536xbf16> to vector<8x512xbf16>
    %c0_40 = arith.constant 0 : index
    %c0_41 = arith.constant 0 : index
    %c0_42 = arith.constant 0 : index
    %63 = vector.load %arg7[%c0_40, %c0_41, %c0_42] : memref<1x512x1536xi8, #tpu.memory_space<vmem>>, vector<1x512x512xi8>
    %64 = vector.shape_cast %63 : vector<1x512x512xi8> to vector<512x512xi8>
    %65 = arith.sitofp %64 : vector<512x512xi8> to vector<512x512xbf16>
    %cst_43 = arith.constant dense<0.000000e+00> : vector<8x512xf32>
    %66 = tpu.matmul %62, %65, %cst_43 {dimension_numbers = #tpu.dot_dimension_numbers<[1], [0], [0], [1], [0, 0, 1, 1], [], []>} : vector<8x512xbf16>, vector<512x512xbf16>, vector<8x512xf32> -> vector<8x512xf32>
    %c0_44 = arith.constant 0 : index
    %c0_45 = arith.constant 0 : index
    %c2560 = arith.constant 2560 : index
    %67 = vector.load %arg8[%c0_44, %c0_45, %c2560] : memref<1x2x4096xf32, #tpu.memory_space<vmem>>, vector<1x1x512xf32>
    %68 = vector.shape_cast %67 : vector<1x1x512xf32> to vector<1x512xf32>
    %c0_46 = arith.constant 0 : index
    %c1_47 = arith.constant 1 : index
    %c2560_48 = arith.constant 2560 : index
    %69 = vector.load %arg8[%c0_46, %c1_47, %c2560_48] : memref<1x2x4096xf32, #tpu.memory_space<vmem>>, vector<1x1x512xf32>
    %70 = vector.shape_cast %69 : vector<1x1x512xf32> to vector<1x512xf32>
    %71 = vector.broadcast %68 : vector<1x512xf32> to vector<8x512xf32>
    %72 = arith.mulf %66, %71 : vector<8x512xf32>
    %73 = vector.broadcast %70 : vector<1x512xf32> to vector<8x512xf32>
    %74 = arith.addf %72, %73 : vector<8x512xf32>
    %c0_49 = arith.constant 0 : index
    %c0_50 = arith.constant 0 : index
    %c0_51 = arith.constant 0 : index
    %75 = vector.load %arg9[%c0_49, %c0_50, %c0_51] : memref<1x8x512xf32, #tpu.memory_space<vmem>>, vector<1x8x512xf32>
    %76 = vector.shape_cast %75 : vector<1x8x512xf32> to vector<8x512xf32>
    %77 = vector.shape_cast %74 : vector<8x512xf32> to vector<1x8x512xf32>
    tpu.vector_store %arg9[%c0_49, %c0_50, %c0_51], %77 {strides = array<i32>} : memref<1x8x512xf32, #tpu.memory_space<vmem>>, vector<1x8x512xf32>,
    %78 = vector.extract_strided_slice %61 {offsets = [0, 512], sizes = [8, 512], strides = [1, 1]} : vector<8x1536xbf16> to vector<8x512xbf16>
    %c0_52 = arith.constant 0 : index
    %c0_53 = arith.constant 0 : index
    %c512_54 = arith.constant 512 : index
    %79 = vector.load %arg7[%c0_52, %c0_53, %c512_54] : memref<1x512x1536xi8, #tpu.memory_space<vmem>>, vector<1x512x512xi8>
    %80 = vector.shape_cast %79 : vector<1x512x512xi8> to vector<512x512xi8>
    %81 = arith.sitofp %80 : vector<512x512xi8> to vector<512x512xbf16>
    %cst_55 = arith.constant dense<0.000000e+00> : vector<8x512xf32>
    %82 = tpu.matmul %78, %81, %cst_55 {dimension_numbers = #tpu.dot_dimension_numbers<[1], [0], [0], [1], [0, 0, 1, 1], [], []>} : vector<8x512xbf16>, vector<512x512xbf16>, vector<8x512xf32> -> vector<8x512xf32>
    %c0_56 = arith.constant 0 : index
    %c0_57 = arith.constant 0 : index
    %c3072 = arith.constant 3072 : index
    %83 = vector.load %arg8[%c0_56, %c0_57, %c3072] : memref<1x2x4096xf32, #tpu.memory_space<vmem>>, vector<1x1x512xf32>
    %84 = vector.shape_cast %83 : vector<1x1x512xf32> to vector<1x512xf32>
    %c0_58 = arith.constant 0 : index
    %c1_59 = arith.constant 1 : index
    %c3072_60 = arith.constant 3072 : index
    %85 = vector.load %arg8[%c0_58, %c1_59, %c3072_60] : memref<1x2x4096xf32, #tpu.memory_space<vmem>>, vector<1x1x512xf32>
    %86 = vector.shape_cast %85 : vector<1x1x512xf32> to vector<1x512xf32>
    %87 = vector.broadcast %84 : vector<1x512xf32> to vector<8x512xf32>
    %88 = arith.mulf %82, %87 : vector<8x512xf32>
    %89 = vector.broadcast %86 : vector<1x512xf32> to vector<8x512xf32>
    %90 = arith.addf %88, %89 : vector<8x512xf32>
    %cst_61 = arith.constant 0.000000e+00 : f32
    %91 = vector.broadcast %cst_61 : f32 to vector<8x512xf32>
    %92 = arith.maximumf %90, %91 : vector<8x512xf32>
    %c0_62 = arith.constant 0 : index
    %c0_63 = arith.constant 0 : index
    %c0_64 = arith.constant 0 : index
    %93 = vector.load %arg10[%c0_62, %c0_63, %c0_64] : memref<1x8x512xf32, #tpu.memory_space<vmem>>, vector<1x8x512xf32>
    %94 = vector.shape_cast %93 : vector<1x8x512xf32> to vector<8x512xf32>
    %95 = vector.shape_cast %92 : vector<8x512xf32> to vector<1x8x512xf32>
    tpu.vector_store %arg10[%c0_62, %c0_63, %c0_64], %95 {strides = array<i32>} : memref<1x8x512xf32, #tpu.memory_space<vmem>>, vector<1x8x512xf32>,
    %96 = vector.extract_strided_slice %61 {offsets = [0, 1024], sizes = [8, 512], strides = [1, 1]} : vector<8x1536xbf16> to vector<8x512xbf16>
    %c0_65 = arith.constant 0 : index
    %c0_66 = arith.constant 0 : index
    %c1024_67 = arith.constant 1024 : index
    %97 = vector.load %arg7[%c0_65, %c0_66, %c1024_67] : memref<1x512x1536xi8, #tpu.memory_space<vmem>>, vector<1x512x512xi8>
    %98 = vector.shape_cast %97 : vector<1x512x512xi8> to vector<512x512xi8>
    %99 = arith.sitofp %98 : vector<512x512xi8> to vector<512x512xbf16>
    %cst_68 = arith.constant dense<0.000000e+00> : vector<8x512xf32>
    %100 = tpu.matmul %96, %99, %cst_68 {dimension_numbers = #tpu.dot_dimension_numbers<[1], [0], [0], [1], [0, 0, 1, 1], [], []>} : vector<8x512xbf16>, vector<512x512xbf16>, vector<8x512xf32> -> vector<8x512xf32>
    %c0_69 = arith.constant 0 : index
    %c0_70 = arith.constant 0 : index
    %c3584 = arith.constant 3584 : index
    %101 = vector.load %arg8[%c0_69, %c0_70, %c3584] : memref<1x2x4096xf32, #tpu.memory_space<vmem>>, vector<1x1x512xf32>
    %102 = vector.shape_cast %101 : vector<1x1x512xf32> to vector<1x512xf32>
    %c0_71 = arith.constant 0 : index
    %c1_72 = arith.constant 1 : index
    %c3584_73 = arith.constant 3584 : index
    %103 = vector.load %arg8[%c0_71, %c1_72, %c3584_73] : memref<1x2x4096xf32, #tpu.memory_space<vmem>>, vector<1x1x512xf32>
    %104 = vector.shape_cast %103 : vector<1x1x512xf32> to vector<1x512xf32>
    %105 = vector.broadcast %102 : vector<1x512xf32> to vector<8x512xf32>
    %106 = arith.mulf %100, %105 : vector<8x512xf32>
    %107 = vector.broadcast %104 : vector<1x512xf32> to vector<8x512xf32>
    %108 = arith.addf %106, %107 : vector<8x512xf32>
    %cst_74 = arith.constant 0.000000e+00 : f32
    %109 = vector.broadcast %cst_74 : f32 to vector<8x512xf32>
    %110 = arith.maximumf %108, %109 : vector<8x512xf32>
    %c0_75 = arith.constant 0 : index
    %c0_76 = arith.constant 0 : index
    %c0_77 = arith.constant 0 : index
    %111 = vector.load %arg11[%c0_75, %c0_76, %c0_77] : memref<1x8x512xf32, #tpu.memory_space<vmem>>, vector<1x8x512xf32>
    %112 = vector.shape_cast %111 : vector<1x8x512xf32> to vector<8x512xf32>
    %113 = vector.shape_cast %110 : vector<8x512xf32> to vector<1x8x512xf32>
    tpu.vector_store %arg11[%c0_75, %c0_76, %c0_77], %113 {strides = array<i32>} : memref<1x8x512xf32, #tpu.memory_space<vmem>>, vector<1x8x512xf32>,
    return
  }
  func.func @transform_0(%arg0: i32, %arg1: i32) -> (i32, i32, i32) {
    %c0_i32 = arith.constant 0 : i32
    %c0_i32_0 = arith.constant 0 : i32
    return %arg0, %arg1, %c0_i32 : i32, i32, i32
  }
  func.func @transform_1(%arg0: i32, %arg1: i32) -> (i32, i32, i32) {
    %c0_i32 = arith.constant 0 : i32
    %c0_i32_0 = arith.constant 0 : i32
    %c0_i32_1 = arith.constant 0 : i32
    return %arg0, %c0_i32, %c0_i32_0 : i32, i32, i32
  }
  func.func @transform_2(%arg0: i32, %arg1: i32) -> (i32, i32, i32) {
    %c0_i32 = arith.constant 0 : i32
    %c0_i32_0 = arith.constant 0 : i32
    %c0_i32_1 = arith.constant 0 : i32
    return %arg0, %c0_i32, %c0_i32_0 : i32, i32, i32
  }
  func.func @transform_3(%arg0: i32, %arg1: i32) -> (i32, i32, i32) {
    %c0_i32 = arith.constant 0 : i32
    %c0_i32_0 = arith.constant 0 : i32
    %c0_i32_1 = arith.constant 0 : i32
    return %arg0, %c0_i32, %c0_i32_0 : i32, i32, i32
  }
  func.func @transform_4(%arg0: i32, %arg1: i32) -> (i32, i32, i32) {
    %c0_i32 = arith.constant 0 : i32
    %c0_i32_0 = arith.constant 0 : i32
    %c0_i32_1 = arith.constant 0 : i32
    return %arg0, %c0_i32, %c0_i32_0 : i32, i32, i32
  }
  func.func @transform_5(%arg0: i32, %arg1: i32) -> (i32, i32, i32) {
    %c0_i32 = arith.constant 0 : i32
    %c0_i32_0 = arith.constant 0 : i32
    %c0_i32_1 = arith.constant 0 : i32
    return %arg0, %c0_i32, %c0_i32_0 : i32, i32, i32
  }
  func.func @transform_6(%arg0: i32, %arg1: i32) -> (i32, i32, i32) {
    %c0_i32 = arith.constant 0 : i32
    %c0_i32_0 = arith.constant 0 : i32
    %c0_i32_1 = arith.constant 0 : i32
    return %arg0, %c0_i32, %c0_i32_0 : i32, i32, i32
  }
  func.func @transform_7(%arg0: i32, %arg1: i32) -> (i32, i32, i32) {
    %c0_i32 = arith.constant 0 : i32
    %c0_i32_0 = arith.constant 0 : i32
    return %arg0, %arg1, %c0_i32 : i32, i32, i32
  }
  func.func @transform_8(%arg0: i32, %arg1: i32) -> (i32, i32, i32) {
    %c0_i32 = arith.constant 0 : i32
    %c0_i32_0 = arith.constant 0 : i32
    return %arg0, %arg1, %c0_i32 : i32, i32, i32
  }
  func.func @transform_9(%arg0: i32, %arg1: i32) -> (i32, i32, i32) {
    %c0_i32 = arith.constant 0 : i32
    %c0_i32_0 = arith.constant 0 : i32
    return %arg0, %arg1, %c0_i32 : i32, i32, i32
  }
}

</mosaic_0001>

<llo_original>
// kernel: tpu_custom_call.1
$region0: #{tpu_custom_call.1}
  #allocation0 [shape = 'u32[]', space=smem, size = 0x4, offset = 0x4, fixed_abs, tag = 'smem constant byte address 0x4 - core index']
  #allocation1 [shape = 'u32[144,128]{1,0:T(1,128)}', space=vmem, size = 0x12000, scoped, tag = 'internal scratch']
  %s0 = inlined_call_operand.hbm [shape: f32[2,8,512], index: 0, kind: input, shape index: {}]
  %s1 = inlined_call_operand.hbm [shape: s8[2,512,256], index: 1, kind: input, shape index: {}]
  %s2 = inlined_call_operand.hbm [shape: s8[2,256,256], index: 2, kind: input, shape index: {}]
  %s3 = inlined_call_operand.hbm [shape: s8[2,256,512], index: 3, kind: input, shape index: {}]
  %s4 = inlined_call_operand.hbm [shape: s8[2,512,1536], index: 4, kind: input, shape index: {}]
  %s5 = inlined_call_operand.hbm [shape: s8[2,512,1536], index: 5, kind: input, shape index: {}]
  %s6 = inlined_call_operand.hbm [shape: f32[2,2,4096], index: 6, kind: input, shape index: {}]
  %s7 = inlined_call_operand.hbm [shape: f32[2,8,512], index: 7, kind: output, shape index: {0}]
  %s8 = inlined_call_operand.hbm [shape: f32[2,8,512], index: 8, kind: output, shape index: {1}]
  %s9 = inlined_call_operand.hbm [shape: f32[2,8,512], index: 9, kind: output, shape index: {2}]
  %10 = xla_tuple %s7, %s8, %s9
  %s11 = sld [smem:[#allocation0]]
  $region105: #{tpu_custom_call.1} parent=0
    _
  %s13 = ssub.s32 1, %s11
  %s14 = scalar_select 0, %s13, %s11
  $region1: #{tpu_custom_call.1} parent=0
    #allocation2 [shape = 'u8[32768]{0}', space=vmem, size = 0x8000, scoped, tag = 'input window, operand 0']
    #allocation3 [shape = 's32[2]{0}', space=sflag, size = 0x8, scoped, tag = 'scoped memory for tpu_custom_call.1']
    #allocation4 [shape = 's32[2]{0}', space=sflag, size = 0x8, scoped, tag = 'scoped memory for tpu_custom_call.1']
    #allocation5 [shape = 'u8[262144]{0}', space=vmem, size = 0x40000, scoped, tag = 'input window, operand 1']
    #allocation6 [shape = 's32[2]{0}', space=sflag, size = 0x8, scoped, tag = 'scoped memory for tpu_custom_call.1']
    #allocation7 [shape = 'u8[131072]{0}', space=vmem, size = 0x20000, scoped, tag = 'input window, operand 2']
    #allocation8 [shape = 'u8[262144]{0}', space=vmem, size = 0x40000, scoped, tag = 'input window, operand 3']
    #allocation9 [shape = 's32[2]{0}', space=sflag, size = 0x8, scoped, tag = 'scoped memory for tpu_custom_call.1']
    #allocation10 [shape = 'u8[1572864]{0}', space=vmem, size = 0x180000, scoped, tag = 'input window, operand 4']
    #allocation11 [shape = 'u8[1572864]{0}', space=vmem, size = 0x180000, scoped, tag = 'input window, operand 5']
    #allocation12 [shape = 's32[2]{0}', space=sflag, size = 0x8, scoped, tag = 'scoped memory for tpu_custom_call.1']
    #allocation13 [shape = 'u8[65536]{0}', space=vmem, size = 0x10000, scoped, tag = 'input window, operand 6']
    #allocation14 [shape = 'u8[32768]{0}', space=vmem, size = 0x8000, scoped, tag = 'output window, operand 0']
    #allocation15 [shape = 'u8[32768]{0}', space=vmem, size = 0x8000, scoped, tag = 'output window, operand 1']
    #allocation16 [shape = 's32[2]{0}', space=sflag, size = 0x8, scoped, tag = 'scoped memory for tpu_custom_call.1']
    #allocation17 [shape = 'u8[32768]{0}', space=vmem, size = 0x8000, scoped, tag = 'output window, operand 2']
    %15 = vsyncpa [#allocation3], 0
    %s16 = scalar_lea.sflag [#allocation3], 1
    %17 = vsyncpa %s16, 0
    %18 = vsyncpa [#allocation6], 0
    %s19 = scalar_lea.sflag [#allocation6], 1
    %20 = vsyncpa %s19, 0
    %21 = vsyncpa [#allocation9], 0
    %s22 = scalar_lea.sflag [#allocation9], 1
    %23 = vsyncpa %s22, 0
    %24 = vsyncpa [#allocation12], 0
    %s25 = scalar_lea.sflag [#allocation12], 1
    %26 = vsyncpa %s25, 0
    %27 = vsyncpa [#allocation4], 0
    %s28 = scalar_lea.sflag [#allocation4], 1
    %29 = vsyncpa %s28, 0
    %30 = vsyncpa [#allocation16], 0
    %s31 = scalar_lea.sflag [#allocation16], 1
    %32 = vsyncpa %s31, 0
    loop: start=0, step=1, limit=4
    $region2: #{tpu_custom_call.1} parent=1 // loop_pre_header
      _
    $region3: #{tpu_custom_call.1} parent=1 // loop_header
      %s34 = sphi 0, %s38
      %p35 = scmp.ge.s32.totalorder %s34, 4
      %s41 = sphi 0, %s53
      %s42 = sphi 0, %s49
      %s43 = sphi 0, %s41
      %s44 = sphi 0, %s42
      %s45 = sphi 0, %s43
      %s46 = sphi 0, %s44
      %s58 = sphi 0, %s60
      %s61 = sphi 0, %s58
      %s62 = sphi 0, %s61
      %s78 = sphi 0, %s62
      %s84 = sphi 0, %s86
      %s87 = sphi 0, %s84
      %s88 = sphi 0, %s87
      %s104 = sphi 0, %s88
      %s110 = sphi 0, %s112
      %s113 = sphi 0, %s110
      %s114 = sphi 0, %s113
      %s130 = sphi 0, %s114
      %s136 = sphi 0, %s138
      %s139 = sphi 0, %s136
      %s140 = sphi 0, %s139
      %s156 = sphi 0, %s140
      %s162 = sphi 0, %s164
      %s165 = sphi 0, %s162
      %s166 = sphi 0, %s165
      %s182 = sphi 0, %s166
      %s188 = sphi 0, %s190
      %s191 = sphi 0, %s188
      %s192 = sphi 0, %s191
      %s208 = sphi 0, %s192
      %s214 = sphi 0, %s216
      %s217 = sphi 0, %s214
      %s218 = sphi 0, %s217
      %s234 = sphi 0, %s218
      %s242 = sphi 0, %s244
      %s245 = sphi 0, %s242
      %s246 = sphi 0, %s245
      %s262 = sphi 0, %s246
      %s270 = sphi 0, %s272
      %s273 = sphi 0, %s270
      %s274 = sphi 0, %s273
      %s290 = sphi 0, %s274
      %s298 = sphi 0, %s300
      %s301 = sphi 0, %s298
      %s302 = sphi 0, %s301
      %s318 = sphi 0, %s302
    $region4: #{tpu_custom_call.1} parent=1 // loop_header_branch
      %37 = sbr.rel (%p35) target = $region8
    $region5: #{tpu_custom_call.1} parent=1 // loop_body
      %s39 = ssub.s32 %s34, 1
      %s40 = ssub.s32 %s34, 2
      %s47 = sadd.s32 1, %s42
      %p48 = scmp.ge.s32.totalorder %s47, 1
      %s49 = scalar_select %p48, 0, %s47
      %s50 = sadd.s32 1, %s41
      %s51 = scalar_select %p48, %s50, %s41
      %p52 = scmp.ge.s32.totalorder %s51, 2
      %s53 = scalar_select %p52, 0, %s51
      %s54 = ssub.s32 %s41, %s53
      %s55 = ssub.s32 %s42, %s49
      %s56 = sor.u32 %s54, %s55
      %p57 = scmp.eq.s32.totalorder %s56, 0
      %s59 = sadd.s32 %s58, 1
      %s60 = scalar_select %p57, %s58, %s59
      %p63 = pneg %p57
      %p64 = scmp.eq.s32.totalorder %s34, 1
      %p65 = por %p63, %p64
      %p66 = scmp.ne.s32.totalorder %s58, %s61
      %p67 = scmp.eq.s32.totalorder %s34, 0
      %p68 = por %p66, %p67
      %p69 = scmp.ne.s32.totalorder %s58, %s61
      %p70 = scmp.eq.s32.totalorder %s39, 1
      %p71 = por %p69, %p70
      %p72 = scmp.ne.s32.totalorder %s61, %s62
      %p73 = scmp.eq.s32.totalorder %s39, 0
      %p74 = por %p72, %p73
      %p75 = scmp.ne.s32.totalorder %s61, %s62
      %p76 = scmp.eq.s32.totalorder %s40, 1
      %p77 = por %p75, %p76
      %p79 = scmp.ne.s32.totalorder %s62, %s78
      %p80 = scmp.eq.s32.totalorder %s40, 0
      %p81 = por %p79, %p80
      %s82 = ssub.s32 %s41, %s53
      %p83 = scmp.eq.s32.totalorder %s82, 0
      %s85 = sadd.s32 %s84, 1
      %s86 = scalar_select %p83, %s84, %s85
      %p89 = pneg %p83
      %p90 = scmp.eq.s32.totalorder %s34, 1
      %p91 = por %p89, %p90
      %p92 = scmp.ne.s32.totalorder %s84, %s87
      %p93 = scmp.eq.s32.totalorder %s34, 0
      %p94 = por %p92, %p93
      %p95 = scmp.ne.s32.totalorder %s84, %s87
      %p96 = scmp.eq.s32.totalorder %s39, 1
      %p97 = por %p95, %p96
      %p98 = scmp.ne.s32.totalorder %s87, %s88
      %p99 = scmp.eq.s32.totalorder %s39, 0
      %p100 = por %p98, %p99
      %p101 = scmp.ne.s32.totalorder %s87, %s88
      %p102 = scmp.eq.s32.totalorder %s40, 1
      %p103 = por %p101, %p102
      %p105 = scmp.ne.s32.totalorder %s88, %s104
      %p106 = scmp.eq.s32.totalorder %s40, 0
      %p107 = por %p105, %p106
      %s108 = ssub.s32 %s41, %s53
      %p109 = scmp.eq.s32.totalorder %s108, 0
      %s111 = sadd.s32 %s110, 1
      %s112 = scalar_select %p109, %s110, %s111
      %p115 = pneg %p109
      %p116 = scmp.eq.s32.totalorder %s34, 1
      %p117 = por %p115, %p116
      %p118 = scmp.ne.s32.totalorder %s110, %s113
      %p119 = scmp.eq.s32.totalorder %s34, 0
      %p120 = por %p118, %p119
      %p121 = scmp.ne.s32.totalorder %s110, %s113
      %p122 = scmp.eq.s32.totalorder %s39, 1
      %p123 = por %p121, %p122
      %p124 = scmp.ne.s32.totalorder %s113, %s114
      %p125 = scmp.eq.s32.totalorder %s39, 0
      %p126 = por %p124, %p125
      %p127 = scmp.ne.s32.totalorder %s113, %s114
      %p128 = scmp.eq.s32.totalorder %s40, 1
      %p129 = por %p127, %p128
      %p131 = scmp.ne.s32.totalorder %s114, %s130
      %p132 = scmp.eq.s32.totalorder %s40, 0
      %p133 = por %p131, %p132
      %s134 = ssub.s32 %s41, %s53
      %p135 = scmp.eq.s32.totalorder %s134, 0
      %s137 = sadd.s32 %s136, 1
      %s138 = scalar_select %p135, %s136, %s137
      %p141 = pneg %p135
      %p142 = scmp.eq.s32.totalorder %s34, 1
      %p143 = por %p141, %p142
      %p144 = scmp.ne.s32.totalorder %s136, %s139
      %p145 = scmp.eq.s32.totalorder %s34, 0
      %p146 = por %p144, %p145
      %p147 = scmp.ne.s32.totalorder %s136, %s139
      %p148 = scmp.eq.s32.totalorder %s39, 1
      %p149 = por %p147, %p148
      %p150 = scmp.ne.s32.totalorder %s139, %s140
      %p151 = scmp.eq.s32.totalorder %s39, 0
      %p152 = por %p150, %p151
      %p153 = scmp.ne.s32.totalorder %s139, %s140
      %p154 = scmp.eq.s32.totalorder %s40, 1
      %p155 = por %p153, %p154
      %p157 = scmp.ne.s32.totalorder %s140, %s156
      %p158 = scmp.eq.s32.totalorder %s40, 0
      %p159 = por %p157, %p158
      %s160 = ssub.s32 %s41, %s53
      %p161 = scmp.eq.s32.totalorder %s160, 0
      %s163 = sadd.s32 %s162, 1
      %s164 = scalar_select %p161, %s162, %s163
      %p167 = pneg %p161
      %p168 = scmp.eq.s32.totalorder %s34, 1
      %p169 = por %p167, %p168
      %p170 = scmp.ne.s32.totalorder %s162, %s165
      %p171 = scmp.eq.s32.totalorder %s34, 0
      %p172 = por %p170, %p171
      %p173 = scmp.ne.s32.totalorder %s162, %s165
      %p174 = scmp.eq.s32.totalorder %s39, 1
      %p175 = por %p173, %p174
      %p176 = scmp.ne.s32.totalorder %s165, %s166
      %p177 = scmp.eq.s32.totalorder %s39, 0
      %p178 = por %p176, %p177
      %p179 = scmp.ne.s32.totalorder %s165, %s166
      %p180 = scmp.eq.s32.totalorder %s40, 1
      %p181 = por %p179, %p180
      %p183 = scmp.ne.s32.totalorder %s166, %s182
      %p184 = scmp.eq.s32.totalorder %s40, 0
      %p185 = por %p183, %p184
      %s186 = ssub.s32 %s41, %s53
      %p187 = scmp.eq.s32.totalorder %s186, 0
      %s189 = sadd.s32 %s188, 1
      %s190 = scalar_select %p187, %s188, %s189
      %p193 = pneg %p187
      %p194 = scmp.eq.s32.totalorder %s34, 1
      %p195 = por %p193, %p194
      %p196 = scmp.ne.s32.totalorder %s188, %s191
      %p197 = scmp.eq.s32.totalorder %s34, 0
      %p198 = por %p196, %p197
      %p199 = scmp.ne.s32.totalorder %s188, %s191
      %p200 = scmp.eq.s32.totalorder %s39, 1
      %p201 = por %p199, %p200
      %p202 = scmp.ne.s32.totalorder %s191, %s192
      %p203 = scmp.eq.s32.totalorder %s39, 0
      %p204 = por %p202, %p203
      %p205 = scmp.ne.s32.totalorder %s191, %s192
      %p206 = scmp.eq.s32.totalorder %s40, 1
      %p207 = por %p205, %p206
      %p209 = scmp.ne.s32.totalorder %s192, %s208
      %p210 = scmp.eq.s32.totalorder %s40, 0
      %p211 = por %p209, %p210
      %s212 = ssub.s32 %s41, %s53
      %p213 = scmp.eq.s32.totalorder %s212, 0
      %s215 = sadd.s32 %s214, 1
      %s216 = scalar_select %p213, %s214, %s215
      %p219 = pneg %p213
      %p220 = scmp.eq.s32.totalorder %s34, 1
      %p221 = por %p219, %p220
      %p222 = scmp.ne.s32.totalorder %s214, %s217
      %p223 = scmp.eq.s32.totalorder %s34, 0
      %p224 = por %p222, %p223
      %p225 = scmp.ne.s32.totalorder %s214, %s217
      %p226 = scmp.eq.s32.totalorder %s39, 1
      %p227 = por %p225, %p226
      %p228 = scmp.ne.s32.totalorder %s217, %s218
      %p229 = scmp.eq.s32.totalorder %s39, 0
      %p230 = por %p228, %p229
      %p231 = scmp.ne.s32.totalorder %s217, %s218
      %p232 = scmp.eq.s32.totalorder %s40, 1
      %p233 = por %p231, %p232
      %p235 = scmp.ne.s32.totalorder %s218, %s234
      %p236 = scmp.eq.s32.totalorder %s40, 0
      %p237 = por %p235, %p236
      %s238 = ssub.s32 %s41, %s53
      %s239 = ssub.s32 %s42, %s49
      %s240 = sor.u32 %s238, %s239
      %p241 = scmp.eq.s32.totalorder %s240, 0
      %s243 = sadd.s32 %s242, 1
      %s244 = scalar_select %p241, %s242, %s243
      %p247 = pneg %p241
      %p248 = scmp.eq.s32.totalorder %s34, 1
      %p249 = por %p247, %p248
      %p250 = scmp.ne.s32.totalorder %s242, %s245
      %p251 = scmp.eq.s32.totalorder %s34, 0
      %p252 = por %p250, %p251
      %p253 = scmp.ne.s32.totalorder %s242, %s245
      %p254 = scmp.eq.s32.totalorder %s39, 1
      %p255 = por %p253, %p254
      %p256 = scmp.ne.s32.totalorder %s245, %s246
      %p257 = scmp.eq.s32.totalorder %s39, 0
      %p258 = por %p256, %p257
      %p259 = scmp.ne.s32.totalorder %s245, %s246
      %p260 = scmp.eq.s32.totalorder %s40, 1
      %p261 = por %p259, %p260
      %p263 = scmp.ne.s32.totalorder %s246, %s262
      %p264 = scmp.eq.s32.totalorder %s40, 0
      %p265 = por %p263, %p264
      %s266 = ssub.s32 %s41, %s53
      %s267 = ssub.s32 %s42, %s49
      %s268 = sor.u32 %s266, %s267
      %p269 = scmp.eq.s32.totalorder %s268, 0
      %s271 = sadd.s32 %s270, 1
      %s272 = scalar_select %p269, %s270, %s271
      %p275 = pneg %p269
      %p276 = scmp.eq.s32.totalorder %s34, 1
      %p277 = por %p275, %p276
      %p278 = scmp.ne.s32.totalorder %s270, %s273
      %p279 = scmp.eq.s32.totalorder %s34, 0
      %p280 = por %p278, %p279
      %p281 = scmp.ne.s32.totalorder %s270, %s273
      %p282 = scmp.eq.s32.totalorder %s39, 1
      %p283 = por %p281, %p282
      %p284 = scmp.ne.s32.totalorder %s273, %s274
      %p285 = scmp.eq.s32.totalorder %s39, 0
      %p286 = por %p284, %p285
      %p287 = scmp.ne.s32.totalorder %s273, %s274
      %p288 = scmp.eq.s32.totalorder %s40, 1
      %p289 = por %p287, %p288
      %p291 = scmp.ne.s32.totalorder %s274, %s290
      %p292 = scmp.eq.s32.totalorder %s40, 0
      %p293 = por %p291, %p292
      %s294 = ssub.s32 %s41, %s53
      %s295 = ssub.s32 %s42, %s49
      %s296 = sor.u32 %s294, %s295
      %p297 = scmp.eq.s32.totalorder %s296, 0
      %s299 = sadd.s32 %s298, 1
      %s300 = scalar_select %p297, %s298, %s299
      %p303 = pneg %p297
      %p304 = scmp.eq.s32.totalorder %s34, 1
      %p305 = por %p303, %p304
      %p306 = scmp.ne.s32.totalorder %s298, %s301
      %p307 = scmp.eq.s32.totalorder %s34, 0
      %p308 = por %p306, %p307
      %p309 = scmp.ne.s32.totalorder %s298, %s301
      %p310 = scmp.eq.s32.totalorder %s39, 1
      %p311 = por %p309, %p310
      %p312 = scmp.ne.s32.totalorder %s301, %s302
      %p313 = scmp.eq.s32.totalorder %s39, 0
      %p314 = por %p312, %p313
      %p315 = scmp.ne.s32.totalorder %s301, %s302
      %p316 = scmp.eq.s32.totalorder %s40, 1
      %p317 = por %p315, %p316
      %p319 = scmp.ne.s32.totalorder %s302, %s318
      %p320 = scmp.eq.s32.totalorder %s40, 0
      %p321 = por %p319, %p320
      %p322 = scmp.le.s32.totalorder 1, %s34
      %p323 = scmp.lt.s32.totalorder %s34, 3
      %p324 = pnand %p322, %p323
      %p325 = pneg %p324
      // Predicated region
      $region9: #{tpu_custom_call.1} parent=5 // pred_check
        _
      $region10: #{tpu_custom_call.1} parent=5 // pred_check_branch
        %327 = sbr.rel (%p324) target = $region12
      $region11: #{tpu_custom_call.1} parent=5 // pred_region
        %s328 = ssub.s32 %s34, 1
      $region12: #{tpu_custom_call.1} parent=5 // pred_fallthru
        _
      %p329 = scmp.lt.s32.totalorder %s34, 2
      // Predicated region
      $region13: #{tpu_custom_call.1} parent=5 // pred_check
        %p330 = pneg %p329
      $region14: #{tpu_custom_call.1} parent=5 // pred_check_branch
        %332 = sbr.rel (%p330) target = $region16
      $region15: #{tpu_custom_call.1} parent=5 // pred_region
        // Predicated region
        $region17: #{tpu_custom_call.1} parent=15 // pred_check
          %p333 = pneg %p68
        $region18: #{tpu_custom_call.1} parent=15 // pred_check_branch
          %335 = sbr.rel (%p333) target = $region20
        $region19: #{tpu_custom_call.1} parent=15 // pred_region
          %s336 = sand.u32 %s58, 1
          %s337 = scalar_lea.sflag [#allocation3], %s336
          %s338 = sand.u32 %s58, 1
          %s339 = smul.addr %s338, 32
          %s340 = scalar_lea.vmem [#allocation2], %s339
          %s342 = ssub.s32 512, 512
          %343 = vsyncadd %s337, %s342
          %s344 = smul.addr %s42, 4
          %s345 = smul.addr %s41, 4
          %s346 = sadd.s32 %s344, %s345
          %s347 = smul.addr %s346, 128
          %s348 = scalar_lea.hbm %s0, %s347
          %s350 = sshll.u32 %s340, 4
          %s351 = int_to_ptr.vmem [resolvable:$true] %s350
          %353 = dma.hbm_to_vmem [thread:$0]  %s348, 512, %s351, %s337
        $region20: #{tpu_custom_call.1} parent=15 // pred_fallthru
          _
        // Predicated region
        $region21: #{tpu_custom_call.1} parent=15 // pred_check
          %p354 = pneg %p94
        $region22: #{tpu_custom_call.1} parent=15 // pred_check_branch
          %356 = sbr.rel (%p354) target = $region24
        $region23: #{tpu_custom_call.1} parent=15 // pred_region
          %s357 = sand.u32 %s34, 1
          %s358 = scalar_lea.sflag [#allocation6], %s357
          %s359 = sand.u32 %s84, 1
          %s360 = smul.addr %s359, 256
          %s361 = scalar_lea.vmem [#allocation5], %s360
          %s363 = ssub.s32 4096, 4096
          %364 = vsyncadd %s358, %s363
          %s365 = smul.addr %s41, 32
          %s366 = smul.addr %s365, 128
          %s367 = scalar_lea.hbm %s1, %s366
          %s368 = sshll.u32 %s361, 4
          %s369 = int_to_ptr.vmem [resolvable:$true] %s368
          %374 = dma.hbm_to_vmem [thread:$0]  %s367, 4096, %s369, %s358, 256, 256, 16
        $region24: #{tpu_custom_call.1} parent=15 // pred_fallthru
          _
        // Predicated region
        $region25: #{tpu_custom_call.1} parent=15 // pred_check
          %p375 = pneg %p120
        $region26: #{tpu_custom_call.1} parent=15 // pred_check_branch
          %377 = sbr.rel (%p375) target = $region28
        $region27: #{tpu_custom_call.1} parent=15 // pred_region
          %s378 = sand.u32 %s34, 1
          %s379 = scalar_lea.sflag [#allocation6], %s378
          %s380 = sand.u32 %s110, 1
          %s381 = smul.addr %s380, 128
          %s382 = scalar_lea.vmem [#allocation7], %s381
          %s384 = ssub.s32 2048, 2048
          %385 = vsyncadd %s379, %s384
          %s386 = smul.addr %s41, 16
          %s387 = smul.addr %s386, 128
          %s388 = scalar_lea.hbm %s2, %s387
          %s389 = sshll.u32 %s382, 4
          %s390 = int_to_ptr.vmem [resolvable:$true] %s389
          %395 = dma.hbm_to_vmem [thread:$0]  %s388, 2048, %s390, %s379, 256, 256, 16
        $region28: #{tpu_custom_call.1} parent=15 // pred_fallthru
          _
        // Predicated region
        $region29: #{tpu_custom_call.1} parent=15 // pred_check
          %p396 = pneg %p146
        $region30: #{tpu_custom_call.1} parent=15 // pred_check_branch
          %398 = sbr.rel (%p396) target = $region32
        $region31: #{tpu_custom_call.1} parent=15 // pred_region
          %s399 = sand.u32 %s34, 1
          %s400 = scalar_lea.sflag [#allocation9], %s399
          %s401 = sand.u32 %s136, 1
          %s402 = smul.addr %s401, 256
          %s403 = scalar_lea.vmem [#allocation8], %s402
          %s405 = ssub.s32 4096, 4096
          %406 = vsyncadd %s400, %s405
          %s407 = smul.addr %s41, 32
          %s408 = smul.addr %s407, 128
          %s409 = scalar_lea.hbm %s3, %s408
          %s410 = sshll.u32 %s403, 4
          %s411 = int_to_ptr.vmem [resolvable:$true] %s410
          %416 = dma.hbm_to_vmem [thread:$0]  %s409, 4096, %s411, %s400, 512, 512, 32
        $region32: #{tpu_custom_call.1} parent=15 // pred_fallthru
          _
        // Predicated region
        $region33: #{tpu_custom_call.1} parent=15 // pred_check
          %p417 = pneg %p172
        $region34: #{tpu_custom_call.1} parent=15 // pred_check_branch
          %419 = sbr.rel (%p417) target = $region36
        $region35: #{tpu_custom_call.1} parent=15 // pred_region
          %s420 = sand.u32 %s34, 1
          %s421 = scalar_lea.sflag [#allocation9], %s420
          %s422 = sand.u32 %s162, 1
          %s423 = smul.addr %s422, 1536
          %s424 = scalar_lea.vmem [#allocation10], %s423
          %s426 = ssub.s32 24576, 24576
          %427 = vsyncadd %s421, %s426
          %s428 = smul.addr %s41, 192
          %s429 = smul.addr %s428, 128
          %s430 = scalar_lea.hbm %s4, %s429
          %s431 = sshll.u32 %s424, 4
          %s432 = int_to_ptr.vmem [resolvable:$true] %s431
          %437 = dma.hbm_to_vmem [thread:$0]  %s430, 24576, %s432, %s421, 1536, 1536, 96
        $region36: #{tpu_custom_call.1} parent=15 // pred_fallthru
          _
        // Predicated region
        $region37: #{tpu_custom_call.1} parent=15 // pred_check
          %p438 = pneg %p198
        $region38: #{tpu_custom_call.1} parent=15 // pred_check_branch
          %440 = sbr.rel (%p438) target = $region40
        $region39: #{tpu_custom_call.1} parent=15 // pred_region
          %s441 = sand.u32 %s34, 1
          %s442 = scalar_lea.sflag [#allocation12], %s441
          %s443 = sand.u32 %s188, 1
          %s444 = smul.addr %s443, 1536
          %s445 = scalar_lea.vmem [#allocation11], %s444
          %s447 = ssub.s32 24576, 24576
          %448 = vsyncadd %s442, %s447
          %s449 = smul.addr %s41, 192
          %s450 = smul.addr %s449, 128
          %s451 = scalar_lea.hbm %s5, %s450
          %s452 = sshll.u32 %s445, 4
          %s453 = int_to_ptr.vmem [resolvable:$true] %s452
          %458 = dma.hbm_to_vmem [thread:$0]  %s451, 24576, %s453, %s442, 1536, 1536, 96
        $region40: #{tpu_custom_call.1} parent=15 // pred_fallthru
          _
        // Predicated region
        $region41: #{tpu_custom_call.1} parent=15 // pred_check
          %p459 = pneg %p224
        $region42: #{tpu_custom_call.1} parent=15 // pred_check_branch
          %461 = sbr.rel (%p459) target = $region44
        $region43: #{tpu_custom_call.1} parent=15 // pred_region
          %s462 = sand.u32 %s34, 1
          %s463 = scalar_lea.sflag [#allocation12], %s462
          %s464 = sand.u32 %s214, 1
          %s465 = smul.addr %s464, 64
          %s466 = scalar_lea.vmem [#allocation13], %s465
          %s468 = ssub.s32 1024, 1024
          %469 = vsyncadd %s463, %s468
          %s470 = smul.addr %s41, 32
          %s471 = smul.addr %s470, 32
          %s472 = scalar_lea.hbm %s6, %s471
          %s474 = sshll.u32 %s466, 4
          %s475 = int_to_ptr.vmem [resolvable:$true] %s474
          %477 = dma.hbm_to_vmem [thread:$0]  %s472, 1024, %s475, %s463
        $region44: #{tpu_custom_call.1} parent=15 // pred_fallthru
          _
      $region16: #{tpu_custom_call.1} parent=5 // pred_fallthru
        _
      %p478 = scmp.le.s32.totalorder 1, %s34
      %p479 = scmp.lt.s32.totalorder %s34, 3
      %p480 = pnand %p478, %p479
      %p481 = pneg %p480
      // Predicated region
      $region45: #{tpu_custom_call.1} parent=5 // pred_check
        _
      $region46: #{tpu_custom_call.1} parent=5 // pred_check_branch
        %483 = sbr.rel (%p480) target = $region48
      $region47: #{tpu_custom_call.1} parent=5 // pred_region
        %s484 = ssub.s32 %s34, 1
        %s485 = sand.u32 %s61, 1
        %s486 = scalar_lea.sflag [#allocation3], %s485
        %s487 = sand.u32 %s61, 1
        %s488 = smul.addr %s487, 32
        %s489 = scalar_lea.vmem [#allocation2], %s488
        // Predicated region
        $region49: #{tpu_custom_call.1} parent=47 // pred_check
          %p490 = pneg %p74
        $region50: #{tpu_custom_call.1} parent=47 // pred_check_branch
          %492 = sbr.rel (%p490) target = $region52
        $region51: #{tpu_custom_call.1} parent=47 // pred_region
          %493 = dma.done %s486, 512
        $region52: #{tpu_custom_call.1} parent=47 // pred_fallthru
          _
        %s494 = sand.u32 %s39, 1
        %s495 = scalar_lea.sflag [#allocation6], %s494
        %s496 = sand.u32 %s87, 1
        %s497 = smul.addr %s496, 256
        %s498 = scalar_lea.vmem [#allocation5], %s497
        // Predicated region
        $region53: #{tpu_custom_call.1} parent=47 // pred_check
          %p499 = pneg %p100
        $region54: #{tpu_custom_call.1} parent=47 // pred_check_branch
          %501 = sbr.rel (%p499) target = $region56
        $region55: #{tpu_custom_call.1} parent=47 // pred_region
          %502 = dma.done %s495, 4096
        $region56: #{tpu_custom_call.1} parent=47 // pred_fallthru
          _
        %s503 = sand.u32 %s39, 1
        %s504 = scalar_lea.sflag [#allocation6], %s503
        %s505 = sand.u32 %s113, 1
        %s506 = smul.addr %s505, 128
        %s507 = scalar_lea.vmem [#allocation7], %s506
        // Predicated region
        $region57: #{tpu_custom_call.1} parent=47 // pred_check
          %p508 = pneg %p126
        $region58: #{tpu_custom_call.1} parent=47 // pred_check_branch
          %510 = sbr.rel (%p508) target = $region60
        $region59: #{tpu_custom_call.1} parent=47 // pred_region
          %511 = dma.done %s504, 2048
        $region60: #{tpu_custom_call.1} parent=47 // pred_fallthru
          _
        %s512 = sand.u32 %s39, 1
        %s513 = scalar_lea.sflag [#allocation9], %s512
        %s514 = sand.u32 %s139, 1
        %s515 = smul.addr %s514, 256
        %s516 = scalar_lea.vmem [#allocation8], %s515
        // Predicated region
        $region61: #{tpu_custom_call.1} parent=47 // pred_check
          %p517 = pneg %p152
        $region62: #{tpu_custom_call.1} parent=47 // pred_check_branch
          %519 = sbr.rel (%p517) target = $region64
        $region63: #{tpu_custom_call.1} parent=47 // pred_region
          %520 = dma.done %s513, 4096
        $region64: #{tpu_custom_call.1} parent=47 // pred_fallthru
          _
        %s521 = sand.u32 %s39, 1
        %s522 = scalar_lea.sflag [#allocation9], %s521
        %s523 = sand.u32 %s165, 1
        %s524 = smul.addr %s523, 1536
        %s525 = scalar_lea.vmem [#allocation10], %s524
        // Predicated region
        $region65: #{tpu_custom_call.1} parent=47 // pred_check
          %p526 = pneg %p178
        $region66: #{tpu_custom_call.1} parent=47 // pred_check_branch
          %528 = sbr.rel (%p526) target = $region68
        $region67: #{tpu_custom_call.1} parent=47 // pred_region
          %529 = dma.done %s522, 24576
        $region68: #{tpu_custom_call.1} parent=47 // pred_fallthru
          _
        %s530 = sand.u32 %s39, 1
        %s531 = scalar_lea.sflag [#allocation12], %s530
        %s532 = sand.u32 %s191, 1
        %s533 = smul.addr %s532, 1536
        %s534 = scalar_lea.vmem [#allocation11], %s533
        // Predicated region
        $region69: #{tpu_custom_call.1} parent=47 // pred_check
          %p535 = pneg %p204
        $region70: #{tpu_custom_call.1} parent=47 // pred_check_branch
          %537 = sbr.rel (%p535) target = $region72
        $region71: #{tpu_custom_call.1} parent=47 // pred_region
          %538 = dma.done %s531, 24576
        $region72: #{tpu_custom_call.1} parent=47 // pred_fallthru
          _
        %s539 = sand.u32 %s39, 1
        %s540 = scalar_lea.sflag [#allocation12], %s539
        %s541 = sand.u32 %s217, 1
        %s542 = smul.addr %s541, 64
        %s543 = scalar_lea.vmem [#allocation13], %s542
        // Predicated region
        $region73: #{tpu_custom_call.1} parent=47 // pred_check
          %p544 = pneg %p230
        $region74: #{tpu_custom_call.1} parent=47 // pred_check_branch
          %546 = sbr.rel (%p544) target = $region76
        $region75: #{tpu_custom_call.1} parent=47 // pred_region
          %547 = dma.done %s540, 1024
        $region76: #{tpu_custom_call.1} parent=47 // pred_fallthru
          _
        %s548 = sand.u32 %s61, 1
        %s549 = scalar_lea.sflag [#allocation3], %s548
        %s550 = sand.u32 %s61, 1
        %s551 = smul.addr %s550, 32
        %s552 = scalar_lea.vmem [#allocation2], %s551
        %p553 = pneg %p74
        %p554 = pneg %p71
        %s555 = sand.u32 %s39, 1
        %s556 = scalar_lea.sflag [#allocation6], %s555
        %s557 = sand.u32 %s87, 1
        %s558 = smul.addr %s557, 256
        %s559 = scalar_lea.vmem [#allocation5], %s558
        %p560 = pneg %p100
        %p561 = pneg %p97
        %s562 = sand.u32 %s39, 1
        %s563 = scalar_lea.sflag [#allocation6], %s562
        %s564 = sand.u32 %s113, 1
        %s565 = smul.addr %s564, 128
        %s566 = scalar_lea.vmem [#allocation7], %s565
        %p567 = pneg %p126
        %p568 = pneg %p123
        %s569 = sand.u32 %s39, 1
        %s570 = scalar_lea.sflag [#allocation9], %s569
        %s571 = sand.u32 %s139, 1
        %s572 = smul.addr %s571, 256
        %s573 = scalar_lea.vmem [#allocation8], %s572
        %p574 = pneg %p152
        %p575 = pneg %p149
        %s576 = sand.u32 %s39, 1
        %s577 = scalar_lea.sflag [#allocation9], %s576
        %s578 = sand.u32 %s165, 1
        %s579 = smul.addr %s578, 1536
        %s580 = scalar_lea.vmem [#allocation10], %s579
        %p581 = pneg %p178
        %p582 = pneg %p175
        %s583 = sand.u32 %s39, 1
        %s584 = scalar_lea.sflag [#allocation12], %s583
        %s585 = sand.u32 %s191, 1
        %s586 = smul.addr %s585, 1536
        %s587 = scalar_lea.vmem [#allocation11], %s586
        %p588 = pneg %p204
        %p589 = pneg %p201
        %s590 = sand.u32 %s39, 1
        %s591 = scalar_lea.sflag [#allocation12], %s590
        %s592 = sand.u32 %s217, 1
        %s593 = smul.addr %s592, 64
        %s594 = scalar_lea.vmem [#allocation13], %s593
        %p595 = pneg %p230
        %p596 = pneg %p227
        %p597 = pneg %p258
        %p598 = pneg %p255
        %s599 = sand.u32 %s245, 1
        %s600 = scalar_lea.sflag [#allocation4], %s599
        %s601 = sand.u32 %s245, 1
        %s602 = smul.addr %s601, 32
        %s603 = scalar_lea.vmem [#allocation14], %s602
        %p604 = pneg %p286
        %p605 = pneg %p283
        %s606 = sand.u32 %s39, 1
        %s607 = scalar_lea.sflag [#allocation16], %s606
        %s608 = sand.u32 %s273, 1
        %s609 = smul.addr %s608, 32
        %s610 = scalar_lea.vmem [#allocation15], %s609
        %p611 = pneg %p314
        %p612 = pneg %p311
        %s613 = sand.u32 %s39, 1
        %s614 = scalar_lea.sflag [#allocation16], %s613
        %s615 = sand.u32 %s301, 1
        %s616 = smul.addr %s615, 32
        %s617 = scalar_lea.vmem [#allocation17], %s616
        %v618 = vld [vmem:[%s489] sm:$0xff]
        %v619 = vld [vmem:[%s489 + $0x8] sm:$0xff]
        %v620 = vld [vmem:[%s489 + $0x10] sm:$0xff]
        %v621 = vld [vmem:[%s489 + $0x18] sm:$0xff]
        %v622 = vpack.c.bf16 %v618, %v618
        %v623 = vpack.c.bf16 %v619, %v619
        %v624 = vpack.c.bf16 %v620, %v620
        %v625 = vpack.c.bf16 %v621, %v621
        %v626 = vld [vmem:[%s498] sm:$0xff]
        %v627 = vld [vmem:[%s498 + $0x8] sm:$0xff]
        %v628 = vld [vmem:[%s498 + $0x10] sm:$0xff]
        %v629 = vld [vmem:[%s498 + $0x18] sm:$0xff]
        %v630 = vld [vmem:[%s498 + $0x20] sm:$0xff]
        %v631 = vld [vmem:[%s498 + $0x28] sm:$0xff]
        %v632 = vld [vmem:[%s498 + $0x30] sm:$0xff]
        %v633 = vld [vmem:[%s498 + $0x38] sm:$0xff]
        %v634 = vld [vmem:[%s498 + $0x40] sm:$0xff]
        %v635 = vld [vmem:[%s498 + $0x48] sm:$0xff]
        %v636 = vld [vmem:[%s498 + $0x50] sm:$0xff]
        %v637 = vld [vmem:[%s498 + $0x58] sm:$0xff]
        %v638 = vld [vmem:[%s498 + $0x60] sm:$0xff]
        %v639 = vld [vmem:[%s498 + $0x68] sm:$0xff]
        %v640 = vld [vmem:[%s498 + $0x70] sm:$0xff]
        %v641 = vld [vmem:[%s498 + $0x78] sm:$0xff]
        %v642 = vld [vmem:[%s498 + $0x80] sm:$0xff]
        %v643 = vld [vmem:[%s498 + $0x88] sm:$0xff]
        %v644 = vld [vmem:[%s498 + $0x90] sm:$0xff]
        %v645 = vld [vmem:[%s498 + $0x98] sm:$0xff]
        %v646 = vld [vmem:[%s498 + $0xa0] sm:$0xff]
        %v647 = vld [vmem:[%s498 + $0xa8] sm:$0xff]
        %v648 = vld [vmem:[%s498 + $0xb0] sm:$0xff]
        %v649 = vld [vmem:[%s498 + $0xb8] sm:$0xff]
        %v650 = vld [vmem:[%s498 + $0xc0] sm:$0xff]
        %v651 = vld [vmem:[%s498 + $0xc8] sm:$0xff]
        %v652 = vld [vmem:[%s498 + $0xd0] sm:$0xff]
        %v653 = vld [vmem:[%s498 + $0xd8] sm:$0xff]
        %v654 = vld [vmem:[%s498 + $0xe0] sm:$0xff]
        %v655 = vld [vmem:[%s498 + $0xe8] sm:$0xff]
        %v656 = vld [vmem:[%s498 + $0xf0] sm:$0xff]
        %v657 = vld [vmem:[%s498 + $0xf8] sm:$0xff]
        %v658 = vunpack.c.l.s8.bf16 %v626
        %v659 = vunpack.c.l.s8.bf16 %v627
        %v660 = vunpack.c.h.s8.bf16 %v626
        %v661 = vunpack.c.h.s8.bf16 %v627
        %v662 = vunpack.c.l.s8.bf16 %v628
        %v663 = vunpack.c.l.s8.bf16 %v629
        %v664 = vunpack.c.h.s8.bf16 %v628
        %v665 = vunpack.c.h.s8.bf16 %v629
        %v666 = vunpack.c.l.s8.bf16 %v630
        %v667 = vunpack.c.l.s8.bf16 %v631
        %v668 = vunpack.c.h.s8.bf16 %v630
        %v669 = vunpack.c.h.s8.bf16 %v631
        %v670 = vunpack.c.l.s8.bf16 %v632
        %v671 = vunpack.c.l.s8.bf16 %v633
        %v672 = vunpack.c.h.s8.bf16 %v632
        %v673 = vunpack.c.h.s8.bf16 %v633
        %v674 = vunpack.c.l.s8.bf16 %v634
        %v675 = vunpack.c.l.s8.bf16 %v635
        %v676 = vunpack.c.h.s8.bf16 %v634
        %v677 = vunpack.c.h.s8.bf16 %v635
        %v678 = vunpack.c.l.s8.bf16 %v636
        %v679 = vunpack.c.l.s8.bf16 %v637
        %v680 = vunpack.c.h.s8.bf16 %v636
        %v681 = vunpack.c.h.s8.bf16 %v637
        %v682 = vunpack.c.l.s8.bf16 %v638
        %v683 = vunpack.c.l.s8.bf16 %v639
        %v684 = vunpack.c.h.s8.bf16 %v638
        %v685 = vunpack.c.h.s8.bf16 %v639
        %v686 = vunpack.c.l.s8.bf16 %v640
        %v687 = vunpack.c.l.s8.bf16 %v641
        %v688 = vunpack.c.h.s8.bf16 %v640
        %v689 = vunpack.c.h.s8.bf16 %v641
        %v690 = vunpack.c.l.s8.bf16 %v642
        %v691 = vunpack.c.l.s8.bf16 %v643
        %v692 = vunpack.c.h.s8.bf16 %v642
        %v693 = vunpack.c.h.s8.bf16 %v643
        %v694 = vunpack.c.l.s8.bf16 %v644
        %v695 = vunpack.c.l.s8.bf16 %v645
        %v696 = vunpack.c.h.s8.bf16 %v644
        %v697 = vunpack.c.h.s8.bf16 %v645
        %v698 = vunpack.c.l.s8.bf16 %v646
        %v699 = vunpack.c.l.s8.bf16 %v647
        %v700 = vunpack.c.h.s8.bf16 %v646
        %v701 = vunpack.c.h.s8.bf16 %v647
        %v702 = vunpack.c.l.s8.bf16 %v648
        %v703 = vunpack.c.l.s8.bf16 %v649
        %v704 = vunpack.c.h.s8.bf16 %v648
        %v705 = vunpack.c.h.s8.bf16 %v649
        %v706 = vunpack.c.l.s8.bf16 %v650
        %v707 = vunpack.c.l.s8.bf16 %v651
        %v708 = vunpack.c.h.s8.bf16 %v650
        %v709 = vunpack.c.h.s8.bf16 %v651
        %v710 = vunpack.c.l.s8.bf16 %v652
        %v711 = vunpack.c.l.s8.bf16 %v653
        %v712 = vunpack.c.h.s8.bf16 %v652
        %v713 = vunpack.c.h.s8.bf16 %v653
        %v714 = vunpack.c.l.s8.bf16 %v654
        %v715 = vunpack.c.l.s8.bf16 %v655
        %v716 = vunpack.c.h.s8.bf16 %v654
        %v717 = vunpack.c.h.s8.bf16 %v655
        %v718 = vunpack.c.l.s8.bf16 %v656
        %v719 = vunpack.c.l.s8.bf16 %v657
        %v720 = vunpack.c.h.s8.bf16 %v656
        %v721 = vunpack.c.h.s8.bf16 %v657
        %722 = vmatprep.subr.bf16.mxu0 %v673
        %723 = vmatpush1.bf16.msra.mxu0 %v672
        %724 = vmatprep.subr.bf16.mxu0 %v671
        %725 = vmatpush1.bf16.msra.mxu0 %v670
        %726 = vmatprep.subr.bf16.mxu0 %v669
        %727 = vmatpush1.bf16.msra.mxu0 %v668
        %728 = vmatprep.subr.bf16.mxu0 %v667
        %729 = vmatpush1.bf16.msra.mxu0 %v666
        %730 = vmatprep.subr.bf16.mxu0 %v665
        %731 = vmatpush1.bf16.msra.mxu0 %v664
        %732 = vmatprep.subr.bf16.mxu0 %v663
        %733 = vmatpush1.bf16.msra.mxu0 %v662
        %734 = vmatprep.subr.bf16.mxu0 %v661
        %735 = vmatpush1.bf16.msra.mxu0 %v660
        %736 = vmatprep.subr.bf16.mxu0 %v659
        %737 = vmatpush1.bf16.msra.mxu0 %v658
        %738 = vmatprep.subr.bf16.mxu0 %v689
        %739 = vmatpush2.bf16.msra.mxu0 %v688
        %740 = vmatprep.subr.bf16.mxu0 %v687
        %741 = vmatpush2.bf16.msra.mxu0 %v686
        %742 = vmatprep.subr.bf16.mxu0 %v685
        %743 = vmatpush2.bf16.msra.mxu0 %v684
        %744 = vmatprep.subr.bf16.mxu0 %v683
        %745 = vmatpush2.bf16.msra.mxu0 %v682
        %746 = vmatprep.subr.bf16.mxu0 %v681
        %747 = vmatpush2.bf16.msra.mxu0 %v680
        %748 = vmatprep.subr.bf16.mxu0 %v679
        %749 = vmatpush2.bf16.msra.mxu0 %v678
        %750 = vmatprep.subr.bf16.mxu0 %v677
        %751 = vmatpush2.bf16.msra.mxu0 %v676
        %752 = vmatprep.subr.bf16.mxu0 %v675
        %753 = vmatpush2.bf16.msra.mxu0 %v674
        %754 = vmatprep.mubr.bf16.mxu0 %v623
        %755 = vmatmul.mubr.bf16.gmra.mxu0 %v622
        %v756 = vpop.f32.mrf.mxu0
        %v757 = vadd.f32 0.0, %v756
        %v758 = vpop.f32.mrf.mxu0
        %v759 = vadd.f32 0.0, %v758
        %v760 = vpop.f32.mrf.mxu0
        %v761 = vpop.f32.mrf.mxu0
        %762 = vdwg.mxu0
        %763 = vmatprep.subr.bf16.mxu0 %v705
        %764 = vmatpush1.bf16.msra.mxu0 %v704
        %765 = vmatprep.subr.bf16.mxu0 %v703
        %766 = vmatpush1.bf16.msra.mxu0 %v702
        %767 = vmatprep.subr.bf16.mxu0 %v701
        %768 = vmatpush1.bf16.msra.mxu0 %v700
        %769 = vmatprep.subr.bf16.mxu0 %v699
        %770 = vmatpush1.bf16.msra.mxu0 %v698
        %771 = vmatprep.subr.bf16.mxu0 %v697
        %772 = vmatpush1.bf16.msra.mxu0 %v696
        %773 = vmatprep.subr.bf16.mxu0 %v695
        %774 = vmatpush1.bf16.msra.mxu0 %v694
        %775 = vmatprep.subr.bf16.mxu0 %v693
        %776 = vmatpush1.bf16.msra.mxu0 %v692
        %777 = vmatprep.subr.bf16.mxu0 %v691
        %778 = vmatpush1.bf16.msra.mxu0 %v690
        %779 = vmatprep.subr.bf16.mxu0 %v721
        %780 = vmatpush2.bf16.msra.mxu0 %v720
        %781 = vmatprep.subr.bf16.mxu0 %v719
        %782 = vmatpush2.bf16.msra.mxu0 %v718
        %783 = vmatprep.subr.bf16.mxu0 %v717
        %784 = vmatpush2.bf16.msra.mxu0 %v716
        %785 = vmatprep.subr.bf16.mxu0 %v715
        %786 = vmatpush2.bf16.msra.mxu0 %v714
        %787 = vmatprep.subr.bf16.mxu0 %v713
        %788 = vmatpush2.bf16.msra.mxu0 %v712
        %789 = vmatprep.subr.bf16.mxu0 %v711
        %790 = vmatpush2.bf16.msra.mxu0 %v710
        %791 = vmatprep.subr.bf16.mxu0 %v709
        %792 = vmatpush2.bf16.msra.mxu0 %v708
        %793 = vmatprep.subr.bf16.mxu0 %v707
        %794 = vmatpush2.bf16.msra.mxu0 %v706
        %795 = vmatprep.mubr.bf16.mxu0 %v625
        %796 = vmatmul.mubr.bf16.gmra.mxu0 %v624
        %v797 = vpop.f32.mrf.mxu0
        %v798 = vadd.f32 %v757, %v797
        %v799 = vpop.f32.mrf.mxu0
        %v800 = vadd.f32 %v759, %v799
        %v801 = vpop.f32.mrf.mxu0
        %v802 = vpop.f32.mrf.mxu0
        %803 = vdwg.mxu0
        %v804 = vld [vmem:[%s543] ss:$2 sm:$0x3]
        %s805 = scalar_lea.vmem %s543, 1 [#allocation13]
        %v806 = vld [vmem:[%s805] ss:$2 sm:$0x3]
        %v808 = vlaneseq
        %v809 = vshrl.u32 %v808, 7
        %v810 = vsub.s32 0, %v809
        %v811 = vrot.slane %v804, %v810
        %v812 = vlaneseq
        %v813 = vshrl.u32 %v812, 7
        %v814 = vsub.s32 1, %v813
        %v815 = vrot.slane %v804, %v814
        %v818 = vmul.f32 %v798, %v811
        %v819 = vmul.f32 %v800, %v815
        %v821 = vlaneseq
        %v822 = vshrl.u32 %v821, 7
        %v823 = vsub.s32 0, %v822
        %v824 = vrot.slane %v806, %v823
        %v825 = vlaneseq
        %v826 = vshrl.u32 %v825, 7
        %v827 = vsub.s32 1, %v826
        %v828 = vrot.slane %v806, %v827
        %v831 = vadd.f32 %v818, %v824
        %v832 = vadd.f32 %v819, %v828
        %v833 = vmax.f32 %v831, 0.0
        %v834 = vmax.f32 %v832, 0.0
        %v835 = vpack.c.bf16 %v833, %v833
        %v836 = vpack.c.bf16 %v834, %v834
        %v837 = vld [vmem:[%s507] sm:$0xff]
        %v838 = vld [vmem:[%s507 + $0x8] sm:$0xff]
        %v839 = vld [vmem:[%s507 + $0x10] sm:$0xff]
        %v840 = vld [vmem:[%s507 + $0x18] sm:$0xff]
        %v841 = vld [vmem:[%s507 + $0x20] sm:$0xff]
        %v842 = vld [vmem:[%s507 + $0x28] sm:$0xff]
        %v843 = vld [vmem:[%s507 + $0x30] sm:$0xff]
        %v844 = vld [vmem:[%s507 + $0x38] sm:$0xff]
        %v845 = vld [vmem:[%s507 + $0x40] sm:$0xff]
        %v846 = vld [vmem:[%s507 + $0x48] sm:$0xff]
        %v847 = vld [vmem:[%s507 + $0x50] sm:$0xff]
        %v848 = vld [vmem:[%s507 + $0x58] sm:$0xff]
        %v849 = vld [vmem:[%s507 + $0x60] sm:$0xff]
        %v850 = vld [vmem:[%s507 + $0x68] sm:$0xff]
        %v851 = vld [vmem:[%s507 + $0x70] sm:$0xff]
        %v852 = vld [vmem:[%s507 + $0x78] sm:$0xff]
        %v853 = vunpack.c.l.s8.bf16 %v837
        %v854 = vunpack.c.l.s8.bf16 %v838
        %v855 = vunpack.c.h.s8.bf16 %v837
        %v856 = vunpack.c.h.s8.bf16 %v838
        %v857 = vunpack.c.l.s8.bf16 %v839
        %v858 = vunpack.c.l.s8.bf16 %v840
        %v859 = vunpack.c.h.s8.bf16 %v839
        %v860 = vunpack.c.h.s8.bf16 %v840
        %v861 = vunpack.c.l.s8.bf16 %v841
        %v862 = vunpack.c.l.s8.bf16 %v842
        %v863 = vunpack.c.h.s8.bf16 %v841
        %v864 = vunpack.c.h.s8.bf16 %v842
        %v865 = vunpack.c.l.s8.bf16 %v843
        %v866 = vunpack.c.l.s8.bf16 %v844
        %v867 = vunpack.c.h.s8.bf16 %v843
        %v868 = vunpack.c.h.s8.bf16 %v844
        %v869 = vunpack.c.l.s8.bf16 %v845
        %v870 = vunpack.c.l.s8.bf16 %v846
        %v871 = vunpack.c.h.s8.bf16 %v845
        %v872 = vunpack.c.h.s8.bf16 %v846
        %v873 = vunpack.c.l.s8.bf16 %v847
        %v874 = vunpack.c.l.s8.bf16 %v848
        %v875 = vunpack.c.h.s8.bf16 %v847
        %v876 = vunpack.c.h.s8.bf16 %v848
        %v877 = vunpack.c.l.s8.bf16 %v849
        %v878 = vunpack.c.l.s8.bf16 %v850
        %v879 = vunpack.c.h.s8.bf16 %v849
        %v880 = vunpack.c.h.s8.bf16 %v850
        %v881 = vunpack.c.l.s8.bf16 %v851
        %v882 = vunpack.c.l.s8.bf16 %v852
        %v883 = vunpack.c.h.s8.bf16 %v851
        %v884 = vunpack.c.h.s8.bf16 %v852
        %885 = vmatprep.subr.bf16.mxu0 %v868
        %886 = vmatpush1.bf16.msra.mxu0 %v867
        %887 = vmatprep.subr.bf16.mxu0 %v866
        %888 = vmatpush1.bf16.msra.mxu0 %v865
        %889 = vmatprep.subr.bf16.mxu0 %v864
        %890 = vmatpush1.bf16.msra.mxu0 %v863
        %891 = vmatprep.subr.bf16.mxu0 %v862
        %892 = vmatpush1.bf16.msra.mxu0 %v861
        %893 = vmatprep.subr.bf16.mxu0 %v860
        %894 = vmatpush1.bf16.msra.mxu0 %v859
        %895 = vmatprep.subr.bf16.mxu0 %v858
        %896 = vmatpush1.bf16.msra.mxu0 %v857
        %897 = vmatprep.subr.bf16.mxu0 %v856
        %898 = vmatpush1.bf16.msra.mxu0 %v855
        %899 = vmatprep.subr.bf16.mxu0 %v854
        %900 = vmatpush1.bf16.msra.mxu0 %v853
        %901 = vmatprep.subr.bf16.mxu0 %v884
        %902 = vmatpush2.bf16.msra.mxu0 %v883
        %903 = vmatprep.subr.bf16.mxu0 %v882
        %904 = vmatpush2.bf16.msra.mxu0 %v881
        %905 = vmatprep.subr.bf16.mxu0 %v880
        %906 = vmatpush2.bf16.msra.mxu0 %v879
        %907 = vmatprep.subr.bf16.mxu0 %v878
        %908 = vmatpush2.bf16.msra.mxu0 %v877
        %909 = vmatprep.subr.bf16.mxu0 %v876
        %910 = vmatpush2.bf16.msra.mxu0 %v875
        %911 = vmatprep.subr.bf16.mxu0 %v874
        %912 = vmatpush2.bf16.msra.mxu0 %v873
        %913 = vmatprep.subr.bf16.mxu0 %v872
        %914 = vmatpush2.bf16.msra.mxu0 %v871
        %915 = vmatprep.subr.bf16.mxu0 %v870
        %916 = vmatpush2.bf16.msra.mxu0 %v869
        %917 = vmatprep.mubr.bf16.mxu0 %v836
        %918 = vmatmul.mubr.bf16.gmra.mxu0 %v835
        %v919 = vpop.f32.mrf.mxu0
        %v920 = vadd.f32 0.0, %v919
        %v921 = vpop.f32.mrf.mxu0
        %v922 = vadd.f32 0.0, %v921
        %v923 = vpop.f32.mrf.mxu0
        %v924 = vpop.f32.mrf.mxu0
        %925 = vdwg.mxu0
        %s926 = scalar_lea.vmem %s543, 4 [#allocation13]
        %v927 = vld [vmem:[%s926] ss:$2 sm:$0x3]
        %s928 = scalar_lea.vmem %s543, 5 [#allocation13]
        %v929 = vld [vmem:[%s928] ss:$2 sm:$0x3]
        %v931 = vlaneseq
        %v932 = vshrl.u32 %v931, 7
        %v933 = vsub.s32 0, %v932
        %v934 = vrot.slane %v927, %v933
        %v935 = vlaneseq
        %v936 = vshrl.u32 %v935, 7
        %v937 = vsub.s32 1, %v936
        %v938 = vrot.slane %v927, %v937
        %v941 = vmul.f32 %v920, %v934
        %v942 = vmul.f32 %v922, %v938
        %v944 = vlaneseq
        %v945 = vshrl.u32 %v944, 7
        %v946 = vsub.s32 0, %v945
        %v947 = vrot.slane %v929, %v946
        %v948 = vlaneseq
        %v949 = vshrl.u32 %v948, 7
        %v950 = vsub.s32 1, %v949
        %v951 = vrot.slane %v929, %v950
        %v954 = vadd.f32 %v941, %v947
        %v955 = vadd.f32 %v942, %v951
        %v956 = vmax.f32 %v954, 0.0
        %v957 = vmax.f32 %v955, 0.0
        %v958 = vpack.c.bf16 %v956, %v956
        %v959 = vpack.c.bf16 %v957, %v957
        %v960 = vld [vmem:[%s516] sm:$0xff]
        %v961 = vld [vmem:[%s516 + $0x8] sm:$0xff]
        %v962 = vld [vmem:[%s516 + $0x10] sm:$0xff]
        %v963 = vld [vmem:[%s516 + $0x18] sm:$0xff]
        %v964 = vld [vmem:[%s516 + $0x20] sm:$0xff]
        %v965 = vld [vmem:[%s516 + $0x28] sm:$0xff]
        %v966 = vld [vmem:[%s516 + $0x30] sm:$0xff]
        %v967 = vld [vmem:[%s516 + $0x38] sm:$0xff]
        %v968 = vld [vmem:[%s516 + $0x40] sm:$0xff]
        %v969 = vld [vmem:[%s516 + $0x48] sm:$0xff]
        %v970 = vld [vmem:[%s516 + $0x50] sm:$0xff]
        %v971 = vld [vmem:[%s516 + $0x58] sm:$0xff]
        %v972 = vld [vmem:[%s516 + $0x60] sm:$0xff]
        %v973 = vld [vmem:[%s516 + $0x68] sm:$0xff]
        %v974 = vld [vmem:[%s516 + $0x70] sm:$0xff]
        %v975 = vld [vmem:[%s516 + $0x78] sm:$0xff]
        %v976 = vld [vmem:[%s516 + $0x80] sm:$0xff]
        %v977 = vld [vmem:[%s516 + $0x88] sm:$0xff]
        %v978 = vld [vmem:[%s516 + $0x90] sm:$0xff]
        %v979 = vld [vmem:[%s516 + $0x98] sm:$0xff]
        %v980 = vld [vmem:[%s516 + $0xa0] sm:$0xff]
        %v981 = vld [vmem:[%s516 + $0xa8] sm:$0xff]
        %v982 = vld [vmem:[%s516 + $0xb0] sm:$0xff]
        %v983 = vld [vmem:[%s516 + $0xb8] sm:$0xff]
        %v984 = vld [vmem:[%s516 + $0xc0] sm:$0xff]
        %v985 = vld [vmem:[%s516 + $0xc8] sm:$0xff]
        %v986 = vld [vmem:[%s516 + $0xd0] sm:$0xff]
        %v987 = vld [vmem:[%s516 + $0xd8] sm:$0xff]
        %v988 = vld [vmem:[%s516 + $0xe0] sm:$0xff]
        %v989 = vld [vmem:[%s516 + $0xe8] sm:$0xff]
        %v990 = vld [vmem:[%s516 + $0xf0] sm:$0xff]
        %v991 = vld [vmem:[%s516 + $0xf8] sm:$0xff]
        %v992 = vunpack.c.l.s8.bf16 %v960
        %v993 = vunpack.c.l.s8.bf16 %v961
        %v994 = vunpack.c.l.s8.bf16 %v962
        %v995 = vunpack.c.l.s8.bf16 %v963
        %v996 = vunpack.c.h.s8.bf16 %v960
        %v997 = vunpack.c.h.s8.bf16 %v961
        %v998 = vunpack.c.h.s8.bf16 %v962
        %v999 = vunpack.c.h.s8.bf16 %v963
        %v1000 = vunpack.c.l.s8.bf16 %v964
        %v1001 = vunpack.c.l.s8.bf16 %v965
        %v1002 = vunpack.c.l.s8.bf16 %v966
        %v1003 = vunpack.c.l.s8.bf16 %v967
        %v1004 = vunpack.c.h.s8.bf16 %v964
        %v1005 = vunpack.c.h.s8.bf16 %v965
        %v1006 = vunpack.c.h.s8.bf16 %v966
        %v1007 = vunpack.c.h.s8.bf16 %v967
        %v1008 = vunpack.c.l.s8.bf16 %v968
        %v1009 = vunpack.c.l.s8.bf16 %v969
        %v1010 = vunpack.c.l.s8.bf16 %v970
        %v1011 = vunpack.c.l.s8.bf16 %v971
        %v1012 = vunpack.c.h.s8.bf16 %v968
        %v1013 = vunpack.c.h.s8.bf16 %v969
        %v1014 = vunpack.c.h.s8.bf16 %v970
        %v1015 = vunpack.c.h.s8.bf16 %v971
        %v1016 = vunpack.c.l.s8.bf16 %v972
        %v1017 = vunpack.c.l.s8.bf16 %v973
        %v1018 = vunpack.c.l.s8.bf16 %v974
        %v1019 = vunpack.c.l.s8.bf16 %v975
        %v1020 = vunpack.c.h.s8.bf16 %v972
        %v1021 = vunpack.c.h.s8.bf16 %v973
        %v1022 = vunpack.c.h.s8.bf16 %v974
        %v1023 = vunpack.c.h.s8.bf16 %v975
        %v1024 = vunpack.c.l.s8.bf16 %v976
        %v1025 = vunpack.c.l.s8.bf16 %v977
        %v1026 = vunpack.c.l.s8.bf16 %v978
        %v1027 = vunpack.c.l.s8.bf16 %v979
        %v1028 = vunpack.c.h.s8.bf16 %v976
        %v1029 = vunpack.c.h.s8.bf16 %v977
        %v1030 = vunpack.c.h.s8.bf16 %v978
        %v1031 = vunpack.c.h.s8.bf16 %v979
        %v1032 = vunpack.c.l.s8.bf16 %v980
        %v1033 = vunpack.c.l.s8.bf16 %v981
        %v1034 = vunpack.c.l.s8.bf16 %v982
        %v1035 = vunpack.c.l.s8.bf16 %v983
        %v1036 = vunpack.c.h.s8.bf16 %v980
        %v1037 = vunpack.c.h.s8.bf16 %v981
        %v1038 = vunpack.c.h.s8.bf16 %v982
        %v1039 = vunpack.c.h.s8.bf16 %v983
        %v1040 = vunpack.c.l.s8.bf16 %v984
        %v1041 = vunpack.c.l.s8.bf16 %v985
        %v1042 = vunpack.c.l.s8.bf16 %v986
        %v1043 = vunpack.c.l.s8.bf16 %v987
        %v1044 = vunpack.c.h.s8.bf16 %v984
        %v1045 = vunpack.c.h.s8.bf16 %v985
        %v1046 = vunpack.c.h.s8.bf16 %v986
        %v1047 = vunpack.c.h.s8.bf16 %v987
        %v1048 = vunpack.c.l.s8.bf16 %v988
        %v1049 = vunpack.c.l.s8.bf16 %v989
        %v1050 = vunpack.c.l.s8.bf16 %v990
        %v1051 = vunpack.c.l.s8.bf16 %v991
        %v1052 = vunpack.c.h.s8.bf16 %v988
        %v1053 = vunpack.c.h.s8.bf16 %v989
        %v1054 = vunpack.c.h.s8.bf16 %v990
        %v1055 = vunpack.c.h.s8.bf16 %v991
        %1056 = vmatprep.subr.bf16.mxu0 %v1021
        %1057 = vmatpush1.bf16.msra.mxu0 %v1020
        %1058 = vmatprep.subr.bf16.mxu0 %v1017
        %1059 = vmatpush1.bf16.msra.mxu0 %v1016
        %1060 = vmatprep.subr.bf16.mxu0 %v1013
        %1061 = vmatpush1.bf16.msra.mxu0 %v1012
        %1062 = vmatprep.subr.bf16.mxu0 %v1009
        %1063 = vmatpush1.bf16.msra.mxu0 %v1008
        %1064 = vmatprep.subr.bf16.mxu0 %v1005
        %1065 = vmatpush1.bf16.msra.mxu0 %v1004
        %1066 = vmatprep.subr.bf16.mxu0 %v1001
        %1067 = vmatpush1.bf16.msra.mxu0 %v1000
        %1068 = vmatprep.subr.bf16.mxu0 %v997
        %1069 = vmatpush1.bf16.msra.mxu0 %v996
        %1070 = vmatprep.subr.bf16.mxu0 %v993
        %1071 = vmatpush1.bf16.msra.mxu0 %v992
        %1072 = vmatprep.subr.bf16.mxu0 %v1053
        %1073 = vmatpush2.bf16.msra.mxu0 %v1052
        %1074 = vmatprep.subr.bf16.mxu0 %v1049
        %1075 = vmatpush2.bf16.msra.mxu0 %v1048
        %1076 = vmatprep.subr.bf16.mxu0 %v1045
        %1077 = vmatpush2.bf16.msra.mxu0 %v1044
        %1078 = vmatprep.subr.bf16.mxu0 %v1041
        %1079 = vmatpush2.bf16.msra.mxu0 %v1040
        %1080 = vmatprep.subr.bf16.mxu0 %v1037
        %1081 = vmatpush2.bf16.msra.mxu0 %v1036
        %1082 = vmatprep.subr.bf16.mxu0 %v1033
        %1083 = vmatpush2.bf16.msra.mxu0 %v1032
        %1084 = vmatprep.subr.bf16.mxu0 %v1029
        %1085 = vmatpush2.bf16.msra.mxu0 %v1028
        %1086 = vmatprep.subr.bf16.mxu0 %v1025
        %1087 = vmatpush2.bf16.msra.mxu0 %v1024
        %1088 = vmatprep.mubr.bf16.mxu0 %v959
        %1089 = vmatmul.mubr.bf16.gmra.mxu0 %v958
        %v1090 = vpop.f32.mrf.mxu0
        %v1091 = vadd.f32 0.0, %v1090
        %v1092 = vpop.f32.mrf.mxu0
        %v1093 = vadd.f32 0.0, %v1092
        %v1094 = vpop.f32.mrf.mxu0
        %v1095 = vpop.f32.mrf.mxu0
        %1096 = vdwg.mxu0
        %1097 = vmatprep.subr.bf16.mxu0 %v1023
        %1098 = vmatpush1.bf16.msra.mxu0 %v1022
        %1099 = vmatprep.subr.bf16.mxu0 %v1019
        %1100 = vmatpush1.bf16.msra.mxu0 %v1018
        %1101 = vmatprep.subr.bf16.mxu0 %v1015
        %1102 = vmatpush1.bf16.msra.mxu0 %v1014
        %1103 = vmatprep.subr.bf16.mxu0 %v1011
        %1104 = vmatpush1.bf16.msra.mxu0 %v1010
        %1105 = vmatprep.subr.bf16.mxu0 %v1007
        %1106 = vmatpush1.bf16.msra.mxu0 %v1006
        %1107 = vmatprep.subr.bf16.mxu0 %v1003
        %1108 = vmatpush1.bf16.msra.mxu0 %v1002
        %1109 = vmatprep.subr.bf16.mxu0 %v999
        %1110 = vmatpush1.bf16.msra.mxu0 %v998
        %1111 = vmatprep.subr.bf16.mxu0 %v995
        %1112 = vmatpush1.bf16.msra.mxu0 %v994
        %1113 = vmatprep.subr.bf16.mxu0 %v1055
        %1114 = vmatpush2.bf16.msra.mxu0 %v1054
        %1115 = vmatprep.subr.bf16.mxu0 %v1051
        %1116 = vmatpush2.bf16.msra.mxu0 %v1050
        %1117 = vmatprep.subr.bf16.mxu0 %v1047
        %1118 = vmatpush2.bf16.msra.mxu0 %v1046
        %1119 = vmatprep.subr.bf16.mxu0 %v1043
        %1120 = vmatpush2.bf16.msra.mxu0 %v1042
        %1121 = vmatprep.subr.bf16.mxu0 %v1039
        %1122 = vmatpush2.bf16.msra.mxu0 %v1038
        %1123 = vmatprep.subr.bf16.mxu0 %v1035
        %1124 = vmatpush2.bf16.msra.mxu0 %v1034
        %1125 = vmatprep.subr.bf16.mxu0 %v1031
        %1126 = vmatpush2.bf16.msra.mxu0 %v1030
        %1127 = vmatprep.subr.bf16.mxu0 %v1027
        %1128 = vmatpush2.bf16.msra.mxu0 %v1026
        %1129 = vmatprep.mubr.bf16.mxu0 %v959
        %1130 = vmatmul.mubr.bf16.gmra.mxu0 %v958
        %v1131 = vpop.f32.mrf.mxu0
        %v1132 = vadd.f32 0.0, %v1131
        %v1133 = vpop.f32.mrf.mxu0
        %v1134 = vadd.f32 0.0, %v1133
        %v1135 = vpop.f32.mrf.mxu0
        %v1136 = vpop.f32.mrf.mxu0
        %1137 = vdwg.mxu0
        %s1138 = scalar_lea.vmem %s543, 8 [#allocation13]
        %v1139 = vld [vmem:[%s1138] ss:$2 sm:$0xf]
        %s1140 = scalar_lea.vmem %s543, 9 [#allocation13]
        %v1141 = vld [vmem:[%s1140] ss:$2 sm:$0xf]
        %v1143 = vlaneseq
        %v1144 = vshrl.u32 %v1143, 7
        %v1145 = vsub.s32 0, %v1144
        %v1146 = vrot.slane %v1139, %v1145
        %v1147 = vlaneseq
        %v1148 = vshrl.u32 %v1147, 7
        %v1149 = vsub.s32 1, %v1148
        %v1150 = vrot.slane %v1139, %v1149
        %v1151 = vlaneseq
        %v1152 = vshrl.u32 %v1151, 7
        %v1153 = vsub.s32 2, %v1152
        %v1154 = vrot.slane %v1139, %v1153
        %v1155 = vlaneseq
        %v1156 = vshrl.u32 %v1155, 7
        %v1157 = vsub.s32 3, %v1156
        %v1158 = vrot.slane %v1139, %v1157
        %v1163 = vmul.f32 %v1091, %v1146
        %v1164 = vmul.f32 %v1093, %v1150
        %v1165 = vmul.f32 %v1132, %v1154
        %v1166 = vmul.f32 %v1134, %v1158
        %v1168 = vlaneseq
        %v1169 = vshrl.u32 %v1168, 7
        %v1170 = vsub.s32 0, %v1169
        %v1171 = vrot.slane %v1141, %v1170
        %v1172 = vlaneseq
        %v1173 = vshrl.u32 %v1172, 7
        %v1174 = vsub.s32 1, %v1173
        %v1175 = vrot.slane %v1141, %v1174
        %v1176 = vlaneseq
        %v1177 = vshrl.u32 %v1176, 7
        %v1178 = vsub.s32 2, %v1177
        %v1179 = vrot.slane %v1141, %v1178
        %v1180 = vlaneseq
        %v1181 = vshrl.u32 %v1180, 7
        %v1182 = vsub.s32 3, %v1181
        %v1183 = vrot.slane %v1141, %v1182
        %v1188 = vadd.f32 %v1163, %v1171
        %v1189 = vadd.f32 %v1164, %v1175
        %v1190 = vadd.f32 %v1165, %v1179
        %v1191 = vadd.f32 %v1166, %v1183
        %v1192 = vadd.f32 %v1188, %v618
        %v1193 = vadd.f32 %v1189, %v619
        %v1194 = vadd.f32 %v1190, %v620
        %v1195 = vadd.f32 %v1191, %v621
        %v1196 = vpack.c.bf16 %v1192, %v1192
        %v1197 = vpack.c.bf16 %v1193, %v1193
        %v1198 = vpack.c.bf16 %v1194, %v1194
        %v1199 = vpack.c.bf16 %v1195, %v1195
        %v1200 = vld [vmem:[%s525] sm:$0xff]
        %v1201 = vld [vmem:[%s525 + $0x8] sm:$0xff]
        %v1202 = vld [vmem:[%s525 + $0x10] sm:$0xff]
        %v1203 = vld [vmem:[%s525 + $0x18] sm:$0xff]
        %v1204 = vld [vmem:[%s525 + $0x20] sm:$0xff]
        %v1205 = vld [vmem:[%s525 + $0x28] sm:$0xff]
        %v1206 = vld [vmem:[%s525 + $0x30] sm:$0xff]
        %v1207 = vld [vmem:[%s525 + $0x38] sm:$0xff]
        %v1208 = vld [vmem:[%s525 + $0x40] sm:$0xff]
        %v1209 = vld [vmem:[%s525 + $0x48] sm:$0xff]
        %v1210 = vld [vmem:[%s525 + $0x50] sm:$0xff]
        %v1211 = vld [vmem:[%s525 + $0x58] sm:$0xff]
        %v1212 = vld [vmem:[%s525 + $0x60] sm:$0xff]
        %v1213 = vld [vmem:[%s525 + $0x68] sm:$0xff]
        %v1214 = vld [vmem:[%s525 + $0x70] sm:$0xff]
        %v1215 = vld [vmem:[%s525 + $0x78] sm:$0xff]
        %v1216 = vld [vmem:[%s525 + $0x80] sm:$0xff]
        %v1217 = vld [vmem:[%s525 + $0x88] sm:$0xff]
        %v1218 = vld [vmem:[%s525 + $0x90] sm:$0xff]
        %v1219 = vld [vmem:[%s525 + $0x98] sm:$0xff]
        %v1220 = vld [vmem:[%s525 + $0xa0] sm:$0xff]
        %v1221 = vld [vmem:[%s525 + $0xa8] sm:$0xff]
        %v1222 = vld [vmem:[%s525 + $0xb0] sm:$0xff]
        %v1223 = vld [vmem:[%s525 + $0xb8] sm:$0xff]
        %v1224 = vld [vmem:[%s525 + $0xc0] sm:$0xff]
        %v1225 = vld [vmem:[%s525 + $0xc8] sm:$0xff]
        %v1226 = vld [vmem:[%s525 + $0xd0] sm:$0xff]
        %v1227 = vld [vmem:[%s525 + $0xd8] sm:$0xff]
        %v1228 = vld [vmem:[%s525 + $0xe0] sm:$0xff]
        %v1229 = vld [vmem:[%s525 + $0xe8] sm:$0xff]
        %v1230 = vld [vmem:[%s525 + $0xf0] sm:$0xff]
        %v1231 = vld [vmem:[%s525 + $0xf8] sm:$0xff]
        %v1232 = vld [vmem:[%s525 + $0x100] sm:$0xff]
        %v1233 = vld [vmem:[%s525 + $0x108] sm:$0xff]
        %v1234 = vld [vmem:[%s525 + $0x110] sm:$0xff]
        %v1235 = vld [vmem:[%s525 + $0x118] sm:$0xff]
        %v1236 = vld [vmem:[%s525 + $0x120] sm:$0xff]
        %v1237 = vld [vmem:[%s525 + $0x128] sm:$0xff]
        %v1238 = vld [vmem:[%s525 + $0x130] sm:$0xff]
        %v1239 = vld [vmem:[%s525 + $0x138] sm:$0xff]
        %v1240 = vld [vmem:[%s525 + $0x140] sm:$0xff]
        %v1241 = vld [vmem:[%s525 + $0x148] sm:$0xff]
        %v1242 = vld [vmem:[%s525 + $0x150] sm:$0xff]
        %v1243 = vld [vmem:[%s525 + $0x158] sm:$0xff]
        %v1244 = vld [vmem:[%s525 + $0x160] sm:$0xff]
        %v1245 = vld [vmem:[%s525 + $0x168] sm:$0xff]
        %v1246 = vld [vmem:[%s525 + $0x170] sm:$0xff]
        %v1247 = vld [vmem:[%s525 + $0x178] sm:$0xff]
        %v1248 = vld [vmem:[%s525 + $0x180] sm:$0xff]
        %v1249 = vld [vmem:[%s525 + $0x188] sm:$0xff]
        %v1250 = vld [vmem:[%s525 + $0x190] sm:$0xff]
        %v1251 = vld [vmem:[%s525 + $0x198] sm:$0xff]
        %v1252 = vld [vmem:[%s525 + $0x1a0] sm:$0xff]
        %v1253 = vld [vmem:[%s525 + $0x1a8] sm:$0xff]
        %v1254 = vld [vmem:[%s525 + $0x1b0] sm:$0xff]
        %v1255 = vld [vmem:[%s525 + $0x1b8] sm:$0xff]
        %v1256 = vld [vmem:[%s525 + $0x1c0] sm:$0xff]
        %v1257 = vld [vmem:[%s525 + $0x1c8] sm:$0xff]
        %v1258 = vld [vmem:[%s525 + $0x1d0] sm:$0xff]
        %v1259 = vld [vmem:[%s525 + $0x1d8] sm:$0xff]
        %v1260 = vld [vmem:[%s525 + $0x1e0] sm:$0xff]
        %v1261 = vld [vmem:[%s525 + $0x1e8] sm:$0xff]
        %v1262 = vld [vmem:[%s525 + $0x1f0] sm:$0xff]
        %v1263 = vld [vmem:[%s525 + $0x1f8] sm:$0xff]
        %v1264 = vld [vmem:[%s525 + $0x200] sm:$0xff]
        %v1265 = vld [vmem:[%s525 + $0x208] sm:$0xff]
        %v1266 = vld [vmem:[%s525 + $0x210] sm:$0xff]
        %v1267 = vld [vmem:[%s525 + $0x218] sm:$0xff]
        %v1268 = vld [vmem:[%s525 + $0x220] sm:$0xff]
        %v1269 = vld [vmem:[%s525 + $0x228] sm:$0xff]
        %v1270 = vld [vmem:[%s525 + $0x230] sm:$0xff]
        %v1271 = vld [vmem:[%s525 + $0x238] sm:$0xff]
        %v1272 = vld [vmem:[%s525 + $0x240] sm:$0xff]
        %v1273 = vld [vmem:[%s525 + $0x248] sm:$0xff]
        %v1274 = vld [vmem:[%s525 + $0x250] sm:$0xff]
        %v1275 = vld [vmem:[%s525 + $0x258] sm:$0xff]
        %v1276 = vld [vmem:[%s525 + $0x260] sm:$0xff]
        %v1277 = vld [vmem:[%s525 + $0x268] sm:$0xff]
        %v1278 = vld [vmem:[%s525 + $0x270] sm:$0xff]
        %v1279 = vld [vmem:[%s525 + $0x278] sm:$0xff]
        %v1280 = vld [vmem:[%s525 + $0x280] sm:$0xff]
        %v1281 = vld [vmem:[%s525 + $0x288] sm:$0xff]
        %v1282 = vld [vmem:[%s525 + $0x290] sm:$0xff]
        %v1283 = vld [vmem:[%s525 + $0x298] sm:$0xff]
        %v1284 = vld [vmem:[%s525 + $0x2a0] sm:$0xff]
        %v1285 = vld [vmem:[%s525 + $0x2a8] sm:$0xff]
        %v1286 = vld [vmem:[%s525 + $0x2b0] sm:$0xff]
        %v1287 = vld [vmem:[%s525 + $0x2b8] sm:$0xff]
        %v1288 = vld [vmem:[%s525 + $0x2c0] sm:$0xff]
        %v1289 = vld [vmem:[%s525 + $0x2c8] sm:$0xff]
        %v1290 = vld [vmem:[%s525 + $0x2d0] sm:$0xff]
        %v1291 = vld [vmem:[%s525 + $0x2d8] sm:$0xff]
        %v1292 = vld [vmem:[%s525 + $0x2e0] sm:$0xff]
        %v1293 = vld [vmem:[%s525 + $0x2e8] sm:$0xff]
        %v1294 = vld [vmem:[%s525 + $0x2f0] sm:$0xff]
        %v1295 = vld [vmem:[%s525 + $0x2f8] sm:$0xff]
        %v1296 = vld [vmem:[%s525 + $0x300] sm:$0xff]
        %v1297 = vld [vmem:[%s525 + $0x308] sm:$0xff]
        %v1298 = vld [vmem:[%s525 + $0x310] sm:$0xff]
        %v1299 = vld [vmem:[%s525 + $0x318] sm:$0xff]
        %v1300 = vld [vmem:[%s525 + $0x320] sm:$0xff]
        %v1301 = vld [vmem:[%s525 + $0x328] sm:$0xff]
        %v1302 = vld [vmem:[%s525 + $0x330] sm:$0xff]
        %v1303 = vld [vmem:[%s525 + $0x338] sm:$0xff]
        %v1304 = vld [vmem:[%s525 + $0x340] sm:$0xff]
        %v1305 = vld [vmem:[%s525 + $0x348] sm:$0xff]
        %v1306 = vld [vmem:[%s525 + $0x350] sm:$0xff]
        %v1307 = vld [vmem:[%s525 + $0x358] sm:$0xff]
        %v1308 = vld [vmem:[%s525 + $0x360] sm:$0xff]
        %v1309 = vld [vmem:[%s525 + $0x368] sm:$0xff]
        %v1310 = vld [vmem:[%s525 + $0x370] sm:$0xff]
        %v1311 = vld [vmem:[%s525 + $0x378] sm:$0xff]
        %v1312 = vld [vmem:[%s525 + $0x380] sm:$0xff]
        %v1313 = vld [vmem:[%s525 + $0x388] sm:$0xff]
        %v1314 = vld [vmem:[%s525 + $0x390] sm:$0xff]
        %v1315 = vld [vmem:[%s525 + $0x398] sm:$0xff]
        %v1316 = vld [vmem:[%s525 + $0x3a0] sm:$0xff]
        %v1317 = vld [vmem:[%s525 + $0x3a8] sm:$0xff]
        %v1318 = vld [vmem:[%s525 + $0x3b0] sm:$0xff]
        %v1319 = vld [vmem:[%s525 + $0x3b8] sm:$0xff]
        %v1320 = vld [vmem:[%s525 + $0x3c0] sm:$0xff]
        %v1321 = vld [vmem:[%s525 + $0x3c8] sm:$0xff]
        %v1322 = vld [vmem:[%s525 + $0x3d0] sm:$0xff]
        %v1323 = vld [vmem:[%s525 + $0x3d8] sm:$0xff]
        %v1324 = vld [vmem:[%s525 + $0x3e0] sm:$0xff]
        %v1325 = vld [vmem:[%s525 + $0x3e8] sm:$0xff]
        %v1326 = vld [vmem:[%s525 + $0x3f0] sm:$0xff]
        %v1327 = vld [vmem:[%s525 + $0x3f8] sm:$0xff]
        %v1328 = vld [vmem:[%s525 + $0x400] sm:$0xff]
        %v1329 = vld [vmem:[%s525 + $0x408] sm:$0xff]
        %v1330 = vld [vmem:[%s525 + $0x410] sm:$0xff]
        %v1331 = vld [vmem:[%s525 + $0x418] sm:$0xff]
        %v1332 = vld [vmem:[%s525 + $0x420] sm:$0xff]
        %v1333 = vld [vmem:[%s525 + $0x428] sm:$0xff]
        %v1334 = vld [vmem:[%s525 + $0x430] sm:$0xff]
        %v1335 = vld [vmem:[%s525 + $0x438] sm:$0xff]
        %v1336 = vld [vmem:[%s525 + $0x440] sm:$0xff]
        %v1337 = vld [vmem:[%s525 + $0x448] sm:$0xff]
        %v1338 = vld [vmem:[%s525 + $0x450] sm:$0xff]
        %v1339 = vld [vmem:[%s525 + $0x458] sm:$0xff]
        %v1340 = vld [vmem:[%s525 + $0x460] sm:$0xff]
        %v1341 = vld [vmem:[%s525 + $0x468] sm:$0xff]
        %v1342 = vld [vmem:[%s525 + $0x470] sm:$0xff]
        %v1343 = vld [vmem:[%s525 + $0x478] sm:$0xff]
        %v1344 = vld [vmem:[%s525 + $0x480] sm:$0xff]
        %v1345 = vld [vmem:[%s525 + $0x488] sm:$0xff]
        %v1346 = vld [vmem:[%s525 + $0x490] sm:$0xff]
        %v1347 = vld [vmem:[%s525 + $0x498] sm:$0xff]
        %v1348 = vld [vmem:[%s525 + $0x4a0] sm:$0xff]
        %v1349 = vld [vmem:[%s525 + $0x4a8] sm:$0xff]
        %v1350 = vld [vmem:[%s525 + $0x4b0] sm:$0xff]
        %v1351 = vld [vmem:[%s525 + $0x4b8] sm:$0xff]
        %v1352 = vld [vmem:[%s525 + $0x4c0] sm:$0xff]
        %v1353 = vld [vmem:[%s525 + $0x4c8] sm:$0xff]
        %v1354 = vld [vmem:[%s525 + $0x4d0] sm:$0xff]
        %v1355 = vld [vmem:[%s525 + $0x4d8] sm:$0xff]
        %v1356 = vld [vmem:[%s525 + $0x4e0] sm:$0xff]
        %v1357 = vld [vmem:[%s525 + $0x4e8] sm:$0xff]
        %v1358 = vld [vmem:[%s525 + $0x4f0] sm:$0xff]
        %v1359 = vld [vmem:[%s525 + $0x4f8] sm:$0xff]
        %v1360 = vld [vmem:[%s525 + $0x500] sm:$0xff]
        %v1361 = vld [vmem:[%s525 + $0x508] sm:$0xff]
        %v1362 = vld [vmem:[%s525 + $0x510] sm:$0xff]
        %v1363 = vld [vmem:[%s525 + $0x518] sm:$0xff]
        %v1364 = vld [vmem:[%s525 + $0x520] sm:$0xff]
        %v1365 = vld [vmem:[%s525 + $0x528] sm:$0xff]
        %v1366 = vld [vmem:[%s525 + $0x530] sm:$0xff]
        %v1367 = vld [vmem:[%s525 + $0x538] sm:$0xff]
        %v1368 = vld [vmem:[%s525 + $0x540] sm:$0xff]
        %v1369 = vld [vmem:[%s525 + $0x548] sm:$0xff]
        %v1370 = vld [vmem:[%s525 + $0x550] sm:$0xff]
        %v1371 = vld [vmem:[%s525 + $0x558] sm:$0xff]
        %v1372 = vld [vmem:[%s525 + $0x560] sm:$0xff]
        %v1373 = vld [vmem:[%s525 + $0x568] sm:$0xff]
        %v1374 = vld [vmem:[%s525 + $0x570] sm:$0xff]
        %v1375 = vld [vmem:[%s525 + $0x578] sm:$0xff]
        %v1376 = vld [vmem:[%s525 + $0x580] sm:$0xff]
        %v1377 = vld [vmem:[%s525 + $0x588] sm:$0xff]
        %v1378 = vld [vmem:[%s525 + $0x590] sm:$0xff]
        %v1379 = vld [vmem:[%s525 + $0x598] sm:$0xff]
        %v1380 = vld [vmem:[%s525 + $0x5a0] sm:$0xff]
        %v1381 = vld [vmem:[%s525 + $0x5a8] sm:$0xff]
        %v1382 = vld [vmem:[%s525 + $0x5b0] sm:$0xff]
        %v1383 = vld [vmem:[%s525 + $0x5b8] sm:$0xff]
        %v1384 = vld [vmem:[%s525 + $0x5c0] sm:$0xff]
        %v1385 = vld [vmem:[%s525 + $0x5c8] sm:$0xff]
        %v1386 = vld [vmem:[%s525 + $0x5d0] sm:$0xff]
        %v1387 = vld [vmem:[%s525 + $0x5d8] sm:$0xff]
        %v1388 = vld [vmem:[%s525 + $0x5e0] sm:$0xff]
        %v1389 = vld [vmem:[%s525 + $0x5e8] sm:$0xff]
        %v1390 = vld [vmem:[%s525 + $0x5f0] sm:$0xff]
        %v1391 = vld [vmem:[%s525 + $0x5f8] sm:$0xff]
        %v1392 = vunpack.c.l.s8.bf16 %v1200
        %v1393 = vunpack.c.l.s8.bf16 %v1201
        %v1394 = vunpack.c.l.s8.bf16 %v1202
        %v1395 = vunpack.c.l.s8.bf16 %v1203
        %v1396 = vunpack.c.l.s8.bf16 %v1204
        %v1397 = vunpack.c.l.s8.bf16 %v1205
        %v1398 = vunpack.c.l.s8.bf16 %v1206
        %v1399 = vunpack.c.l.s8.bf16 %v1207
        %v1400 = vunpack.c.l.s8.bf16 %v1208
        %v1401 = vunpack.c.l.s8.bf16 %v1209
        %v1402 = vunpack.c.l.s8.bf16 %v1210
        %v1403 = vunpack.c.l.s8.bf16 %v1211
        %v1404 = vunpack.c.h.s8.bf16 %v1200
        %v1405 = vunpack.c.h.s8.bf16 %v1201
        %v1406 = vunpack.c.h.s8.bf16 %v1202
        %v1407 = vunpack.c.h.s8.bf16 %v1203
        %v1408 = vunpack.c.h.s8.bf16 %v1204
        %v1409 = vunpack.c.h.s8.bf16 %v1205
        %v1410 = vunpack.c.h.s8.bf16 %v1206
        %v1411 = vunpack.c.h.s8.bf16 %v1207
        %v1412 = vunpack.c.h.s8.bf16 %v1208
        %v1413 = vunpack.c.h.s8.bf16 %v1209
        %v1414 = vunpack.c.h.s8.bf16 %v1210
        %v1415 = vunpack.c.h.s8.bf16 %v1211
        %v1416 = vunpack.c.l.s8.bf16 %v1212
        %v1417 = vunpack.c.l.s8.bf16 %v1213
        %v1418 = vunpack.c.l.s8.bf16 %v1214
        %v1419 = vunpack.c.l.s8.bf16 %v1215
        %v1420 = vunpack.c.l.s8.bf16 %v1216
        %v1421 = vunpack.c.l.s8.bf16 %v1217
        %v1422 = vunpack.c.l.s8.bf16 %v1218
        %v1423 = vunpack.c.l.s8.bf16 %v1219
        %v1424 = vunpack.c.l.s8.bf16 %v1220
        %v1425 = vunpack.c.l.s8.bf16 %v1221
        %v1426 = vunpack.c.l.s8.bf16 %v1222
        %v1427 = vunpack.c.l.s8.bf16 %v1223
        %v1428 = vunpack.c.h.s8.bf16 %v1212
        %v1429 = vunpack.c.h.s8.bf16 %v1213
        %v1430 = vunpack.c.h.s8.bf16 %v1214
        %v1431 = vunpack.c.h.s8.bf16 %v1215
        %v1432 = vunpack.c.h.s8.bf16 %v1216
        %v1433 = vunpack.c.h.s8.bf16 %v1217
        %v1434 = vunpack.c.h.s8.bf16 %v1218
        %v1435 = vunpack.c.h.s8.bf16 %v1219
        %v1436 = vunpack.c.h.s8.bf16 %v1220
        %v1437 = vunpack.c.h.s8.bf16 %v1221
        %v1438 = vunpack.c.h.s8.bf16 %v1222
        %v1439 = vunpack.c.h.s8.bf16 %v1223
        %v1440 = vunpack.c.l.s8.bf16 %v1224
        %v1441 = vunpack.c.l.s8.bf16 %v1225
        %v1442 = vunpack.c.l.s8.bf16 %v1226
        %v1443 = vunpack.c.l.s8.bf16 %v1227
        %v1444 = vunpack.c.l.s8.bf16 %v1228
        %v1445 = vunpack.c.l.s8.bf16 %v1229
        %v1446 = vunpack.c.l.s8.bf16 %v1230
        %v1447 = vunpack.c.l.s8.bf16 %v1231
        %v1448 = vunpack.c.l.s8.bf16 %v1232
        %v1449 = vunpack.c.l.s8.bf16 %v1233
        %v1450 = vunpack.c.l.s8.bf16 %v1234
        %v1451 = vunpack.c.l.s8.bf16 %v1235
        %v1452 = vunpack.c.h.s8.bf16 %v1224
        %v1453 = vunpack.c.h.s8.bf16 %v1225
        %v1454 = vunpack.c.h.s8.bf16 %v1226
        %v1455 = vunpack.c.h.s8.bf16 %v1227
        %v1456 = vunpack.c.h.s8.bf16 %v1228
        %v1457 = vunpack.c.h.s8.bf16 %v1229
        %v1458 = vunpack.c.h.s8.bf16 %v1230
        %v1459 = vunpack.c.h.s8.bf16 %v1231
        %v1460 = vunpack.c.h.s8.bf16 %v1232
        %v1461 = vunpack.c.h.s8.bf16 %v1233
        %v1462 = vunpack.c.h.s8.bf16 %v1234
        %v1463 = vunpack.c.h.s8.bf16 %v1235
        %v1464 = vunpack.c.l.s8.bf16 %v1236
        %v1465 = vunpack.c.l.s8.bf16 %v1237
        %v1466 = vunpack.c.l.s8.bf16 %v1238
        %v1467 = vunpack.c.l.s8.bf16 %v1239
        %v1468 = vunpack.c.l.s8.bf16 %v1240
        %v1469 = vunpack.c.l.s8.bf16 %v1241
        %v1470 = vunpack.c.l.s8.bf16 %v1242
        %v1471 = vunpack.c.l.s8.bf16 %v1243
        %v1472 = vunpack.c.l.s8.bf16 %v1244
        %v1473 = vunpack.c.l.s8.bf16 %v1245
        %v1474 = vunpack.c.l.s8.bf16 %v1246
        %v1475 = vunpack.c.l.s8.bf16 %v1247
        %v1476 = vunpack.c.h.s8.bf16 %v1236
        %v1477 = vunpack.c.h.s8.bf16 %v1237
        %v1478 = vunpack.c.h.s8.bf16 %v1238
        %v1479 = vunpack.c.h.s8.bf16 %v1239
        %v1480 = vunpack.c.h.s8.bf16 %v1240
        %v1481 = vunpack.c.h.s8.bf16 %v1241
        %v1482 = vunpack.c.h.s8.bf16 %v1242
        %v1483 = vunpack.c.h.s8.bf16 %v1243
        %v1484 = vunpack.c.h.s8.bf16 %v1244
        %v1485 = vunpack.c.h.s8.bf16 %v1245
        %v1486 = vunpack.c.h.s8.bf16 %v1246
        %v1487 = vunpack.c.h.s8.bf16 %v1247
        %v1488 = vunpack.c.l.s8.bf16 %v1248
        %v1489 = vunpack.c.l.s8.bf16 %v1249
        %v1490 = vunpack.c.l.s8.bf16 %v1250
        %v1491 = vunpack.c.l.s8.bf16 %v1251
        %v1492 = vunpack.c.l.s8.bf16 %v1252
        %v1493 = vunpack.c.l.s8.bf16 %v1253
        %v1494 = vunpack.c.l.s8.bf16 %v1254
        %v1495 = vunpack.c.l.s8.bf16 %v1255
        %v1496 = vunpack.c.l.s8.bf16 %v1256
        %v1497 = vunpack.c.l.s8.bf16 %v1257
        %v1498 = vunpack.c.l.s8.bf16 %v1258
        %v1499 = vunpack.c.l.s8.bf16 %v1259
        %v1500 = vunpack.c.h.s8.bf16 %v1248
        %v1501 = vunpack.c.h.s8.bf16 %v1249
        %v1502 = vunpack.c.h.s8.bf16 %v1250
        %v1503 = vunpack.c.h.s8.bf16 %v1251
        %v1504 = vunpack.c.h.s8.bf16 %v1252
        %v1505 = vunpack.c.h.s8.bf16 %v1253
        %v1506 = vunpack.c.h.s8.bf16 %v1254
        %v1507 = vunpack.c.h.s8.bf16 %v1255
        %v1508 = vunpack.c.h.s8.bf16 %v1256
        %v1509 = vunpack.c.h.s8.bf16 %v1257
        %v1510 = vunpack.c.h.s8.bf16 %v1258
        %v1511 = vunpack.c.h.s8.bf16 %v1259
        %v1512 = vunpack.c.l.s8.bf16 %v1260
        %v1513 = vunpack.c.l.s8.bf16 %v1261
        %v1514 = vunpack.c.l.s8.bf16 %v1262
        %v1515 = vunpack.c.l.s8.bf16 %v1263
        %v1516 = vunpack.c.l.s8.bf16 %v1264
        %v1517 = vunpack.c.l.s8.bf16 %v1265
        %v1518 = vunpack.c.l.s8.bf16 %v1266
        %v1519 = vunpack.c.l.s8.bf16 %v1267
        %v1520 = vunpack.c.l.s8.bf16 %v1268
        %v1521 = vunpack.c.l.s8.bf16 %v1269
        %v1522 = vunpack.c.l.s8.bf16 %v1270
        %v1523 = vunpack.c.l.s8.bf16 %v1271
        %v1524 = vunpack.c.h.s8.bf16 %v1260
        %v1525 = vunpack.c.h.s8.bf16 %v1261
        %v1526 = vunpack.c.h.s8.bf16 %v1262
        %v1527 = vunpack.c.h.s8.bf16 %v1263
        %v1528 = vunpack.c.h.s8.bf16 %v1264
        %v1529 = vunpack.c.h.s8.bf16 %v1265
        %v1530 = vunpack.c.h.s8.bf16 %v1266
        %v1531 = vunpack.c.h.s8.bf16 %v1267
        %v1532 = vunpack.c.h.s8.bf16 %v1268
        %v1533 = vunpack.c.h.s8.bf16 %v1269
        %v1534 = vunpack.c.h.s8.bf16 %v1270
        %v1535 = vunpack.c.h.s8.bf16 %v1271
        %v1536 = vunpack.c.l.s8.bf16 %v1272
        %v1537 = vunpack.c.l.s8.bf16 %v1273
        %v1538 = vunpack.c.l.s8.bf16 %v1274
        %v1539 = vunpack.c.l.s8.bf16 %v1275
        %v1540 = vunpack.c.l.s8.bf16 %v1276
        %v1541 = vunpack.c.l.s8.bf16 %v1277
        %v1542 = vunpack.c.l.s8.bf16 %v1278
        %v1543 = vunpack.c.l.s8.bf16 %v1279
        %v1544 = vunpack.c.l.s8.bf16 %v1280
        %v1545 = vunpack.c.l.s8.bf16 %v1281
        %v1546 = vunpack.c.l.s8.bf16 %v1282
        %v1547 = vunpack.c.l.s8.bf16 %v1283
        %v1548 = vunpack.c.h.s8.bf16 %v1272
        %v1549 = vunpack.c.h.s8.bf16 %v1273
        %v1550 = vunpack.c.h.s8.bf16 %v1274
        %v1551 = vunpack.c.h.s8.bf16 %v1275
        %v1552 = vunpack.c.h.s8.bf16 %v1276
        %v1553 = vunpack.c.h.s8.bf16 %v1277
        %v1554 = vunpack.c.h.s8.bf16 %v1278
        %v1555 = vunpack.c.h.s8.bf16 %v1279
        %v1556 = vunpack.c.h.s8.bf16 %v1280
        %v1557 = vunpack.c.h.s8.bf16 %v1281
        %v1558 = vunpack.c.h.s8.bf16 %v1282
        %v1559 = vunpack.c.h.s8.bf16 %v1283
        %v1560 = vunpack.c.l.s8.bf16 %v1284
        %v1561 = vunpack.c.l.s8.bf16 %v1285
        %v1562 = vunpack.c.l.s8.bf16 %v1286
        %v1563 = vunpack.c.l.s8.bf16 %v1287
        %v1564 = vunpack.c.l.s8.bf16 %v1288
        %v1565 = vunpack.c.l.s8.bf16 %v1289
        %v1566 = vunpack.c.l.s8.bf16 %v1290
        %v1567 = vunpack.c.l.s8.bf16 %v1291
        %v1568 = vunpack.c.l.s8.bf16 %v1292
        %v1569 = vunpack.c.l.s8.bf16 %v1293
        %v1570 = vunpack.c.l.s8.bf16 %v1294
        %v1571 = vunpack.c.l.s8.bf16 %v1295
        %v1572 = vunpack.c.h.s8.bf16 %v1284
        %v1573 = vunpack.c.h.s8.bf16 %v1285
        %v1574 = vunpack.c.h.s8.bf16 %v1286
        %v1575 = vunpack.c.h.s8.bf16 %v1287
        %v1576 = vunpack.c.h.s8.bf16 %v1288
        %v1577 = vunpack.c.h.s8.bf16 %v1289
        %v1578 = vunpack.c.h.s8.bf16 %v1290
        %v1579 = vunpack.c.h.s8.bf16 %v1291
        %v1580 = vunpack.c.h.s8.bf16 %v1292
        %v1581 = vunpack.c.h.s8.bf16 %v1293
        %v1582 = vunpack.c.h.s8.bf16 %v1294
        %v1583 = vunpack.c.h.s8.bf16 %v1295
        %v1584 = vunpack.c.l.s8.bf16 %v1296
        %v1585 = vunpack.c.l.s8.bf16 %v1297
        %v1586 = vunpack.c.l.s8.bf16 %v1298
        %v1587 = vunpack.c.l.s8.bf16 %v1299
        %v1588 = vunpack.c.l.s8.bf16 %v1300
        %v1589 = vunpack.c.l.s8.bf16 %v1301
        %v1590 = vunpack.c.l.s8.bf16 %v1302
        %v1591 = vunpack.c.l.s8.bf16 %v1303
        %v1592 = vunpack.c.l.s8.bf16 %v1304
        %v1593 = vunpack.c.l.s8.bf16 %v1305
        %v1594 = vunpack.c.l.s8.bf16 %v1306
        %v1595 = vunpack.c.l.s8.bf16 %v1307
        %v1596 = vunpack.c.h.s8.bf16 %v1296
        %v1597 = vunpack.c.h.s8.bf16 %v1297
        %v1598 = vunpack.c.h.s8.bf16 %v1298
        %v1599 = vunpack.c.h.s8.bf16 %v1299
        %v1600 = vunpack.c.h.s8.bf16 %v1300
        %v1601 = vunpack.c.h.s8.bf16 %v1301
        %v1602 = vunpack.c.h.s8.bf16 %v1302
        %v1603 = vunpack.c.h.s8.bf16 %v1303
        %v1604 = vunpack.c.h.s8.bf16 %v1304
        %v1605 = vunpack.c.h.s8.bf16 %v1305
        %v1606 = vunpack.c.h.s8.bf16 %v1306
        %v1607 = vunpack.c.h.s8.bf16 %v1307
        %v1608 = vunpack.c.l.s8.bf16 %v1308
        %v1609 = vunpack.c.l.s8.bf16 %v1309
        %v1610 = vunpack.c.l.s8.bf16 %v1310
        %v1611 = vunpack.c.l.s8.bf16 %v1311
        %v1612 = vunpack.c.l.s8.bf16 %v1312
        %v1613 = vunpack.c.l.s8.bf16 %v1313
        %v1614 = vunpack.c.l.s8.bf16 %v1314
        %v1615 = vunpack.c.l.s8.bf16 %v1315
        %v1616 = vunpack.c.l.s8.bf16 %v1316
        %v1617 = vunpack.c.l.s8.bf16 %v1317
        %v1618 = vunpack.c.l.s8.bf16 %v1318
        %v1619 = vunpack.c.l.s8.bf16 %v1319
        %v1620 = vunpack.c.h.s8.bf16 %v1308
        %v1621 = vunpack.c.h.s8.bf16 %v1309
        %v1622 = vunpack.c.h.s8.bf16 %v1310
        %v1623 = vunpack.c.h.s8.bf16 %v1311
        %v1624 = vunpack.c.h.s8.bf16 %v1312
        %v1625 = vunpack.c.h.s8.bf16 %v1313
        %v1626 = vunpack.c.h.s8.bf16 %v1314
        %v1627 = vunpack.c.h.s8.bf16 %v1315
        %v1628 = vunpack.c.h.s8.bf16 %v1316
        %v1629 = vunpack.c.h.s8.bf16 %v1317
        %v1630 = vunpack.c.h.s8.bf16 %v1318
        %v1631 = vunpack.c.h.s8.bf16 %v1319
        %v1632 = vunpack.c.l.s8.bf16 %v1320
        %v1633 = vunpack.c.l.s8.bf16 %v1321
        %v1634 = vunpack.c.l.s8.bf16 %v1322
        %v1635 = vunpack.c.l.s8.bf16 %v1323
        %v1636 = vunpack.c.l.s8.bf16 %v1324
        %v1637 = vunpack.c.l.s8.bf16 %v1325
        %v1638 = vunpack.c.l.s8.bf16 %v1326
        %v1639 = vunpack.c.l.s8.bf16 %v1327
        %v1640 = vunpack.c.l.s8.bf16 %v1328
        %v1641 = vunpack.c.l.s8.bf16 %v1329
        %v1642 = vunpack.c.l.s8.bf16 %v1330
        %v1643 = vunpack.c.l.s8.bf16 %v1331
        %v1644 = vunpack.c.h.s8.bf16 %v1320
        %v1645 = vunpack.c.h.s8.bf16 %v1321
        %v1646 = vunpack.c.h.s8.bf16 %v1322
        %v1647 = vunpack.c.h.s8.bf16 %v1323
        %v1648 = vunpack.c.h.s8.bf16 %v1324
        %v1649 = vunpack.c.h.s8.bf16 %v1325
        %v1650 = vunpack.c.h.s8.bf16 %v1326
        %v1651 = vunpack.c.h.s8.bf16 %v1327
        %v1652 = vunpack.c.h.s8.bf16 %v1328
        %v1653 = vunpack.c.h.s8.bf16 %v1329
        %v1654 = vunpack.c.h.s8.bf16 %v1330
        %v1655 = vunpack.c.h.s8.bf16 %v1331
        %v1656 = vunpack.c.l.s8.bf16 %v1332
        %v1657 = vunpack.c.l.s8.bf16 %v1333
        %v1658 = vunpack.c.l.s8.bf16 %v1334
        %v1659 = vunpack.c.l.s8.bf16 %v1335
        %v1660 = vunpack.c.l.s8.bf16 %v1336
        %v1661 = vunpack.c.l.s8.bf16 %v1337
        %v1662 = vunpack.c.l.s8.bf16 %v1338
        %v1663 = vunpack.c.l.s8.bf16 %v1339
        %v1664 = vunpack.c.l.s8.bf16 %v1340
        %v1665 = vunpack.c.l.s8.bf16 %v1341
        %v1666 = vunpack.c.l.s8.bf16 %v1342
        %v1667 = vunpack.c.l.s8.bf16 %v1343
        %v1668 = vunpack.c.h.s8.bf16 %v1332
        %v1669 = vunpack.c.h.s8.bf16 %v1333
        %v1670 = vunpack.c.h.s8.bf16 %v1334
        %v1671 = vunpack.c.h.s8.bf16 %v1335
        %v1672 = vunpack.c.h.s8.bf16 %v1336
        %v1673 = vunpack.c.h.s8.bf16 %v1337
        %v1674 = vunpack.c.h.s8.bf16 %v1338
        %v1675 = vunpack.c.h.s8.bf16 %v1339
        %v1676 = vunpack.c.h.s8.bf16 %v1340
        %v1677 = vunpack.c.h.s8.bf16 %v1341
        %v1678 = vunpack.c.h.s8.bf16 %v1342
        %v1679 = vunpack.c.h.s8.bf16 %v1343
        %v1680 = vunpack.c.l.s8.bf16 %v1344
        %v1681 = vunpack.c.l.s8.bf16 %v1345
        %v1682 = vunpack.c.l.s8.bf16 %v1346
        %v1683 = vunpack.c.l.s8.bf16 %v1347
        %v1684 = vunpack.c.l.s8.bf16 %v1348
        %v1685 = vunpack.c.l.s8.bf16 %v1349
        %v1686 = vunpack.c.l.s8.bf16 %v1350
        %v1687 = vunpack.c.l.s8.bf16 %v1351
        %v1688 = vunpack.c.l.s8.bf16 %v1352
        %v1689 = vunpack.c.l.s8.bf16 %v1353
        %v1690 = vunpack.c.l.s8.bf16 %v1354
        %v1691 = vunpack.c.l.s8.bf16 %v1355
        %v1692 = vunpack.c.h.s8.bf16 %v1344
        %v1693 = vunpack.c.h.s8.bf16 %v1345
        %v1694 = vunpack.c.h.s8.bf16 %v1346
        %v1695 = vunpack.c.h.s8.bf16 %v1347
        %v1696 = vunpack.c.h.s8.bf16 %v1348
        %v1697 = vunpack.c.h.s8.bf16 %v1349
        %v1698 = vunpack.c.h.s8.bf16 %v1350
        %v1699 = vunpack.c.h.s8.bf16 %v1351
        %v1700 = vunpack.c.h.s8.bf16 %v1352
        %v1701 = vunpack.c.h.s8.bf16 %v1353
        %v1702 = vunpack.c.h.s8.bf16 %v1354
        %v1703 = vunpack.c.h.s8.bf16 %v1355
        %v1704 = vunpack.c.l.s8.bf16 %v1356
        %v1705 = vunpack.c.l.s8.bf16 %v1357
        %v1706 = vunpack.c.l.s8.bf16 %v1358
        %v1707 = vunpack.c.l.s8.bf16 %v1359
        %v1708 = vunpack.c.l.s8.bf16 %v1360
        %v1709 = vunpack.c.l.s8.bf16 %v1361
        %v1710 = vunpack.c.l.s8.bf16 %v1362
        %v1711 = vunpack.c.l.s8.bf16 %v1363
        %v1712 = vunpack.c.l.s8.bf16 %v1364
        %v1713 = vunpack.c.l.s8.bf16 %v1365
        %v1714 = vunpack.c.l.s8.bf16 %v1366
        %v1715 = vunpack.c.l.s8.bf16 %v1367
        %v1716 = vunpack.c.h.s8.bf16 %v1356
        %v1717 = vunpack.c.h.s8.bf16 %v1357
        %v1718 = vunpack.c.h.s8.bf16 %v1358
        %v1719 = vunpack.c.h.s8.bf16 %v1359
        %v1720 = vunpack.c.h.s8.bf16 %v1360
        %v1721 = vunpack.c.h.s8.bf16 %v1361
        %v1722 = vunpack.c.h.s8.bf16 %v1362
        %v1723 = vunpack.c.h.s8.bf16 %v1363
        %v1724 = vunpack.c.h.s8.bf16 %v1364
        %v1725 = vunpack.c.h.s8.bf16 %v1365
        %v1726 = vunpack.c.h.s8.bf16 %v1366
        %v1727 = vunpack.c.h.s8.bf16 %v1367
        %v1728 = vunpack.c.l.s8.bf16 %v1368
        %v1729 = vunpack.c.l.s8.bf16 %v1369
        %v1730 = vunpack.c.l.s8.bf16 %v1370
        %v1731 = vunpack.c.l.s8.bf16 %v1371
        %v1732 = vunpack.c.l.s8.bf16 %v1372
        %v1733 = vunpack.c.l.s8.bf16 %v1373
        %v1734 = vunpack.c.l.s8.bf16 %v1374
        %v1735 = vunpack.c.l.s8.bf16 %v1375
        %v1736 = vunpack.c.l.s8.bf16 %v1376
        %v1737 = vunpack.c.l.s8.bf16 %v1377
        %v1738 = vunpack.c.l.s8.bf16 %v1378
        %v1739 = vunpack.c.l.s8.bf16 %v1379
        %v1740 = vunpack.c.h.s8.bf16 %v1368
        %v1741 = vunpack.c.h.s8.bf16 %v1369
        %v1742 = vunpack.c.h.s8.bf16 %v1370
        %v1743 = vunpack.c.h.s8.bf16 %v1371
        %v1744 = vunpack.c.h.s8.bf16 %v1372
        %v1745 = vunpack.c.h.s8.bf16 %v1373
        %v1746 = vunpack.c.h.s8.bf16 %v1374
        %v1747 = vunpack.c.h.s8.bf16 %v1375
        %v1748 = vunpack.c.h.s8.bf16 %v1376
        %v1749 = vunpack.c.h.s8.bf16 %v1377
        %v1750 = vunpack.c.h.s8.bf16 %v1378
        %v1751 = vunpack.c.h.s8.bf16 %v1379
        %v1752 = vunpack.c.l.s8.bf16 %v1380
        %v1753 = vunpack.c.l.s8.bf16 %v1381
        %v1754 = vunpack.c.l.s8.bf16 %v1382
        %v1755 = vunpack.c.l.s8.bf16 %v1383
        %v1756 = vunpack.c.l.s8.bf16 %v1384
        %v1757 = vunpack.c.l.s8.bf16 %v1385
        %v1758 = vunpack.c.l.s8.bf16 %v1386
        %v1759 = vunpack.c.l.s8.bf16 %v1387
        %v1760 = vunpack.c.l.s8.bf16 %v1388
        %v1761 = vunpack.c.l.s8.bf16 %v1389
        %v1762 = vunpack.c.l.s8.bf16 %v1390
        %v1763 = vunpack.c.l.s8.bf16 %v1391
        %v1764 = vunpack.c.h.s8.bf16 %v1380
        %v1765 = vunpack.c.h.s8.bf16 %v1381
        %v1766 = vunpack.c.h.s8.bf16 %v1382
        %v1767 = vunpack.c.h.s8.bf16 %v1383
        %v1768 = vunpack.c.h.s8.bf16 %v1384
        %v1769 = vunpack.c.h.s8.bf16 %v1385
        %v1770 = vunpack.c.h.s8.bf16 %v1386
        %v1771 = vunpack.c.h.s8.bf16 %v1387
        %v1772 = vunpack.c.h.s8.bf16 %v1388
        %v1773 = vunpack.c.h.s8.bf16 %v1389
        %v1774 = vunpack.c.h.s8.bf16 %v1390
        %v1775 = vunpack.c.h.s8.bf16 %v1391
        %1776 = vmatprep.subr.bf16.mxu0 %v1477
        %1777 = vmatpush1.bf16.msra.mxu0 %v1476
        %1778 = vmatprep.subr.bf16.mxu0 %v1465
        %1779 = vmatpush1.bf16.msra.mxu0 %v1464
        %1780 = vmatprep.subr.bf16.mxu0 %v1453
        %1781 = vmatpush1.bf16.msra.mxu0 %v1452
        %1782 = vmatprep.subr.bf16.mxu0 %v1441
        %1783 = vmatpush1.bf16.msra.mxu0 %v1440
        %1784 = vmatprep.subr.bf16.mxu0 %v1429
        %1785 = vmatpush1.bf16.msra.mxu0 %v1428
        %1786 = vmatprep.subr.bf16.mxu0 %v1417
        %1787 = vmatpush1.bf16.msra.mxu0 %v1416
        %1788 = vmatprep.subr.bf16.mxu0 %v1405
        %1789 = vmatpush1.bf16.msra.mxu0 %v1404
        %1790 = vmatprep.subr.bf16.mxu0 %v1393
        %1791 = vmatpush1.bf16.msra.mxu0 %v1392
        %1792 = vmatprep.subr.bf16.mxu0 %v1573
        %1793 = vmatpush2.bf16.msra.mxu0 %v1572
        %1794 = vmatprep.subr.bf16.mxu0 %v1561
        %1795 = vmatpush2.bf16.msra.mxu0 %v1560
        %1796 = vmatprep.subr.bf16.mxu0 %v1549
        %1797 = vmatpush2.bf16.msra.mxu0 %v1548
        %1798 = vmatprep.subr.bf16.mxu0 %v1537
        %1799 = vmatpush2.bf16.msra.mxu0 %v1536
        %1800 = vmatprep.subr.bf16.mxu0 %v1525
        %1801 = vmatpush2.bf16.msra.mxu0 %v1524
        %1802 = vmatprep.subr.bf16.mxu0 %v1513
        %1803 = vmatpush2.bf16.msra.mxu0 %v1512
        %1804 = vmatprep.subr.bf16.mxu0 %v1501
        %1805 = vmatpush2.bf16.msra.mxu0 %v1500
        %1806 = vmatprep.subr.bf16.mxu0 %v1489
        %1807 = vmatpush2.bf16.msra.mxu0 %v1488
        %1808 = vmatprep.mubr.bf16.mxu0 %v1197
        %1809 = vmatmul.mubr.bf16.gmra.mxu0 %v1196
        %v1810 = vpop.f32.mrf.mxu0
        %v1811 = vadd.f32 0.0, %v1810
        %v1812 = vpop.f32.mrf.mxu0
        %v1813 = vadd.f32 0.0, %v1812
        %v1814 = vpop.f32.mrf.mxu0
        %v1815 = vpop.f32.mrf.mxu0
        %1816 = vdwg.mxu0
        %1817 = vmatprep.subr.bf16.mxu0 %v1669
        %1818 = vmatpush1.bf16.msra.mxu0 %v1668
        %1819 = vmatprep.subr.bf16.mxu0 %v1657
        %1820 = vmatpush1.bf16.msra.mxu0 %v1656
        %1821 = vmatprep.subr.bf16.mxu0 %v1645
        %1822 = vmatpush1.bf16.msra.mxu0 %v1644
        %1823 = vmatprep.subr.bf16.mxu0 %v1633
        %1824 = vmatpush1.bf16.msra.mxu0 %v1632
        %1825 = vmatprep.subr.bf16.mxu0 %v1621
        %1826 = vmatpush1.bf16.msra.mxu0 %v1620
        %1827 = vmatprep.subr.bf16.mxu0 %v1609
        %1828 = vmatpush1.bf16.msra.mxu0 %v1608
        %1829 = vmatprep.subr.bf16.mxu0 %v1597
        %1830 = vmatpush1.bf16.msra.mxu0 %v1596
        %1831 = vmatprep.subr.bf16.mxu0 %v1585
        %1832 = vmatpush1.bf16.msra.mxu0 %v1584
        %1833 = vmatprep.subr.bf16.mxu0 %v1765
        %1834 = vmatpush2.bf16.msra.mxu0 %v1764
        %1835 = vmatprep.subr.bf16.mxu0 %v1753
        %1836 = vmatpush2.bf16.msra.mxu0 %v1752
        %1837 = vmatprep.subr.bf16.mxu0 %v1741
        %1838 = vmatpush2.bf16.msra.mxu0 %v1740
        %1839 = vmatprep.subr.bf16.mxu0 %v1729
        %1840 = vmatpush2.bf16.msra.mxu0 %v1728
        %1841 = vmatprep.subr.bf16.mxu0 %v1717
        %1842 = vmatpush2.bf16.msra.mxu0 %v1716
        %1843 = vmatprep.subr.bf16.mxu0 %v1705
        %1844 = vmatpush2.bf16.msra.mxu0 %v1704
        %1845 = vmatprep.subr.bf16.mxu0 %v1693
        %1846 = vmatpush2.bf16.msra.mxu0 %v1692
        %1847 = vmatprep.subr.bf16.mxu0 %v1681
        %1848 = vmatpush2.bf16.msra.mxu0 %v1680
        %1849 = vmatprep.mubr.bf16.mxu0 %v1199
        %1850 = vmatmul.mubr.bf16.gmra.mxu0 %v1198
        %v1851 = vpop.f32.mrf.mxu0
        %v1852 = vadd.f32 %v1811, %v1851
        %v1853 = vpop.f32.mrf.mxu0
        %v1854 = vadd.f32 %v1813, %v1853
        %v1855 = vpop.f32.mrf.mxu0
        %v1856 = vpop.f32.mrf.mxu0
        %1857 = vdwg.mxu0
        %1858 = vmatprep.subr.bf16.mxu0 %v1479
        %1859 = vmatpush1.bf16.msra.mxu0 %v1478
        %1860 = vmatprep.subr.bf16.mxu0 %v1467
        %1861 = vmatpush1.bf16.msra.mxu0 %v1466
        %1862 = vmatprep.subr.bf16.mxu0 %v1455
        %1863 = vmatpush1.bf16.msra.mxu0 %v1454
        %1864 = vmatprep.subr.bf16.mxu0 %v1443
        %1865 = vmatpush1.bf16.msra.mxu0 %v1442
        %1866 = vmatprep.subr.bf16.mxu0 %v1431
        %1867 = vmatpush1.bf16.msra.mxu0 %v1430
        %1868 = vmatprep.subr.bf16.mxu0 %v1419
        %1869 = vmatpush1.bf16.msra.mxu0 %v1418
        %1870 = vmatprep.subr.bf16.mxu0 %v1407
        %1871 = vmatpush1.bf16.msra.mxu0 %v1406
        %1872 = vmatprep.subr.bf16.mxu0 %v1395
        %1873 = vmatpush1.bf16.msra.mxu0 %v1394
        %1874 = vmatprep.subr.bf16.mxu0 %v1575
        %1875 = vmatpush2.bf16.msra.mxu0 %v1574
        %1876 = vmatprep.subr.bf16.mxu0 %v1563
        %1877 = vmatpush2.bf16.msra.mxu0 %v1562
        %1878 = vmatprep.subr.bf16.mxu0 %v1551
        %1879 = vmatpush2.bf16.msra.mxu0 %v1550
        %1880 = vmatprep.subr.bf16.mxu0 %v1539
        %1881 = vmatpush2.bf16.msra.mxu0 %v1538
        %1882 = vmatprep.subr.bf16.mxu0 %v1527
        %1883 = vmatpush2.bf16.msra.mxu0 %v1526
        %1884 = vmatprep.subr.bf16.mxu0 %v1515
        %1885 = vmatpush2.bf16.msra.mxu0 %v1514
        %1886 = vmatprep.subr.bf16.mxu0 %v1503
        %1887 = vmatpush2.bf16.msra.mxu0 %v1502
        %1888 = vmatprep.subr.bf16.mxu0 %v1491
        %1889 = vmatpush2.bf16.msra.mxu0 %v1490
        %1890 = vmatprep.mubr.bf16.mxu0 %v1197
        %1891 = vmatmul.mubr.bf16.gmra.mxu0 %v1196
        %v1892 = vpop.f32.mrf.mxu0
        %v1893 = vadd.f32 0.0, %v1892
        %v1894 = vpop.f32.mrf.mxu0
        %v1895 = vadd.f32 0.0, %v1894
        %v1896 = vpop.f32.mrf.mxu0
        %v1897 = vpop.f32.mrf.mxu0
        %1898 = vdwg.mxu0
        %1899 = vmatprep.subr.bf16.mxu0 %v1671
        %1900 = vmatpush1.bf16.msra.mxu0 %v1670
        %1901 = vmatprep.subr.bf16.mxu0 %v1659
        %1902 = vmatpush1.bf16.msra.mxu0 %v1658
        %1903 = vmatprep.subr.bf16.mxu0 %v1647
        %1904 = vmatpush1.bf16.msra.mxu0 %v1646
        %1905 = vmatprep.subr.bf16.mxu0 %v1635
        %1906 = vmatpush1.bf16.msra.mxu0 %v1634
        %1907 = vmatprep.subr.bf16.mxu0 %v1623
        %1908 = vmatpush1.bf16.msra.mxu0 %v1622
        %1909 = vmatprep.subr.bf16.mxu0 %v1611
        %1910 = vmatpush1.bf16.msra.mxu0 %v1610
        %1911 = vmatprep.subr.bf16.mxu0 %v1599
        %1912 = vmatpush1.bf16.msra.mxu0 %v1598
        %1913 = vmatprep.subr.bf16.mxu0 %v1587
        %1914 = vmatpush1.bf16.msra.mxu0 %v1586
        %1915 = vmatprep.subr.bf16.mxu0 %v1767
        %1916 = vmatpush2.bf16.msra.mxu0 %v1766
        %1917 = vmatprep.subr.bf16.mxu0 %v1755
        %1918 = vmatpush2.bf16.msra.mxu0 %v1754
        %1919 = vmatprep.subr.bf16.mxu0 %v1743
        %1920 = vmatpush2.bf16.msra.mxu0 %v1742
        %1921 = vmatprep.subr.bf16.mxu0 %v1731
        %1922 = vmatpush2.bf16.msra.mxu0 %v1730
        %1923 = vmatprep.subr.bf16.mxu0 %v1719
        %1924 = vmatpush2.bf16.msra.mxu0 %v1718
        %1925 = vmatprep.subr.bf16.mxu0 %v1707
        %1926 = vmatpush2.bf16.msra.mxu0 %v1706
        %1927 = vmatprep.subr.bf16.mxu0 %v1695
        %1928 = vmatpush2.bf16.msra.mxu0 %v1694
        %1929 = vmatprep.subr.bf16.mxu0 %v1683
        %1930 = vmatpush2.bf16.msra.mxu0 %v1682
        %1931 = vmatprep.mubr.bf16.mxu0 %v1199
        %1932 = vmatmul.mubr.bf16.gmra.mxu0 %v1198
        %v1933 = vpop.f32.mrf.mxu0
        %v1934 = vadd.f32 %v1893, %v1933
        %v1935 = vpop.f32.mrf.mxu0
        %v1936 = vadd.f32 %v1895, %v1935
        %v1937 = vpop.f32.mrf.mxu0
        %v1938 = vpop.f32.mrf.mxu0
        %1939 = vdwg.mxu0
        %1940 = vmatprep.subr.bf16.mxu0 %v1481
        %1941 = vmatpush1.bf16.msra.mxu0 %v1480
        %1942 = vmatprep.subr.bf16.mxu0 %v1469
        %1943 = vmatpush1.bf16.msra.mxu0 %v1468
        %1944 = vmatprep.subr.bf16.mxu0 %v1457
        %1945 = vmatpush1.bf16.msra.mxu0 %v1456
        %1946 = vmatprep.subr.bf16.mxu0 %v1445
        %1947 = vmatpush1.bf16.msra.mxu0 %v1444
        %1948 = vmatprep.subr.bf16.mxu0 %v1433
        %1949 = vmatpush1.bf16.msra.mxu0 %v1432
        %1950 = vmatprep.subr.bf16.mxu0 %v1421
        %1951 = vmatpush1.bf16.msra.mxu0 %v1420
        %1952 = vmatprep.subr.bf16.mxu0 %v1409
        %1953 = vmatpush1.bf16.msra.mxu0 %v1408
        %1954 = vmatprep.subr.bf16.mxu0 %v1397
        %1955 = vmatpush1.bf16.msra.mxu0 %v1396
        %1956 = vmatprep.subr.bf16.mxu0 %v1577
        %1957 = vmatpush2.bf16.msra.mxu0 %v1576
        %1958 = vmatprep.subr.bf16.mxu0 %v1565
        %1959 = vmatpush2.bf16.msra.mxu0 %v1564
        %1960 = vmatprep.subr.bf16.mxu0 %v1553
        %1961 = vmatpush2.bf16.msra.mxu0 %v1552
        %1962 = vmatprep.subr.bf16.mxu0 %v1541
        %1963 = vmatpush2.bf16.msra.mxu0 %v1540
        %1964 = vmatprep.subr.bf16.mxu0 %v1529
        %1965 = vmatpush2.bf16.msra.mxu0 %v1528
        %1966 = vmatprep.subr.bf16.mxu0 %v1517
        %1967 = vmatpush2.bf16.msra.mxu0 %v1516
        %1968 = vmatprep.subr.bf16.mxu0 %v1505
        %1969 = vmatpush2.bf16.msra.mxu0 %v1504
        %1970 = vmatprep.subr.bf16.mxu0 %v1493
        %1971 = vmatpush2.bf16.msra.mxu0 %v1492
        %1972 = vmatprep.mubr.bf16.mxu0 %v1197
        %1973 = vmatmul.mubr.bf16.gmra.mxu0 %v1196
        %v1974 = vpop.f32.mrf.mxu0
        %v1975 = vadd.f32 0.0, %v1974
        %v1976 = vpop.f32.mrf.mxu0
        %v1977 = vadd.f32 0.0, %v1976
        %v1978 = vpop.f32.mrf.mxu0
        %v1979 = vpop.f32.mrf.mxu0
        %1980 = vdwg.mxu0
        %1981 = vmatprep.subr.bf16.mxu0 %v1673
        %1982 = vmatpush1.bf16.msra.mxu0 %v1672
        %1983 = vmatprep.subr.bf16.mxu0 %v1661
        %1984 = vmatpush1.bf16.msra.mxu0 %v1660
        %1985 = vmatprep.subr.bf16.mxu0 %v1649
        %1986 = vmatpush1.bf16.msra.mxu0 %v1648
        %1987 = vmatprep.subr.bf16.mxu0 %v1637
        %1988 = vmatpush1.bf16.msra.mxu0 %v1636
        %1989 = vmatprep.subr.bf16.mxu0 %v1625
        %1990 = vmatpush1.bf16.msra.mxu0 %v1624
        %1991 = vmatprep.subr.bf16.mxu0 %v1613
        %1992 = vmatpush1.bf16.msra.mxu0 %v1612
        %1993 = vmatprep.subr.bf16.mxu0 %v1601
        %1994 = vmatpush1.bf16.msra.mxu0 %v1600
        %1995 = vmatprep.subr.bf16.mxu0 %v1589
        %1996 = vmatpush1.bf16.msra.mxu0 %v1588
        %1997 = vmatprep.subr.bf16.mxu0 %v1769
        %1998 = vmatpush2.bf16.msra.mxu0 %v1768
        %1999 = vmatprep.subr.bf16.mxu0 %v1757
        %2000 = vmatpush2.bf16.msra.mxu0 %v1756
        %2001 = vmatprep.subr.bf16.mxu0 %v1745
        %2002 = vmatpush2.bf16.msra.mxu0 %v1744
        %2003 = vmatprep.subr.bf16.mxu0 %v1733
        %2004 = vmatpush2.bf16.msra.mxu0 %v1732
        %2005 = vmatprep.subr.bf16.mxu0 %v1721
        %2006 = vmatpush2.bf16.msra.mxu0 %v1720
        %2007 = vmatprep.subr.bf16.mxu0 %v1709
        %2008 = vmatpush2.bf16.msra.mxu0 %v1708
        %2009 = vmatprep.subr.bf16.mxu0 %v1697
        %2010 = vmatpush2.bf16.msra.mxu0 %v1696
        %2011 = vmatprep.subr.bf16.mxu0 %v1685
        %2012 = vmatpush2.bf16.msra.mxu0 %v1684
        %2013 = vmatprep.mubr.bf16.mxu0 %v1199
        %2014 = vmatmul.mubr.bf16.gmra.mxu0 %v1198
        %v2015 = vpop.f32.mrf.mxu0
        %v2016 = vadd.f32 %v1975, %v2015
        %v2017 = vpop.f32.mrf.mxu0
        %v2018 = vadd.f32 %v1977, %v2017
        %v2019 = vpop.f32.mrf.mxu0
        %v2020 = vpop.f32.mrf.mxu0
        %2021 = vdwg.mxu0
        %2022 = vmatprep.subr.bf16.mxu0 %v1483
        %2023 = vmatpush1.bf16.msra.mxu0 %v1482
        %2024 = vmatprep.subr.bf16.mxu0 %v1471
        %2025 = vmatpush1.bf16.msra.mxu0 %v1470
        %2026 = vmatprep.subr.bf16.mxu0 %v1459
        %2027 = vmatpush1.bf16.msra.mxu0 %v1458
        %2028 = vmatprep.subr.bf16.mxu0 %v1447
        %2029 = vmatpush1.bf16.msra.mxu0 %v1446
        %2030 = vmatprep.subr.bf16.mxu0 %v1435
        %2031 = vmatpush1.bf16.msra.mxu0 %v1434
        %2032 = vmatprep.subr.bf16.mxu0 %v1423
        %2033 = vmatpush1.bf16.msra.mxu0 %v1422
        %2034 = vmatprep.subr.bf16.mxu0 %v1411
        %2035 = vmatpush1.bf16.msra.mxu0 %v1410
        %2036 = vmatprep.subr.bf16.mxu0 %v1399
        %2037 = vmatpush1.bf16.msra.mxu0 %v1398
        %2038 = vmatprep.subr.bf16.mxu0 %v1579
        %2039 = vmatpush2.bf16.msra.mxu0 %v1578
        %2040 = vmatprep.subr.bf16.mxu0 %v1567
        %2041 = vmatpush2.bf16.msra.mxu0 %v1566
        %2042 = vmatprep.subr.bf16.mxu0 %v1555
        %2043 = vmatpush2.bf16.msra.mxu0 %v1554
        %2044 = vmatprep.subr.bf16.mxu0 %v1543
        %2045 = vmatpush2.bf16.msra.mxu0 %v1542
        %2046 = vmatprep.subr.bf16.mxu0 %v1531
        %2047 = vmatpush2.bf16.msra.mxu0 %v1530
        %2048 = vmatprep.subr.bf16.mxu0 %v1519
        %2049 = vmatpush2.bf16.msra.mxu0 %v1518
        %2050 = vmatprep.subr.bf16.mxu0 %v1507
        %2051 = vmatpush2.bf16.msra.mxu0 %v1506
        %2052 = vmatprep.subr.bf16.mxu0 %v1495
        %2053 = vmatpush2.bf16.msra.mxu0 %v1494
        %2054 = vmatprep.mubr.bf16.mxu0 %v1197
        %2055 = vmatmul.mubr.bf16.gmra.mxu0 %v1196
        %v2056 = vpop.f32.mrf.mxu0
        %v2057 = vadd.f32 0.0, %v2056
        %v2058 = vpop.f32.mrf.mxu0
        %v2059 = vadd.f32 0.0, %v2058
        %v2060 = vpop.f32.mrf.mxu0
        %v2061 = vpop.f32.mrf.mxu0
        %2062 = vdwg.mxu0
        %2063 = vmatprep.subr.bf16.mxu0 %v1675
        %2064 = vmatpush1.bf16.msra.mxu0 %v1674
        %2065 = vmatprep.subr.bf16.mxu0 %v1663
        %2066 = vmatpush1.bf16.msra.mxu0 %v1662
        %2067 = vmatprep.subr.bf16.mxu0 %v1651
        %2068 = vmatpush1.bf16.msra.mxu0 %v1650
        %2069 = vmatprep.subr.bf16.mxu0 %v1639
        %2070 = vmatpush1.bf16.msra.mxu0 %v1638
        %2071 = vmatprep.subr.bf16.mxu0 %v1627
        %2072 = vmatpush1.bf16.msra.mxu0 %v1626
        %2073 = vmatprep.subr.bf16.mxu0 %v1615
        %2074 = vmatpush1.bf16.msra.mxu0 %v1614
        %2075 = vmatprep.subr.bf16.mxu0 %v1603
        %2076 = vmatpush1.bf16.msra.mxu0 %v1602
        %2077 = vmatprep.subr.bf16.mxu0 %v1591
        %2078 = vmatpush1.bf16.msra.mxu0 %v1590
        %2079 = vmatprep.subr.bf16.mxu0 %v1771
        %2080 = vmatpush2.bf16.msra.mxu0 %v1770
        %2081 = vmatprep.subr.bf16.mxu0 %v1759
        %2082 = vmatpush2.bf16.msra.mxu0 %v1758
        %2083 = vmatprep.subr.bf16.mxu0 %v1747
        %2084 = vmatpush2.bf16.msra.mxu0 %v1746
        %2085 = vmatprep.subr.bf16.mxu0 %v1735
        %2086 = vmatpush2.bf16.msra.mxu0 %v1734
        %2087 = vmatprep.subr.bf16.mxu0 %v1723
        %2088 = vmatpush2.bf16.msra.mxu0 %v1722
        %2089 = vmatprep.subr.bf16.mxu0 %v1711
        %2090 = vmatpush2.bf16.msra.mxu0 %v1710
        %2091 = vmatprep.subr.bf16.mxu0 %v1699
        %2092 = vmatpush2.bf16.msra.mxu0 %v1698
        %2093 = vmatprep.subr.bf16.mxu0 %v1687
        %2094 = vmatpush2.bf16.msra.mxu0 %v1686
        %2095 = vmatprep.mubr.bf16.mxu0 %v1199
        %2096 = vmatmul.mubr.bf16.gmra.mxu0 %v1198
        %v2097 = vpop.f32.mrf.mxu0
        %v2098 = vadd.f32 %v2057, %v2097
        %v2099 = vpop.f32.mrf.mxu0
        %v2100 = vadd.f32 %v2059, %v2099
        %v2101 = vpop.f32.mrf.mxu0
        %v2102 = vpop.f32.mrf.mxu0
        %2103 = vdwg.mxu0
        %2104 = vmatprep.subr.bf16.mxu0 %v1485
        %2105 = vmatpush1.bf16.msra.mxu0 %v1484
        %2106 = vmatprep.subr.bf16.mxu0 %v1473
        %2107 = vmatpush1.bf16.msra.mxu0 %v1472
        %2108 = vmatprep.subr.bf16.mxu0 %v1461
        %2109 = vmatpush1.bf16.msra.mxu0 %v1460
        %2110 = vmatprep.subr.bf16.mxu0 %v1449
        %2111 = vmatpush1.bf16.msra.mxu0 %v1448
        %2112 = vmatprep.subr.bf16.mxu0 %v1437
        %2113 = vmatpush1.bf16.msra.mxu0 %v1436
        %2114 = vmatprep.subr.bf16.mxu0 %v1425
        %2115 = vmatpush1.bf16.msra.mxu0 %v1424
        %2116 = vmatprep.subr.bf16.mxu0 %v1413
        %2117 = vmatpush1.bf16.msra.mxu0 %v1412
        %2118 = vmatprep.subr.bf16.mxu0 %v1401
        %2119 = vmatpush1.bf16.msra.mxu0 %v1400
        %2120 = vmatprep.subr.bf16.mxu0 %v1581
        %2121 = vmatpush2.bf16.msra.mxu0 %v1580
        %2122 = vmatprep.subr.bf16.mxu0 %v1569
        %2123 = vmatpush2.bf16.msra.mxu0 %v1568
        %2124 = vmatprep.subr.bf16.mxu0 %v1557
        %2125 = vmatpush2.bf16.msra.mxu0 %v1556
        %2126 = vmatprep.subr.bf16.mxu0 %v1545
        %2127 = vmatpush2.bf16.msra.mxu0 %v1544
        %2128 = vmatprep.subr.bf16.mxu0 %v1533
        %2129 = vmatpush2.bf16.msra.mxu0 %v1532
        %2130 = vmatprep.subr.bf16.mxu0 %v1521
        %2131 = vmatpush2.bf16.msra.mxu0 %v1520
        %2132 = vmatprep.subr.bf16.mxu0 %v1509
        %2133 = vmatpush2.bf16.msra.mxu0 %v1508
        %2134 = vmatprep.subr.bf16.mxu0 %v1497
        %2135 = vmatpush2.bf16.msra.mxu0 %v1496
        %2136 = vmatprep.mubr.bf16.mxu0 %v1197
        %2137 = vmatmul.mubr.bf16.gmra.mxu0 %v1196
        %v2138 = vpop.f32.mrf.mxu0
        %v2139 = vadd.f32 0.0, %v2138
        %v2140 = vpop.f32.mrf.mxu0
        %v2141 = vadd.f32 0.0, %v2140
        %v2142 = vpop.f32.mrf.mxu0
        %v2143 = vpop.f32.mrf.mxu0
        %2144 = vdwg.mxu0
        %2145 = vmatprep.subr.bf16.mxu0 %v1677
        %2146 = vmatpush1.bf16.msra.mxu0 %v1676
        %2147 = vmatprep.subr.bf16.mxu0 %v1665
        %2148 = vmatpush1.bf16.msra.mxu0 %v1664
        %2149 = vmatprep.subr.bf16.mxu0 %v1653
        %2150 = vmatpush1.bf16.msra.mxu0 %v1652
        %2151 = vmatprep.subr.bf16.mxu0 %v1641
        %2152 = vmatpush1.bf16.msra.mxu0 %v1640
        %2153 = vmatprep.subr.bf16.mxu0 %v1629
        %2154 = vmatpush1.bf16.msra.mxu0 %v1628
        %2155 = vmatprep.subr.bf16.mxu0 %v1617
        %2156 = vmatpush1.bf16.msra.mxu0 %v1616
        %2157 = vmatprep.subr.bf16.mxu0 %v1605
        %2158 = vmatpush1.bf16.msra.mxu0 %v1604
        %2159 = vmatprep.subr.bf16.mxu0 %v1593
        %2160 = vmatpush1.bf16.msra.mxu0 %v1592
        %2161 = vmatprep.subr.bf16.mxu0 %v1773
        %2162 = vmatpush2.bf16.msra.mxu0 %v1772
        %2163 = vmatprep.subr.bf16.mxu0 %v1761
        %2164 = vmatpush2.bf16.msra.mxu0 %v1760
        %2165 = vmatprep.subr.bf16.mxu0 %v1749
        %2166 = vmatpush2.bf16.msra.mxu0 %v1748
        %2167 = vmatprep.subr.bf16.mxu0 %v1737
        %2168 = vmatpush2.bf16.msra.mxu0 %v1736
        %2169 = vmatprep.subr.bf16.mxu0 %v1725
        %2170 = vmatpush2.bf16.msra.mxu0 %v1724
        %2171 = vmatprep.subr.bf16.mxu0 %v1713
        %2172 = vmatpush2.bf16.msra.mxu0 %v1712
        %2173 = vmatprep.subr.bf16.mxu0 %v1701
        %2174 = vmatpush2.bf16.msra.mxu0 %v1700
        %2175 = vmatprep.subr.bf16.mxu0 %v1689
        %2176 = vmatpush2.bf16.msra.mxu0 %v1688
        %2177 = vmatprep.mubr.bf16.mxu0 %v1199
        %2178 = vmatmul.mubr.bf16.gmra.mxu0 %v1198
        %v2179 = vpop.f32.mrf.mxu0
        %v2180 = vadd.f32 %v2139, %v2179
        %v2181 = vpop.f32.mrf.mxu0
        %v2182 = vadd.f32 %v2141, %v2181
        %v2183 = vpop.f32.mrf.mxu0
        %v2184 = vpop.f32.mrf.mxu0
        %2185 = vdwg.mxu0
        %2186 = vmatprep.subr.bf16.mxu0 %v1487
        %2187 = vmatpush1.bf16.msra.mxu0 %v1486
        %2188 = vmatprep.subr.bf16.mxu0 %v1475
        %2189 = vmatpush1.bf16.msra.mxu0 %v1474
        %2190 = vmatprep.subr.bf16.mxu0 %v1463
        %2191 = vmatpush1.bf16.msra.mxu0 %v1462
        %2192 = vmatprep.subr.bf16.mxu0 %v1451
        %2193 = vmatpush1.bf16.msra.mxu0 %v1450
        %2194 = vmatprep.subr.bf16.mxu0 %v1439
        %2195 = vmatpush1.bf16.msra.mxu0 %v1438
        %2196 = vmatprep.subr.bf16.mxu0 %v1427
        %2197 = vmatpush1.bf16.msra.mxu0 %v1426
        %2198 = vmatprep.subr.bf16.mxu0 %v1415
        %2199 = vmatpush1.bf16.msra.mxu0 %v1414
        %2200 = vmatprep.subr.bf16.mxu0 %v1403
        %2201 = vmatpush1.bf16.msra.mxu0 %v1402
        %2202 = vmatprep.subr.bf16.mxu0 %v1583
        %2203 = vmatpush2.bf16.msra.mxu0 %v1582
        %2204 = vmatprep.subr.bf16.mxu0 %v1571
        %2205 = vmatpush2.bf16.msra.mxu0 %v1570
        %2206 = vmatprep.subr.bf16.mxu0 %v1559
        %2207 = vmatpush2.bf16.msra.mxu0 %v1558
        %2208 = vmatprep.subr.bf16.mxu0 %v1547
        %2209 = vmatpush2.bf16.msra.mxu0 %v1546
        %2210 = vmatprep.subr.bf16.mxu0 %v1535
        %2211 = vmatpush2.bf16.msra.mxu0 %v1534
        %2212 = vmatprep.subr.bf16.mxu0 %v1523
        %2213 = vmatpush2.bf16.msra.mxu0 %v1522
        %2214 = vmatprep.subr.bf16.mxu0 %v1511
        %2215 = vmatpush2.bf16.msra.mxu0 %v1510
        %2216 = vmatprep.subr.bf16.mxu0 %v1499
        %2217 = vmatpush2.bf16.msra.mxu0 %v1498
        %2218 = vmatprep.mubr.bf16.mxu0 %v1197
        %2219 = vmatmul.mubr.bf16.gmra.mxu0 %v1196
        %v2220 = vpop.f32.mrf.mxu0
        %v2221 = vadd.f32 0.0, %v2220
        %v2222 = vpop.f32.mrf.mxu0
        %v2223 = vadd.f32 0.0, %v2222
        %v2224 = vpop.f32.mrf.mxu0
        %v2225 = vpop.f32.mrf.mxu0
        %2226 = vdwg.mxu0
        %2227 = vmatprep.subr.bf16.mxu0 %v1679
        %2228 = vmatpush1.bf16.msra.mxu0 %v1678
        %2229 = vmatprep.subr.bf16.mxu0 %v1667
        %2230 = vmatpush1.bf16.msra.mxu0 %v1666
        %2231 = vmatprep.subr.bf16.mxu0 %v1655
        %2232 = vmatpush1.bf16.msra.mxu0 %v1654
        %2233 = vmatprep.subr.bf16.mxu0 %v1643
        %2234 = vmatpush1.bf16.msra.mxu0 %v1642
        %2235 = vmatprep.subr.bf16.mxu0 %v1631
        %2236 = vmatpush1.bf16.msra.mxu0 %v1630
        %2237 = vmatprep.subr.bf16.mxu0 %v1619
        %2238 = vmatpush1.bf16.msra.mxu0 %v1618
        %2239 = vmatprep.subr.bf16.mxu0 %v1607
        %2240 = vmatpush1.bf16.msra.mxu0 %v1606
        %2241 = vmatprep.subr.bf16.mxu0 %v1595
        %2242 = vmatpush1.bf16.msra.mxu0 %v1594
        %2243 = vmatprep.subr.bf16.mxu0 %v1775
        %2244 = vmatpush2.bf16.msra.mxu0 %v1774
        %2245 = vmatprep.subr.bf16.mxu0 %v1763
        %2246 = vmatpush2.bf16.msra.mxu0 %v1762
        %2247 = vmatprep.subr.bf16.mxu0 %v1751
        %2248 = vmatpush2.bf16.msra.mxu0 %v1750
        %2249 = vmatprep.subr.bf16.mxu0 %v1739
        %2250 = vmatpush2.bf16.msra.mxu0 %v1738
        %2251 = vmatprep.subr.bf16.mxu0 %v1727
        %2252 = vmatpush2.bf16.msra.mxu0 %v1726
        %2253 = vmatprep.subr.bf16.mxu0 %v1715
        %2254 = vmatpush2.bf16.msra.mxu0 %v1714
        %2255 = vmatprep.subr.bf16.mxu0 %v1703
        %2256 = vmatpush2.bf16.msra.mxu0 %v1702
        %2257 = vmatprep.subr.bf16.mxu0 %v1691
        %2258 = vmatpush2.bf16.msra.mxu0 %v1690
        %2259 = vmatprep.mubr.bf16.mxu0 %v1199
        %2260 = vmatmul.mubr.bf16.gmra.mxu0 %v1198
        %v2261 = vpop.f32.mrf.mxu0
        %v2262 = vadd.f32 %v2221, %v2261
        %v2263 = vpop.f32.mrf.mxu0
        %v2264 = vadd.f32 %v2223, %v2263
        %v2265 = vpop.f32.mrf.mxu0
        %v2266 = vpop.f32.mrf.mxu0
        %2267 = vdwg.mxu0
        %s2268 = scalar_lea.vmem %s543, 16 [#allocation13]
        %v2269 = vld [vmem:[%s2268] ss:$2 sm:$0xff]
        %s2270 = scalar_lea.vmem %s543, 32 [#allocation13]
        %v2271 = vld [vmem:[%s2270] ss:$2 sm:$0xf]
        %s2272 = scalar_lea.vmem %s543, 17 [#allocation13]
        %v2273 = vld [vmem:[%s2272] ss:$2 sm:$0xff]
        %s2274 = scalar_lea.vmem %s543, 33 [#allocation13]
        %v2275 = vld [vmem:[%s2274] ss:$2 sm:$0xf]
        %v2278 = vlaneseq
        %v2279 = vshrl.u32 %v2278, 7
        %v2280 = vsub.s32 0, %v2279
        %v2281 = vrot.slane %v2269, %v2280
        %v2282 = vlaneseq
        %v2283 = vshrl.u32 %v2282, 7
        %v2284 = vsub.s32 1, %v2283
        %v2285 = vrot.slane %v2269, %v2284
        %v2286 = vlaneseq
        %v2287 = vshrl.u32 %v2286, 7
        %v2288 = vsub.s32 2, %v2287
        %v2289 = vrot.slane %v2269, %v2288
        %v2290 = vlaneseq
        %v2291 = vshrl.u32 %v2290, 7
        %v2292 = vsub.s32 3, %v2291
        %v2293 = vrot.slane %v2269, %v2292
        %v2294 = vlaneseq
        %v2295 = vshrl.u32 %v2294, 7
        %v2296 = vsub.s32 4, %v2295
        %v2297 = vrot.slane %v2269, %v2296
        %v2298 = vlaneseq
        %v2299 = vshrl.u32 %v2298, 7
        %v2300 = vsub.s32 5, %v2299
        %v2301 = vrot.slane %v2269, %v2300
        %v2302 = vlaneseq
        %v2303 = vshrl.u32 %v2302, 7
        %v2304 = vsub.s32 6, %v2303
        %v2305 = vrot.slane %v2269, %v2304
        %v2306 = vlaneseq
        %v2307 = vshrl.u32 %v2306, 7
        %v2308 = vsub.s32 7, %v2307
        %v2309 = vrot.slane %v2269, %v2308
        %v2310 = vlaneseq
        %v2311 = vshrl.u32 %v2310, 7
        %v2312 = vsub.s32 0, %v2311
        %v2313 = vrot.slane %v2271, %v2312
        %v2314 = vlaneseq
        %v2315 = vshrl.u32 %v2314, 7
        %v2316 = vsub.s32 1, %v2315
        %v2317 = vrot.slane %v2271, %v2316
        %v2318 = vlaneseq
        %v2319 = vshrl.u32 %v2318, 7
        %v2320 = vsub.s32 2, %v2319
        %v2321 = vrot.slane %v2271, %v2320
        %v2322 = vlaneseq
        %v2323 = vshrl.u32 %v2322, 7
        %v2324 = vsub.s32 3, %v2323
        %v2325 = vrot.slane %v2271, %v2324
        %v2338 = vmul.f32 %v1852, %v2281
        %v2339 = vmul.f32 %v1854, %v2285
        %v2340 = vmul.f32 %v1934, %v2289
        %v2341 = vmul.f32 %v1936, %v2293
        %v2342 = vmul.f32 %v2016, %v2297
        %v2343 = vmul.f32 %v2018, %v2301
        %v2344 = vmul.f32 %v2098, %v2305
        %v2345 = vmul.f32 %v2100, %v2309
        %v2346 = vmul.f32 %v2180, %v2313
        %v2347 = vmul.f32 %v2182, %v2317
        %v2348 = vmul.f32 %v2262, %v2321
        %v2349 = vmul.f32 %v2264, %v2325
        %v2352 = vlaneseq
        %v2353 = vshrl.u32 %v2352, 7
        %v2354 = vsub.s32 0, %v2353
        %v2355 = vrot.slane %v2273, %v2354
        %v2356 = vlaneseq
        %v2357 = vshrl.u32 %v2356, 7
        %v2358 = vsub.s32 1, %v2357
        %v2359 = vrot.slane %v2273, %v2358
        %v2360 = vlaneseq
        %v2361 = vshrl.u32 %v2360, 7
        %v2362 = vsub.s32 2, %v2361
        %v2363 = vrot.slane %v2273, %v2362
        %v2364 = vlaneseq
        %v2365 = vshrl.u32 %v2364, 7
        %v2366 = vsub.s32 3, %v2365
        %v2367 = vrot.slane %v2273, %v2366
        %v2368 = vlaneseq
        %v2369 = vshrl.u32 %v2368, 7
        %v2370 = vsub.s32 4, %v2369
        %v2371 = vrot.slane %v2273, %v2370
        %v2372 = vlaneseq
        %v2373 = vshrl.u32 %v2372, 7
        %v2374 = vsub.s32 5, %v2373
        %v2375 = vrot.slane %v2273, %v2374
        %v2376 = vlaneseq
        %v2377 = vshrl.u32 %v2376, 7
        %v2378 = vsub.s32 6, %v2377
        %v2379 = vrot.slane %v2273, %v2378
        %v2380 = vlaneseq
        %v2381 = vshrl.u32 %v2380, 7
        %v2382 = vsub.s32 7, %v2381
        %v2383 = vrot.slane %v2273, %v2382
        %v2384 = vlaneseq
        %v2385 = vshrl.u32 %v2384, 7
        %v2386 = vsub.s32 0, %v2385
        %v2387 = vrot.slane %v2275, %v2386
        %v2388 = vlaneseq
        %v2389 = vshrl.u32 %v2388, 7
        %v2390 = vsub.s32 1, %v2389
        %v2391 = vrot.slane %v2275, %v2390
        %v2392 = vlaneseq
        %v2393 = vshrl.u32 %v2392, 7
        %v2394 = vsub.s32 2, %v2393
        %v2395 = vrot.slane %v2275, %v2394
        %v2396 = vlaneseq
        %v2397 = vshrl.u32 %v2396, 7
        %v2398 = vsub.s32 3, %v2397
        %v2399 = vrot.slane %v2275, %v2398
        %v2412 = vadd.f32 %v2338, %v2355
        %v2413 = vadd.f32 %v2339, %v2359
        %v2414 = vadd.f32 %v2340, %v2363
        %v2415 = vadd.f32 %v2341, %v2367
        %v2416 = vadd.f32 %v2342, %v2371
        %v2417 = vadd.f32 %v2343, %v2375
        %v2418 = vadd.f32 %v2344, %v2379
        %v2419 = vadd.f32 %v2345, %v2383
        %v2420 = vadd.f32 %v2346, %v2387
        %v2421 = vadd.f32 %v2347, %v2391
        %v2422 = vadd.f32 %v2348, %v2395
        %v2423 = vadd.f32 %v2349, %v2399
        %v2424 = vmax.f32 %v2412, 0.0
        %v2425 = vmax.f32 %v2413, 0.0
        %v2426 = vmax.f32 %v2414, 0.0
        %v2427 = vmax.f32 %v2415, 0.0
        %v2428 = vmax.f32 %v2416, 0.0
        %v2429 = vmax.f32 %v2417, 0.0
        %v2430 = vmax.f32 %v2418, 0.0
        %v2431 = vmax.f32 %v2419, 0.0
        %v2432 = vmax.f32 %v2420, 0.0
        %v2433 = vmax.f32 %v2421, 0.0
        %v2434 = vmax.f32 %v2422, 0.0
        %v2435 = vmax.f32 %v2423, 0.0
        %v2436 = vpack.c.bf16 %v2424, %v2424
        %v2437 = vpack.c.bf16 %v2425, %v2425
        %v2438 = vpack.c.bf16 %v2426, %v2426
        %v2439 = vpack.c.bf16 %v2427, %v2427
        %v2440 = vpack.c.bf16 %v2428, %v2428
        %v2441 = vpack.c.bf16 %v2429, %v2429
        %v2442 = vpack.c.bf16 %v2430, %v2430
        %v2443 = vpack.c.bf16 %v2431, %v2431
        %v2444 = vpack.c.bf16 %v2432, %v2432
        %v2445 = vpack.c.bf16 %v2433, %v2433
        %v2446 = vpack.c.bf16 %v2434, %v2434
        %v2447 = vpack.c.bf16 %v2435, %v2435
        %v2448 = vld [vmem:[%s534] sm:$0xff]
        %v2449 = vld [vmem:[%s534 + $0x8] sm:$0xff]
        %v2450 = vld [vmem:[%s534 + $0x10] sm:$0xff]
        %v2451 = vld [vmem:[%s534 + $0x18] sm:$0xff]
        %v2452 = vld [vmem:[%s534 + $0x60] sm:$0xff]
        %v2453 = vld [vmem:[%s534 + $0x68] sm:$0xff]
        %v2454 = vld [vmem:[%s534 + $0x70] sm:$0xff]
        %v2455 = vld [vmem:[%s534 + $0x78] sm:$0xff]
        %v2456 = vld [vmem:[%s534 + $0xc0] sm:$0xff]
        %v2457 = vld [vmem:[%s534 + $0xc8] sm:$0xff]
        %v2458 = vld [vmem:[%s534 + $0xd0] sm:$0xff]
        %v2459 = vld [vmem:[%s534 + $0xd8] sm:$0xff]
        %v2460 = vld [vmem:[%s534 + $0x120] sm:$0xff]
        %v2461 = vld [vmem:[%s534 + $0x128] sm:$0xff]
        %v2462 = vld [vmem:[%s534 + $0x130] sm:$0xff]
        %v2463 = vld [vmem:[%s534 + $0x138] sm:$0xff]
        %v2464 = vld [vmem:[%s534 + $0x180] sm:$0xff]
        %v2465 = vld [vmem:[%s534 + $0x188] sm:$0xff]
        %v2466 = vld [vmem:[%s534 + $0x190] sm:$0xff]
        %v2467 = vld [vmem:[%s534 + $0x198] sm:$0xff]
        %v2468 = vld [vmem:[%s534 + $0x1e0] sm:$0xff]
        %v2469 = vld [vmem:[%s534 + $0x1e8] sm:$0xff]
        %v2470 = vld [vmem:[%s534 + $0x1f0] sm:$0xff]
        %v2471 = vld [vmem:[%s534 + $0x1f8] sm:$0xff]
        %v2472 = vld [vmem:[%s534 + $0x240] sm:$0xff]
        %v2473 = vld [vmem:[%s534 + $0x248] sm:$0xff]
        %v2474 = vld [vmem:[%s534 + $0x250] sm:$0xff]
        %v2475 = vld [vmem:[%s534 + $0x258] sm:$0xff]
        %v2476 = vld [vmem:[%s534 + $0x2a0] sm:$0xff]
        %v2477 = vld [vmem:[%s534 + $0x2a8] sm:$0xff]
        %v2478 = vld [vmem:[%s534 + $0x2b0] sm:$0xff]
        %v2479 = vld [vmem:[%s534 + $0x2b8] sm:$0xff]
        %v2480 = vld [vmem:[%s534 + $0x300] sm:$0xff]
        %v2481 = vld [vmem:[%s534 + $0x308] sm:$0xff]
        %v2482 = vld [vmem:[%s534 + $0x310] sm:$0xff]
        %v2483 = vld [vmem:[%s534 + $0x318] sm:$0xff]
        %v2484 = vld [vmem:[%s534 + $0x360] sm:$0xff]
        %v2485 = vld [vmem:[%s534 + $0x368] sm:$0xff]
        %v2486 = vld [vmem:[%s534 + $0x370] sm:$0xff]
        %v2487 = vld [vmem:[%s534 + $0x378] sm:$0xff]
        %v2488 = vld [vmem:[%s534 + $0x3c0] sm:$0xff]
        %v2489 = vld [vmem:[%s534 + $0x3c8] sm:$0xff]
        %v2490 = vld [vmem:[%s534 + $0x3d0] sm:$0xff]
        %v2491 = vld [vmem:[%s534 + $0x3d8] sm:$0xff]
        %v2492 = vld [vmem:[%s534 + $0x420] sm:$0xff]
        %v2493 = vld [vmem:[%s534 + $0x428] sm:$0xff]
        %v2494 = vld [vmem:[%s534 + $0x430] sm:$0xff]
        %v2495 = vld [vmem:[%s534 + $0x438] sm:$0xff]
        %v2496 = vld [vmem:[%s534 + $0x480] sm:$0xff]
        %v2497 = vld [vmem:[%s534 + $0x488] sm:$0xff]
        %v2498 = vld [vmem:[%s534 + $0x490] sm:$0xff]
        %v2499 = vld [vmem:[%s534 + $0x498] sm:$0xff]
        %v2500 = vld [vmem:[%s534 + $0x4e0] sm:$0xff]
        %v2501 = vld [vmem:[%s534 + $0x4e8] sm:$0xff]
        %v2502 = vld [vmem:[%s534 + $0x4f0] sm:$0xff]
        %v2503 = vld [vmem:[%s534 + $0x4f8] sm:$0xff]
        %v2504 = vld [vmem:[%s534 + $0x540] sm:$0xff]
        %v2505 = vld [vmem:[%s534 + $0x548] sm:$0xff]
        %v2506 = vld [vmem:[%s534 + $0x550] sm:$0xff]
        %v2507 = vld [vmem:[%s534 + $0x558] sm:$0xff]
        %v2508 = vld [vmem:[%s534 + $0x5a0] sm:$0xff]
        %v2509 = vld [vmem:[%s534 + $0x5a8] sm:$0xff]
        %v2510 = vld [vmem:[%s534 + $0x5b0] sm:$0xff]
        %v2511 = vld [vmem:[%s534 + $0x5b8] sm:$0xff]
        %v2512 = vunpack.c.l.s8.bf16 %v2448
        %v2513 = vunpack.c.l.s8.bf16 %v2449
        %v2514 = vunpack.c.l.s8.bf16 %v2450
        %v2515 = vunpack.c.l.s8.bf16 %v2451
        %v2516 = vunpack.c.h.s8.bf16 %v2448
        %v2517 = vunpack.c.h.s8.bf16 %v2449
        %v2518 = vunpack.c.h.s8.bf16 %v2450
        %v2519 = vunpack.c.h.s8.bf16 %v2451
        %v2520 = vunpack.c.l.s8.bf16 %v2452
        %v2521 = vunpack.c.l.s8.bf16 %v2453
        %v2522 = vunpack.c.l.s8.bf16 %v2454
        %v2523 = vunpack.c.l.s8.bf16 %v2455
        %v2524 = vunpack.c.h.s8.bf16 %v2452
        %v2525 = vunpack.c.h.s8.bf16 %v2453
        %v2526 = vunpack.c.h.s8.bf16 %v2454
        %v2527 = vunpack.c.h.s8.bf16 %v2455
        %v2528 = vunpack.c.l.s8.bf16 %v2456
        %v2529 = vunpack.c.l.s8.bf16 %v2457
        %v2530 = vunpack.c.l.s8.bf16 %v2458
        %v2531 = vunpack.c.l.s8.bf16 %v2459
        %v2532 = vunpack.c.h.s8.bf16 %v2456
        %v2533 = vunpack.c.h.s8.bf16 %v2457
        %v2534 = vunpack.c.h.s8.bf16 %v2458
        %v2535 = vunpack.c.h.s8.bf16 %v2459
        %v2536 = vunpack.c.l.s8.bf16 %v2460
        %v2537 = vunpack.c.l.s8.bf16 %v2461
        %v2538 = vunpack.c.l.s8.bf16 %v2462
        %v2539 = vunpack.c.l.s8.bf16 %v2463
        %v2540 = vunpack.c.h.s8.bf16 %v2460
        %v2541 = vunpack.c.h.s8.bf16 %v2461
        %v2542 = vunpack.c.h.s8.bf16 %v2462
        %v2543 = vunpack.c.h.s8.bf16 %v2463
        %v2544 = vunpack.c.l.s8.bf16 %v2464
        %v2545 = vunpack.c.l.s8.bf16 %v2465
        %v2546 = vunpack.c.l.s8.bf16 %v2466
        %v2547 = vunpack.c.l.s8.bf16 %v2467
        %v2548 = vunpack.c.h.s8.bf16 %v2464
        %v2549 = vunpack.c.h.s8.bf16 %v2465
        %v2550 = vunpack.c.h.s8.bf16 %v2466
        %v2551 = vunpack.c.h.s8.bf16 %v2467
        %v2552 = vunpack.c.l.s8.bf16 %v2468
        %v2553 = vunpack.c.l.s8.bf16 %v2469
        %v2554 = vunpack.c.l.s8.bf16 %v2470
        %v2555 = vunpack.c.l.s8.bf16 %v2471
        %v2556 = vunpack.c.h.s8.bf16 %v2468
        %v2557 = vunpack.c.h.s8.bf16 %v2469
        %v2558 = vunpack.c.h.s8.bf16 %v2470
        %v2559 = vunpack.c.h.s8.bf16 %v2471
        %v2560 = vunpack.c.l.s8.bf16 %v2472
        %v2561 = vunpack.c.l.s8.bf16 %v2473
        %v2562 = vunpack.c.l.s8.bf16 %v2474
        %v2563 = vunpack.c.l.s8.bf16 %v2475
        %v2564 = vunpack.c.h.s8.bf16 %v2472
        %v2565 = vunpack.c.h.s8.bf16 %v2473
        %v2566 = vunpack.c.h.s8.bf16 %v2474
        %v2567 = vunpack.c.h.s8.bf16 %v2475
        %v2568 = vunpack.c.l.s8.bf16 %v2476
        %v2569 = vunpack.c.l.s8.bf16 %v2477
        %v2570 = vunpack.c.l.s8.bf16 %v2478
        %v2571 = vunpack.c.l.s8.bf16 %v2479
        %v2572 = vunpack.c.h.s8.bf16 %v2476
        %v2573 = vunpack.c.h.s8.bf16 %v2477
        %v2574 = vunpack.c.h.s8.bf16 %v2478
        %v2575 = vunpack.c.h.s8.bf16 %v2479
        %v2576 = vunpack.c.l.s8.bf16 %v2480
        %v2577 = vunpack.c.l.s8.bf16 %v2481
        %v2578 = vunpack.c.l.s8.bf16 %v2482
        %v2579 = vunpack.c.l.s8.bf16 %v2483
        %v2580 = vunpack.c.h.s8.bf16 %v2480
        %v2581 = vunpack.c.h.s8.bf16 %v2481
        %v2582 = vunpack.c.h.s8.bf16 %v2482
        %v2583 = vunpack.c.h.s8.bf16 %v2483
        %v2584 = vunpack.c.l.s8.bf16 %v2484
        %v2585 = vunpack.c.l.s8.bf16 %v2485
        %v2586 = vunpack.c.l.s8.bf16 %v2486
        %v2587 = vunpack.c.l.s8.bf16 %v2487
        %v2588 = vunpack.c.h.s8.bf16 %v2484
        %v2589 = vunpack.c.h.s8.bf16 %v2485
        %v2590 = vunpack.c.h.s8.bf16 %v2486
        %v2591 = vunpack.c.h.s8.bf16 %v2487
        %v2592 = vunpack.c.l.s8.bf16 %v2488
        %v2593 = vunpack.c.l.s8.bf16 %v2489
        %v2594 = vunpack.c.l.s8.bf16 %v2490
        %v2595 = vunpack.c.l.s8.bf16 %v2491
        %v2596 = vunpack.c.h.s8.bf16 %v2488
        %v2597 = vunpack.c.h.s8.bf16 %v2489
        %v2598 = vunpack.c.h.s8.bf16 %v2490
        %v2599 = vunpack.c.h.s8.bf16 %v2491
        %v2600 = vunpack.c.l.s8.bf16 %v2492
        %v2601 = vunpack.c.l.s8.bf16 %v2493
        %v2602 = vunpack.c.l.s8.bf16 %v2494
        %v2603 = vunpack.c.l.s8.bf16 %v2495
        %v2604 = vunpack.c.h.s8.bf16 %v2492
        %v2605 = vunpack.c.h.s8.bf16 %v2493
        %v2606 = vunpack.c.h.s8.bf16 %v2494
        %v2607 = vunpack.c.h.s8.bf16 %v2495
        %v2608 = vunpack.c.l.s8.bf16 %v2496
        %v2609 = vunpack.c.l.s8.bf16 %v2497
        %v2610 = vunpack.c.l.s8.bf16 %v2498
        %v2611 = vunpack.c.l.s8.bf16 %v2499
        %v2612 = vunpack.c.h.s8.bf16 %v2496
        %v2613 = vunpack.c.h.s8.bf16 %v2497
        %v2614 = vunpack.c.h.s8.bf16 %v2498
        %v2615 = vunpack.c.h.s8.bf16 %v2499
        %v2616 = vunpack.c.l.s8.bf16 %v2500
        %v2617 = vunpack.c.l.s8.bf16 %v2501
        %v2618 = vunpack.c.l.s8.bf16 %v2502
        %v2619 = vunpack.c.l.s8.bf16 %v2503
        %v2620 = vunpack.c.h.s8.bf16 %v2500
        %v2621 = vunpack.c.h.s8.bf16 %v2501
        %v2622 = vunpack.c.h.s8.bf16 %v2502
        %v2623 = vunpack.c.h.s8.bf16 %v2503
        %v2624 = vunpack.c.l.s8.bf16 %v2504
        %v2625 = vunpack.c.l.s8.bf16 %v2505
        %v2626 = vunpack.c.l.s8.bf16 %v2506
        %v2627 = vunpack.c.l.s8.bf16 %v2507
        %v2628 = vunpack.c.h.s8.bf16 %v2504
        %v2629 = vunpack.c.h.s8.bf16 %v2505
        %v2630 = vunpack.c.h.s8.bf16 %v2506
        %v2631 = vunpack.c.h.s8.bf16 %v2507
        %v2632 = vunpack.c.l.s8.bf16 %v2508
        %v2633 = vunpack.c.l.s8.bf16 %v2509
        %v2634 = vunpack.c.l.s8.bf16 %v2510
        %v2635 = vunpack.c.l.s8.bf16 %v2511
        %v2636 = vunpack.c.h.s8.bf16 %v2508
        %v2637 = vunpack.c.h.s8.bf16 %v2509
        %v2638 = vunpack.c.h.s8.bf16 %v2510
        %v2639 = vunpack.c.h.s8.bf16 %v2511
        %2640 = vmatprep.subr.bf16.mxu0 %v2541
        %2641 = vmatpush1.bf16.msra.mxu0 %v2540
        %2642 = vmatprep.subr.bf16.mxu0 %v2537
        %2643 = vmatpush1.bf16.msra.mxu0 %v2536
        %2644 = vmatprep.subr.bf16.mxu0 %v2533
        %2645 = vmatpush1.bf16.msra.mxu0 %v2532
        %2646 = vmatprep.subr.bf16.mxu0 %v2529
        %2647 = vmatpush1.bf16.msra.mxu0 %v2528
        %2648 = vmatprep.subr.bf16.mxu0 %v2525
        %2649 = vmatpush1.bf16.msra.mxu0 %v2524
        %2650 = vmatprep.subr.bf16.mxu0 %v2521
        %2651 = vmatpush1.bf16.msra.mxu0 %v2520
        %2652 = vmatprep.subr.bf16.mxu0 %v2517
        %2653 = vmatpush1.bf16.msra.mxu0 %v2516
        %2654 = vmatprep.subr.bf16.mxu0 %v2513
        %2655 = vmatpush1.bf16.msra.mxu0 %v2512
        %2656 = vmatprep.subr.bf16.mxu0 %v2573
        %2657 = vmatpush2.bf16.msra.mxu0 %v2572
        %2658 = vmatprep.subr.bf16.mxu0 %v2569
        %2659 = vmatpush2.bf16.msra.mxu0 %v2568
        %2660 = vmatprep.subr.bf16.mxu0 %v2565
        %2661 = vmatpush2.bf16.msra.mxu0 %v2564
        %2662 = vmatprep.subr.bf16.mxu0 %v2561
        %2663 = vmatpush2.bf16.msra.mxu0 %v2560
        %2664 = vmatprep.subr.bf16.mxu0 %v2557
        %2665 = vmatpush2.bf16.msra.mxu0 %v2556
        %2666 = vmatprep.subr.bf16.mxu0 %v2553
        %2667 = vmatpush2.bf16.msra.mxu0 %v2552
        %2668 = vmatprep.subr.bf16.mxu0 %v2549
        %2669 = vmatpush2.bf16.msra.mxu0 %v2548
        %2670 = vmatprep.subr.bf16.mxu0 %v2545
        %2671 = vmatpush2.bf16.msra.mxu0 %v2544
        %2672 = vmatprep.mubr.bf16.mxu0 %v2437
        %2673 = vmatmul.mubr.bf16.gmra.mxu0 %v2436
        %v2674 = vpop.f32.mrf.mxu0
        %v2675 = vadd.f32 0.0, %v2674
        %v2676 = vpop.f32.mrf.mxu0
        %v2677 = vadd.f32 0.0, %v2676
        %v2678 = vpop.f32.mrf.mxu0
        %v2679 = vpop.f32.mrf.mxu0
        %2680 = vdwg.mxu0
        %2681 = vmatprep.subr.bf16.mxu0 %v2605
        %2682 = vmatpush1.bf16.msra.mxu0 %v2604
        %2683 = vmatprep.subr.bf16.mxu0 %v2601
        %2684 = vmatpush1.bf16.msra.mxu0 %v2600
        %2685 = vmatprep.subr.bf16.mxu0 %v2597
        %2686 = vmatpush1.bf16.msra.mxu0 %v2596
        %2687 = vmatprep.subr.bf16.mxu0 %v2593
        %2688 = vmatpush1.bf16.msra.mxu0 %v2592
        %2689 = vmatprep.subr.bf16.mxu0 %v2589
        %2690 = vmatpush1.bf16.msra.mxu0 %v2588
        %2691 = vmatprep.subr.bf16.mxu0 %v2585
        %2692 = vmatpush1.bf16.msra.mxu0 %v2584
        %2693 = vmatprep.subr.bf16.mxu0 %v2581
        %2694 = vmatpush1.bf16.msra.mxu0 %v2580
        %2695 = vmatprep.subr.bf16.mxu0 %v2577
        %2696 = vmatpush1.bf16.msra.mxu0 %v2576
        %2697 = vmatprep.subr.bf16.mxu0 %v2637
        %2698 = vmatpush2.bf16.msra.mxu0 %v2636
        %2699 = vmatprep.subr.bf16.mxu0 %v2633
        %2700 = vmatpush2.bf16.msra.mxu0 %v2632
        %2701 = vmatprep.subr.bf16.mxu0 %v2629
        %2702 = vmatpush2.bf16.msra.mxu0 %v2628
        %2703 = vmatprep.subr.bf16.mxu0 %v2625
        %2704 = vmatpush2.bf16.msra.mxu0 %v2624
        %2705 = vmatprep.subr.bf16.mxu0 %v2621
        %2706 = vmatpush2.bf16.msra.mxu0 %v2620
        %2707 = vmatprep.subr.bf16.mxu0 %v2617
        %2708 = vmatpush2.bf16.msra.mxu0 %v2616
        %2709 = vmatprep.subr.bf16.mxu0 %v2613
        %2710 = vmatpush2.bf16.msra.mxu0 %v2612
        %2711 = vmatprep.subr.bf16.mxu0 %v2609
        %2712 = vmatpush2.bf16.msra.mxu0 %v2608
        %2713 = vmatprep.mubr.bf16.mxu0 %v2439
        %2714 = vmatmul.mubr.bf16.gmra.mxu0 %v2438
        %v2715 = vpop.f32.mrf.mxu0
        %v2716 = vadd.f32 %v2675, %v2715
        %v2717 = vpop.f32.mrf.mxu0
        %v2718 = vadd.f32 %v2677, %v2717
        %v2719 = vpop.f32.mrf.mxu0
        %v2720 = vpop.f32.mrf.mxu0
        %2721 = vdwg.mxu0
        %2722 = vmatprep.subr.bf16.mxu0 %v2543
        %2723 = vmatpush1.bf16.msra.mxu0 %v2542
        %2724 = vmatprep.subr.bf16.mxu0 %v2539
        %2725 = vmatpush1.bf16.msra.mxu0 %v2538
        %2726 = vmatprep.subr.bf16.mxu0 %v2535
        %2727 = vmatpush1.bf16.msra.mxu0 %v2534
        %2728 = vmatprep.subr.bf16.mxu0 %v2531
        %2729 = vmatpush1.bf16.msra.mxu0 %v2530
        %2730 = vmatprep.subr.bf16.mxu0 %v2527
        %2731 = vmatpush1.bf16.msra.mxu0 %v2526
        %2732 = vmatprep.subr.bf16.mxu0 %v2523
        %2733 = vmatpush1.bf16.msra.mxu0 %v2522
        %2734 = vmatprep.subr.bf16.mxu0 %v2519
        %2735 = vmatpush1.bf16.msra.mxu0 %v2518
        %2736 = vmatprep.subr.bf16.mxu0 %v2515
        %2737 = vmatpush1.bf16.msra.mxu0 %v2514
        %2738 = vmatprep.subr.bf16.mxu0 %v2575
        %2739 = vmatpush2.bf16.msra.mxu0 %v2574
        %2740 = vmatprep.subr.bf16.mxu0 %v2571
        %2741 = vmatpush2.bf16.msra.mxu0 %v2570
        %2742 = vmatprep.subr.bf16.mxu0 %v2567
        %2743 = vmatpush2.bf16.msra.mxu0 %v2566
        %2744 = vmatprep.subr.bf16.mxu0 %v2563
        %2745 = vmatpush2.bf16.msra.mxu0 %v2562
        %2746 = vmatprep.subr.bf16.mxu0 %v2559
        %2747 = vmatpush2.bf16.msra.mxu0 %v2558
        %2748 = vmatprep.subr.bf16.mxu0 %v2555
        %2749 = vmatpush2.bf16.msra.mxu0 %v2554
        %2750 = vmatprep.subr.bf16.mxu0 %v2551
        %2751 = vmatpush2.bf16.msra.mxu0 %v2550
        %2752 = vmatprep.subr.bf16.mxu0 %v2547
        %2753 = vmatpush2.bf16.msra.mxu0 %v2546
        %2754 = vmatprep.mubr.bf16.mxu0 %v2437
        %2755 = vmatmul.mubr.bf16.gmra.mxu0 %v2436
        %v2756 = vpop.f32.mrf.mxu0
        %v2757 = vadd.f32 0.0, %v2756
        %v2758 = vpop.f32.mrf.mxu0
        %v2759 = vadd.f32 0.0, %v2758
        %v2760 = vpop.f32.mrf.mxu0
        %v2761 = vpop.f32.mrf.mxu0
        %2762 = vdwg.mxu0
        %2763 = vmatprep.subr.bf16.mxu0 %v2607
        %2764 = vmatpush1.bf16.msra.mxu0 %v2606
        %2765 = vmatprep.subr.bf16.mxu0 %v2603
        %2766 = vmatpush1.bf16.msra.mxu0 %v2602
        %2767 = vmatprep.subr.bf16.mxu0 %v2599
        %2768 = vmatpush1.bf16.msra.mxu0 %v2598
        %2769 = vmatprep.subr.bf16.mxu0 %v2595
        %2770 = vmatpush1.bf16.msra.mxu0 %v2594
        %2771 = vmatprep.subr.bf16.mxu0 %v2591
        %2772 = vmatpush1.bf16.msra.mxu0 %v2590
        %2773 = vmatprep.subr.bf16.mxu0 %v2587
        %2774 = vmatpush1.bf16.msra.mxu0 %v2586
        %2775 = vmatprep.subr.bf16.mxu0 %v2583
        %2776 = vmatpush1.bf16.msra.mxu0 %v2582
        %2777 = vmatprep.subr.bf16.mxu0 %v2579
        %2778 = vmatpush1.bf16.msra.mxu0 %v2578
        %2779 = vmatprep.subr.bf16.mxu0 %v2639
        %2780 = vmatpush2.bf16.msra.mxu0 %v2638
        %2781 = vmatprep.subr.bf16.mxu0 %v2635
        %2782 = vmatpush2.bf16.msra.mxu0 %v2634
        %2783 = vmatprep.subr.bf16.mxu0 %v2631
        %2784 = vmatpush2.bf16.msra.mxu0 %v2630
        %2785 = vmatprep.subr.bf16.mxu0 %v2627
        %2786 = vmatpush2.bf16.msra.mxu0 %v2626
        %2787 = vmatprep.subr.bf16.mxu0 %v2623
        %2788 = vmatpush2.bf16.msra.mxu0 %v2622
        %2789 = vmatprep.subr.bf16.mxu0 %v2619
        %2790 = vmatpush2.bf16.msra.mxu0 %v2618
        %2791 = vmatprep.subr.bf16.mxu0 %v2615
        %2792 = vmatpush2.bf16.msra.mxu0 %v2614
        %2793 = vmatprep.subr.bf16.mxu0 %v2611
        %2794 = vmatpush2.bf16.msra.mxu0 %v2610
        %2795 = vmatprep.mubr.bf16.mxu0 %v2439
        %2796 = vmatmul.mubr.bf16.gmra.mxu0 %v2438
        %v2797 = vpop.f32.mrf.mxu0
        %v2798 = vadd.f32 %v2757, %v2797
        %v2799 = vpop.f32.mrf.mxu0
        %v2800 = vadd.f32 %v2759, %v2799
        %v2801 = vpop.f32.mrf.mxu0
        %v2802 = vpop.f32.mrf.mxu0
        %2803 = vdwg.mxu0
        %s2804 = scalar_lea.vmem %s543, 40 [#allocation13]
        %v2805 = vld [vmem:[%s2804] ss:$2 sm:$0xf]
        %s2806 = scalar_lea.vmem %s543, 41 [#allocation13]
        %v2807 = vld [vmem:[%s2806] ss:$2 sm:$0xf]
        %v2809 = vlaneseq
        %v2810 = vshrl.u32 %v2809, 7
        %v2811 = vsub.s32 0, %v2810
        %v2812 = vrot.slane %v2805, %v2811
        %v2813 = vlaneseq
        %v2814 = vshrl.u32 %v2813, 7
        %v2815 = vsub.s32 1, %v2814
        %v2816 = vrot.slane %v2805, %v2815
        %v2817 = vlaneseq
        %v2818 = vshrl.u32 %v2817, 7
        %v2819 = vsub.s32 2, %v2818
        %v2820 = vrot.slane %v2805, %v2819
        %v2821 = vlaneseq
        %v2822 = vshrl.u32 %v2821, 7
        %v2823 = vsub.s32 3, %v2822
        %v2824 = vrot.slane %v2805, %v2823
        %v2829 = vmul.f32 %v2716, %v2812
        %v2830 = vmul.f32 %v2718, %v2816
        %v2831 = vmul.f32 %v2798, %v2820
        %v2832 = vmul.f32 %v2800, %v2824
        %v2834 = vlaneseq
        %v2835 = vshrl.u32 %v2834, 7
        %v2836 = vsub.s32 0, %v2835
        %v2837 = vrot.slane %v2807, %v2836
        %v2838 = vlaneseq
        %v2839 = vshrl.u32 %v2838, 7
        %v2840 = vsub.s32 1, %v2839
        %v2841 = vrot.slane %v2807, %v2840
        %v2842 = vlaneseq
        %v2843 = vshrl.u32 %v2842, 7
        %v2844 = vsub.s32 2, %v2843
        %v2845 = vrot.slane %v2807, %v2844
        %v2846 = vlaneseq
        %v2847 = vshrl.u32 %v2846, 7
        %v2848 = vsub.s32 3, %v2847
        %v2849 = vrot.slane %v2807, %v2848
        %v2854 = vadd.f32 %v2829, %v2837
        %v2855 = vadd.f32 %v2830, %v2841
        %v2856 = vadd.f32 %v2831, %v2845
        %v2857 = vadd.f32 %v2832, %v2849
        %2858 = vst [vmem:[%s603] sm:$0xff] %v2854
        %2859 = vst [vmem:[%s603 + $0x8] sm:$0xff] %v2855
        %2860 = vst [vmem:[%s603 + $0x10] sm:$0xff] %v2856
        %2861 = vst [vmem:[%s603 + $0x18] sm:$0xff] %v2857
        %v2862 = vld [vmem:[%s534 + $0x20] sm:$0xff]
        %v2863 = vld [vmem:[%s534 + $0x28] sm:$0xff]
        %v2864 = vld [vmem:[%s534 + $0x30] sm:$0xff]
        %v2865 = vld [vmem:[%s534 + $0x38] sm:$0xff]
        %v2866 = vld [vmem:[%s534 + $0x80] sm:$0xff]
        %v2867 = vld [vmem:[%s534 + $0x88] sm:$0xff]
        %v2868 = vld [vmem:[%s534 + $0x90] sm:$0xff]
        %v2869 = vld [vmem:[%s534 + $0x98] sm:$0xff]
        %v2870 = vld [vmem:[%s534 + $0xe0] sm:$0xff]
        %v2871 = vld [vmem:[%s534 + $0xe8] sm:$0xff]
        %v2872 = vld [vmem:[%s534 + $0xf0] sm:$0xff]
        %v2873 = vld [vmem:[%s534 + $0xf8] sm:$0xff]
        %v2874 = vld [vmem:[%s534 + $0x140] sm:$0xff]
        %v2875 = vld [vmem:[%s534 + $0x148] sm:$0xff]
        %v2876 = vld [vmem:[%s534 + $0x150] sm:$0xff]
        %v2877 = vld [vmem:[%s534 + $0x158] sm:$0xff]
        %v2878 = vld [vmem:[%s534 + $0x1a0] sm:$0xff]
        %v2879 = vld [vmem:[%s534 + $0x1a8] sm:$0xff]
        %v2880 = vld [vmem:[%s534 + $0x1b0] sm:$0xff]
        %v2881 = vld [vmem:[%s534 + $0x1b8] sm:$0xff]
        %v2882 = vld [vmem:[%s534 + $0x200] sm:$0xff]
        %v2883 = vld [vmem:[%s534 + $0x208] sm:$0xff]
        %v2884 = vld [vmem:[%s534 + $0x210] sm:$0xff]
        %v2885 = vld [vmem:[%s534 + $0x218] sm:$0xff]
        %v2886 = vld [vmem:[%s534 + $0x260] sm:$0xff]
        %v2887 = vld [vmem:[%s534 + $0x268] sm:$0xff]
        %v2888 = vld [vmem:[%s534 + $0x270] sm:$0xff]
        %v2889 = vld [vmem:[%s534 + $0x278] sm:$0xff]
        %v2890 = vld [vmem:[%s534 + $0x2c0] sm:$0xff]
        %v2891 = vld [vmem:[%s534 + $0x2c8] sm:$0xff]
        %v2892 = vld [vmem:[%s534 + $0x2d0] sm:$0xff]
        %v2893 = vld [vmem:[%s534 + $0x2d8] sm:$0xff]
        %v2894 = vld [vmem:[%s534 + $0x320] sm:$0xff]
        %v2895 = vld [vmem:[%s534 + $0x328] sm:$0xff]
        %v2896 = vld [vmem:[%s534 + $0x330] sm:$0xff]
        %v2897 = vld [vmem:[%s534 + $0x338] sm:$0xff]
        %v2898 = vld [vmem:[%s534 + $0x380] sm:$0xff]
        %v2899 = vld [vmem:[%s534 + $0x388] sm:$0xff]
        %v2900 = vld [vmem:[%s534 + $0x390] sm:$0xff]
        %v2901 = vld [vmem:[%s534 + $0x398] sm:$0xff]
        %v2902 = vld [vmem:[%s534 + $0x3e0] sm:$0xff]
        %v2903 = vld [vmem:[%s534 + $0x3e8] sm:$0xff]
        %v2904 = vld [vmem:[%s534 + $0x3f0] sm:$0xff]
        %v2905 = vld [vmem:[%s534 + $0x3f8] sm:$0xff]
        %v2906 = vld [vmem:[%s534 + $0x440] sm:$0xff]
        %v2907 = vld [vmem:[%s534 + $0x448] sm:$0xff]
        %v2908 = vld [vmem:[%s534 + $0x450] sm:$0xff]
        %v2909 = vld [vmem:[%s534 + $0x458] sm:$0xff]
        %v2910 = vld [vmem:[%s534 + $0x4a0] sm:$0xff]
        %v2911 = vld [vmem:[%s534 + $0x4a8] sm:$0xff]
        %v2912 = vld [vmem:[%s534 + $0x4b0] sm:$0xff]
        %v2913 = vld [vmem:[%s534 + $0x4b8] sm:$0xff]
        %v2914 = vld [vmem:[%s534 + $0x500] sm:$0xff]
        %v2915 = vld [vmem:[%s534 + $0x508] sm:$0xff]
        %v2916 = vld [vmem:[%s534 + $0x510] sm:$0xff]
        %v2917 = vld [vmem:[%s534 + $0x518] sm:$0xff]
        %v2918 = vld [vmem:[%s534 + $0x560] sm:$0xff]
        %v2919 = vld [vmem:[%s534 + $0x568] sm:$0xff]
        %v2920 = vld [vmem:[%s534 + $0x570] sm:$0xff]
        %v2921 = vld [vmem:[%s534 + $0x578] sm:$0xff]
        %v2922 = vld [vmem:[%s534 + $0x5c0] sm:$0xff]
        %v2923 = vld [vmem:[%s534 + $0x5c8] sm:$0xff]
        %v2924 = vld [vmem:[%s534 + $0x5d0] sm:$0xff]
        %v2925 = vld [vmem:[%s534 + $0x5d8] sm:$0xff]
        %v2926 = vunpack.c.l.s8.bf16 %v2862
        %v2927 = vunpack.c.l.s8.bf16 %v2863
        %v2928 = vunpack.c.l.s8.bf16 %v2864
        %v2929 = vunpack.c.l.s8.bf16 %v2865
        %v2930 = vunpack.c.h.s8.bf16 %v2862
        %v2931 = vunpack.c.h.s8.bf16 %v2863
        %v2932 = vunpack.c.h.s8.bf16 %v2864
        %v2933 = vunpack.c.h.s8.bf16 %v2865
        %v2934 = vunpack.c.l.s8.bf16 %v2866
        %v2935 = vunpack.c.l.s8.bf16 %v2867
        %v2936 = vunpack.c.l.s8.bf16 %v2868
        %v2937 = vunpack.c.l.s8.bf16 %v2869
        %v2938 = vunpack.c.h.s8.bf16 %v2866
        %v2939 = vunpack.c.h.s8.bf16 %v2867
        %v2940 = vunpack.c.h.s8.bf16 %v2868
        %v2941 = vunpack.c.h.s8.bf16 %v2869
        %v2942 = vunpack.c.l.s8.bf16 %v2870
        %v2943 = vunpack.c.l.s8.bf16 %v2871
        %v2944 = vunpack.c.l.s8.bf16 %v2872
        %v2945 = vunpack.c.l.s8.bf16 %v2873
        %v2946 = vunpack.c.h.s8.bf16 %v2870
        %v2947 = vunpack.c.h.s8.bf16 %v2871
        %v2948 = vunpack.c.h.s8.bf16 %v2872
        %v2949 = vunpack.c.h.s8.bf16 %v2873
        %v2950 = vunpack.c.l.s8.bf16 %v2874
        %v2951 = vunpack.c.l.s8.bf16 %v2875
        %v2952 = vunpack.c.l.s8.bf16 %v2876
        %v2953 = vunpack.c.l.s8.bf16 %v2877
        %v2954 = vunpack.c.h.s8.bf16 %v2874
        %v2955 = vunpack.c.h.s8.bf16 %v2875
        %v2956 = vunpack.c.h.s8.bf16 %v2876
        %v2957 = vunpack.c.h.s8.bf16 %v2877
        %v2958 = vunpack.c.l.s8.bf16 %v2878
        %v2959 = vunpack.c.l.s8.bf16 %v2879
        %v2960 = vunpack.c.l.s8.bf16 %v2880
        %v2961 = vunpack.c.l.s8.bf16 %v2881
        %v2962 = vunpack.c.h.s8.bf16 %v2878
        %v2963 = vunpack.c.h.s8.bf16 %v2879
        %v2964 = vunpack.c.h.s8.bf16 %v2880
        %v2965 = vunpack.c.h.s8.bf16 %v2881
        %v2966 = vunpack.c.l.s8.bf16 %v2882
        %v2967 = vunpack.c.l.s8.bf16 %v2883
        %v2968 = vunpack.c.l.s8.bf16 %v2884
        %v2969 = vunpack.c.l.s8.bf16 %v2885
        %v2970 = vunpack.c.h.s8.bf16 %v2882
        %v2971 = vunpack.c.h.s8.bf16 %v2883
        %v2972 = vunpack.c.h.s8.bf16 %v2884
        %v2973 = vunpack.c.h.s8.bf16 %v2885
        %v2974 = vunpack.c.l.s8.bf16 %v2886
        %v2975 = vunpack.c.l.s8.bf16 %v2887
        %v2976 = vunpack.c.l.s8.bf16 %v2888
        %v2977 = vunpack.c.l.s8.bf16 %v2889
        %v2978 = vunpack.c.h.s8.bf16 %v2886
        %v2979 = vunpack.c.h.s8.bf16 %v2887
        %v2980 = vunpack.c.h.s8.bf16 %v2888
        %v2981 = vunpack.c.h.s8.bf16 %v2889
        %v2982 = vunpack.c.l.s8.bf16 %v2890
        %v2983 = vunpack.c.l.s8.bf16 %v2891
        %v2984 = vunpack.c.l.s8.bf16 %v2892
        %v2985 = vunpack.c.l.s8.bf16 %v2893
        %v2986 = vunpack.c.h.s8.bf16 %v2890
        %v2987 = vunpack.c.h.s8.bf16 %v2891
        %v2988 = vunpack.c.h.s8.bf16 %v2892
        %v2989 = vunpack.c.h.s8.bf16 %v2893
        %v2990 = vunpack.c.l.s8.bf16 %v2894
        %v2991 = vunpack.c.l.s8.bf16 %v2895
        %v2992 = vunpack.c.l.s8.bf16 %v2896
        %v2993 = vunpack.c.l.s8.bf16 %v2897
        %v2994 = vunpack.c.h.s8.bf16 %v2894
        %v2995 = vunpack.c.h.s8.bf16 %v2895
        %v2996 = vunpack.c.h.s8.bf16 %v2896
        %v2997 = vunpack.c.h.s8.bf16 %v2897
        %v2998 = vunpack.c.l.s8.bf16 %v2898
        %v2999 = vunpack.c.l.s8.bf16 %v2899
        %v3000 = vunpack.c.l.s8.bf16 %v2900
        %v3001 = vunpack.c.l.s8.bf16 %v2901
        %v3002 = vunpack.c.h.s8.bf16 %v2898
        %v3003 = vunpack.c.h.s8.bf16 %v2899
        %v3004 = vunpack.c.h.s8.bf16 %v2900
        %v3005 = vunpack.c.h.s8.bf16 %v2901
        %v3006 = vunpack.c.l.s8.bf16 %v2902
        %v3007 = vunpack.c.l.s8.bf16 %v2903
        %v3008 = vunpack.c.l.s8.bf16 %v2904
        %v3009 = vunpack.c.l.s8.bf16 %v2905
        %v3010 = vunpack.c.h.s8.bf16 %v2902
        %v3011 = vunpack.c.h.s8.bf16 %v2903
        %v3012 = vunpack.c.h.s8.bf16 %v2904
        %v3013 = vunpack.c.h.s8.bf16 %v2905
        %v3014 = vunpack.c.l.s8.bf16 %v2906
        %v3015 = vunpack.c.l.s8.bf16 %v2907
        %v3016 = vunpack.c.l.s8.bf16 %v2908
        %v3017 = vunpack.c.l.s8.bf16 %v2909
        %v3018 = vunpack.c.h.s8.bf16 %v2906
        %v3019 = vunpack.c.h.s8.bf16 %v2907
        %v3020 = vunpack.c.h.s8.bf16 %v2908
        %v3021 = vunpack.c.h.s8.bf16 %v2909
        %v3022 = vunpack.c.l.s8.bf16 %v2910
        %v3023 = vunpack.c.l.s8.bf16 %v2911
        %v3024 = vunpack.c.l.s8.bf16 %v2912
        %v3025 = vunpack.c.l.s8.bf16 %v2913
        %v3026 = vunpack.c.h.s8.bf16 %v2910
        %v3027 = vunpack.c.h.s8.bf16 %v2911
        %v3028 = vunpack.c.h.s8.bf16 %v2912
        %v3029 = vunpack.c.h.s8.bf16 %v2913
        %v3030 = vunpack.c.l.s8.bf16 %v2914
        %v3031 = vunpack.c.l.s8.bf16 %v2915
        %v3032 = vunpack.c.l.s8.bf16 %v2916
        %v3033 = vunpack.c.l.s8.bf16 %v2917
        %v3034 = vunpack.c.h.s8.bf16 %v2914
        %v3035 = vunpack.c.h.s8.bf16 %v2915
        %v3036 = vunpack.c.h.s8.bf16 %v2916
        %v3037 = vunpack.c.h.s8.bf16 %v2917
        %v3038 = vunpack.c.l.s8.bf16 %v2918
        %v3039 = vunpack.c.l.s8.bf16 %v2919
        %v3040 = vunpack.c.l.s8.bf16 %v2920
        %v3041 = vunpack.c.l.s8.bf16 %v2921
        %v3042 = vunpack.c.h.s8.bf16 %v2918
        %v3043 = vunpack.c.h.s8.bf16 %v2919
        %v3044 = vunpack.c.h.s8.bf16 %v2920
        %v3045 = vunpack.c.h.s8.bf16 %v2921
        %v3046 = vunpack.c.l.s8.bf16 %v2922
        %v3047 = vunpack.c.l.s8.bf16 %v2923
        %v3048 = vunpack.c.l.s8.bf16 %v2924
        %v3049 = vunpack.c.l.s8.bf16 %v2925
        %v3050 = vunpack.c.h.s8.bf16 %v2922
        %v3051 = vunpack.c.h.s8.bf16 %v2923
        %v3052 = vunpack.c.h.s8.bf16 %v2924
        %v3053 = vunpack.c.h.s8.bf16 %v2925
        %3054 = vmatprep.subr.bf16.mxu0 %v2955
        %3055 = vmatpush1.bf16.msra.mxu0 %v2954
        %3056 = vmatprep.subr.bf16.mxu0 %v2951
        %3057 = vmatpush1.bf16.msra.mxu0 %v2950
        %3058 = vmatprep.subr.bf16.mxu0 %v2947
        %3059 = vmatpush1.bf16.msra.mxu0 %v2946
        %3060 = vmatprep.subr.bf16.mxu0 %v2943
        %3061 = vmatpush1.bf16.msra.mxu0 %v2942
        %3062 = vmatprep.subr.bf16.mxu0 %v2939
        %3063 = vmatpush1.bf16.msra.mxu0 %v2938
        %3064 = vmatprep.subr.bf16.mxu0 %v2935
        %3065 = vmatpush1.bf16.msra.mxu0 %v2934
        %3066 = vmatprep.subr.bf16.mxu0 %v2931
        %3067 = vmatpush1.bf16.msra.mxu0 %v2930
        %3068 = vmatprep.subr.bf16.mxu0 %v2927
        %3069 = vmatpush1.bf16.msra.mxu0 %v2926
        %3070 = vmatprep.subr.bf16.mxu0 %v2987
        %3071 = vmatpush2.bf16.msra.mxu0 %v2986
        %3072 = vmatprep.subr.bf16.mxu0 %v2983
        %3073 = vmatpush2.bf16.msra.mxu0 %v2982
        %3074 = vmatprep.subr.bf16.mxu0 %v2979
        %3075 = vmatpush2.bf16.msra.mxu0 %v2978
        %3076 = vmatprep.subr.bf16.mxu0 %v2975
        %3077 = vmatpush2.bf16.msra.mxu0 %v2974
        %3078 = vmatprep.subr.bf16.mxu0 %v2971
        %3079 = vmatpush2.bf16.msra.mxu0 %v2970
        %3080 = vmatprep.subr.bf16.mxu0 %v2967
        %3081 = vmatpush2.bf16.msra.mxu0 %v2966
        %3082 = vmatprep.subr.bf16.mxu0 %v2963
        %3083 = vmatpush2.bf16.msra.mxu0 %v2962
        %3084 = vmatprep.subr.bf16.mxu0 %v2959
        %3085 = vmatpush2.bf16.msra.mxu0 %v2958
        %3086 = vmatprep.mubr.bf16.mxu0 %v2441
        %3087 = vmatmul.mubr.bf16.gmra.mxu0 %v2440
        %v3088 = vpop.f32.mrf.mxu0
        %v3089 = vadd.f32 0.0, %v3088
        %v3090 = vpop.f32.mrf.mxu0
        %v3091 = vadd.f32 0.0, %v3090
        %v3092 = vpop.f32.mrf.mxu0
        %v3093 = vpop.f32.mrf.mxu0
        %3094 = vdwg.mxu0
        %3095 = vmatprep.subr.bf16.mxu0 %v3019
        %3096 = vmatpush1.bf16.msra.mxu0 %v3018
        %3097 = vmatprep.subr.bf16.mxu0 %v3015
        %3098 = vmatpush1.bf16.msra.mxu0 %v3014
        %3099 = vmatprep.subr.bf16.mxu0 %v3011
        %3100 = vmatpush1.bf16.msra.mxu0 %v3010
        %3101 = vmatprep.subr.bf16.mxu0 %v3007
        %3102 = vmatpush1.bf16.msra.mxu0 %v3006
        %3103 = vmatprep.subr.bf16.mxu0 %v3003
        %3104 = vmatpush1.bf16.msra.mxu0 %v3002
        %3105 = vmatprep.subr.bf16.mxu0 %v2999
        %3106 = vmatpush1.bf16.msra.mxu0 %v2998
        %3107 = vmatprep.subr.bf16.mxu0 %v2995
        %3108 = vmatpush1.bf16.msra.mxu0 %v2994
        %3109 = vmatprep.subr.bf16.mxu0 %v2991
        %3110 = vmatpush1.bf16.msra.mxu0 %v2990
        %3111 = vmatprep.subr.bf16.mxu0 %v3051
        %3112 = vmatpush2.bf16.msra.mxu0 %v3050
        %3113 = vmatprep.subr.bf16.mxu0 %v3047
        %3114 = vmatpush2.bf16.msra.mxu0 %v3046
        %3115 = vmatprep.subr.bf16.mxu0 %v3043
        %3116 = vmatpush2.bf16.msra.mxu0 %v3042
        %3117 = vmatprep.subr.bf16.mxu0 %v3039
        %3118 = vmatpush2.bf16.msra.mxu0 %v3038
        %3119 = vmatprep.subr.bf16.mxu0 %v3035
        %3120 = vmatpush2.bf16.msra.mxu0 %v3034
        %3121 = vmatprep.subr.bf16.mxu0 %v3031
        %3122 = vmatpush2.bf16.msra.mxu0 %v3030
        %3123 = vmatprep.subr.bf16.mxu0 %v3027
        %3124 = vmatpush2.bf16.msra.mxu0 %v3026
        %3125 = vmatprep.subr.bf16.mxu0 %v3023
        %3126 = vmatpush2.bf16.msra.mxu0 %v3022
        %3127 = vmatprep.mubr.bf16.mxu0 %v2443
        %3128 = vmatmul.mubr.bf16.gmra.mxu0 %v2442
        %v3129 = vpop.f32.mrf.mxu0
        %v3130 = vadd.f32 %v3089, %v3129
        %v3131 = vpop.f32.mrf.mxu0
        %v3132 = vadd.f32 %v3091, %v3131
        %v3133 = vpop.f32.mrf.mxu0
        %v3134 = vpop.f32.mrf.mxu0
        %3135 = vdwg.mxu0
        %3136 = vmatprep.subr.bf16.mxu0 %v2957
        %3137 = vmatpush1.bf16.msra.mxu0 %v2956
        %3138 = vmatprep.subr.bf16.mxu0 %v2953
        %3139 = vmatpush1.bf16.msra.mxu0 %v2952
        %3140 = vmatprep.subr.bf16.mxu0 %v2949
        %3141 = vmatpush1.bf16.msra.mxu0 %v2948
        %3142 = vmatprep.subr.bf16.mxu0 %v2945
        %3143 = vmatpush1.bf16.msra.mxu0 %v2944
        %3144 = vmatprep.subr.bf16.mxu0 %v2941
        %3145 = vmatpush1.bf16.msra.mxu0 %v2940
        %3146 = vmatprep.subr.bf16.mxu0 %v2937
        %3147 = vmatpush1.bf16.msra.mxu0 %v2936
        %3148 = vmatprep.subr.bf16.mxu0 %v2933
        %3149 = vmatpush1.bf16.msra.mxu0 %v2932
        %3150 = vmatprep.subr.bf16.mxu0 %v2929
        %3151 = vmatpush1.bf16.msra.mxu0 %v2928
        %3152 = vmatprep.subr.bf16.mxu0 %v2989
        %3153 = vmatpush2.bf16.msra.mxu0 %v2988
        %3154 = vmatprep.subr.bf16.mxu0 %v2985
        %3155 = vmatpush2.bf16.msra.mxu0 %v2984
        %3156 = vmatprep.subr.bf16.mxu0 %v2981
        %3157 = vmatpush2.bf16.msra.mxu0 %v2980
        %3158 = vmatprep.subr.bf16.mxu0 %v2977
        %3159 = vmatpush2.bf16.msra.mxu0 %v2976
        %3160 = vmatprep.subr.bf16.mxu0 %v2973
        %3161 = vmatpush2.bf16.msra.mxu0 %v2972
        %3162 = vmatprep.subr.bf16.mxu0 %v2969
        %3163 = vmatpush2.bf16.msra.mxu0 %v2968
        %3164 = vmatprep.subr.bf16.mxu0 %v2965
        %3165 = vmatpush2.bf16.msra.mxu0 %v2964
        %3166 = vmatprep.subr.bf16.mxu0 %v2961
        %3167 = vmatpush2.bf16.msra.mxu0 %v2960
        %3168 = vmatprep.mubr.bf16.mxu0 %v2441
        %3169 = vmatmul.mubr.bf16.gmra.mxu0 %v2440
        %v3170 = vpop.f32.mrf.mxu0
        %v3171 = vadd.f32 0.0, %v3170
        %v3172 = vpop.f32.mrf.mxu0
        %v3173 = vadd.f32 0.0, %v3172
        %v3174 = vpop.f32.mrf.mxu0
        %v3175 = vpop.f32.mrf.mxu0
        %3176 = vdwg.mxu0
        %3177 = vmatprep.subr.bf16.mxu0 %v3021
        %3178 = vmatpush1.bf16.msra.mxu0 %v3020
        %3179 = vmatprep.subr.bf16.mxu0 %v3017
        %3180 = vmatpush1.bf16.msra.mxu0 %v3016
        %3181 = vmatprep.subr.bf16.mxu0 %v3013
        %3182 = vmatpush1.bf16.msra.mxu0 %v3012
        %3183 = vmatprep.subr.bf16.mxu0 %v3009
        %3184 = vmatpush1.bf16.msra.mxu0 %v3008
        %3185 = vmatprep.subr.bf16.mxu0 %v3005
        %3186 = vmatpush1.bf16.msra.mxu0 %v3004
        %3187 = vmatprep.subr.bf16.mxu0 %v3001
        %3188 = vmatpush1.bf16.msra.mxu0 %v3000
        %3189 = vmatprep.subr.bf16.mxu0 %v2997
        %3190 = vmatpush1.bf16.msra.mxu0 %v2996
        %3191 = vmatprep.subr.bf16.mxu0 %v2993
        %3192 = vmatpush1.bf16.msra.mxu0 %v2992
        %3193 = vmatprep.subr.bf16.mxu0 %v3053
        %3194 = vmatpush2.bf16.msra.mxu0 %v3052
        %3195 = vmatprep.subr.bf16.mxu0 %v3049
        %3196 = vmatpush2.bf16.msra.mxu0 %v3048
        %3197 = vmatprep.subr.bf16.mxu0 %v3045
        %3198 = vmatpush2.bf16.msra.mxu0 %v3044
        %3199 = vmatprep.subr.bf16.mxu0 %v3041
        %3200 = vmatpush2.bf16.msra.mxu0 %v3040
        %3201 = vmatprep.subr.bf16.mxu0 %v3037
        %3202 = vmatpush2.bf16.msra.mxu0 %v3036
        %3203 = vmatprep.subr.bf16.mxu0 %v3033
        %3204 = vmatpush2.bf16.msra.mxu0 %v3032
        %3205 = vmatprep.subr.bf16.mxu0 %v3029
        %3206 = vmatpush2.bf16.msra.mxu0 %v3028
        %3207 = vmatprep.subr.bf16.mxu0 %v3025
        %3208 = vmatpush2.bf16.msra.mxu0 %v3024
        %3209 = vmatprep.mubr.bf16.mxu0 %v2443
        %3210 = vmatmul.mubr.bf16.gmra.mxu0 %v2442
        %v3211 = vpop.f32.mrf.mxu0
        %v3212 = vadd.f32 %v3171, %v3211
        %v3213 = vpop.f32.mrf.mxu0
        %v3214 = vadd.f32 %v3173, %v3213
        %v3215 = vpop.f32.mrf.mxu0
        %v3216 = vpop.f32.mrf.mxu0
        %3217 = vdwg.mxu0
        %s3218 = scalar_lea.vmem %s543, 48 [#allocation13]
        %v3219 = vld [vmem:[%s3218] ss:$2 sm:$0xf]
        %s3220 = scalar_lea.vmem %s543, 49 [#allocation13]
        %v3221 = vld [vmem:[%s3220] ss:$2 sm:$0xf]
        %v3223 = vlaneseq
        %v3224 = vshrl.u32 %v3223, 7
        %v3225 = vsub.s32 0, %v3224
        %v3226 = vrot.slane %v3219, %v3225
        %v3227 = vlaneseq
        %v3228 = vshrl.u32 %v3227, 7
        %v3229 = vsub.s32 1, %v3228
        %v3230 = vrot.slane %v3219, %v3229
        %v3231 = vlaneseq
        %v3232 = vshrl.u32 %v3231, 7
        %v3233 = vsub.s32 2, %v3232
        %v3234 = vrot.slane %v3219, %v3233
        %v3235 = vlaneseq
        %v3236 = vshrl.u32 %v3235, 7
        %v3237 = vsub.s32 3, %v3236
        %v3238 = vrot.slane %v3219, %v3237
        %v3243 = vmul.f32 %v3130, %v3226
        %v3244 = vmul.f32 %v3132, %v3230
        %v3245 = vmul.f32 %v3212, %v3234
        %v3246 = vmul.f32 %v3214, %v3238
        %v3248 = vlaneseq
        %v3249 = vshrl.u32 %v3248, 7
        %v3250 = vsub.s32 0, %v3249
        %v3251 = vrot.slane %v3221, %v3250
        %v3252 = vlaneseq
        %v3253 = vshrl.u32 %v3252, 7
        %v3254 = vsub.s32 1, %v3253
        %v3255 = vrot.slane %v3221, %v3254
        %v3256 = vlaneseq
        %v3257 = vshrl.u32 %v3256, 7
        %v3258 = vsub.s32 2, %v3257
        %v3259 = vrot.slane %v3221, %v3258
        %v3260 = vlaneseq
        %v3261 = vshrl.u32 %v3260, 7
        %v3262 = vsub.s32 3, %v3261
        %v3263 = vrot.slane %v3221, %v3262
        %v3268 = vadd.f32 %v3243, %v3251
        %v3269 = vadd.f32 %v3244, %v3255
        %v3270 = vadd.f32 %v3245, %v3259
        %v3271 = vadd.f32 %v3246, %v3263
        %v3272 = vmax.f32 %v3268, 0.0
        %v3273 = vmax.f32 %v3269, 0.0
        %v3274 = vmax.f32 %v3270, 0.0
        %v3275 = vmax.f32 %v3271, 0.0
        %3276 = vst [vmem:[%s610] sm:$0xff] %v3272
        %3277 = vst [vmem:[%s610 + $0x8] sm:$0xff] %v3273
        %3278 = vst [vmem:[%s610 + $0x10] sm:$0xff] %v3274
        %3279 = vst [vmem:[%s610 + $0x18] sm:$0xff] %v3275
        %v3280 = vld [vmem:[%s534 + $0x40] sm:$0xff]
        %v3281 = vld [vmem:[%s534 + $0x48] sm:$0xff]
        %v3282 = vld [vmem:[%s534 + $0x50] sm:$0xff]
        %v3283 = vld [vmem:[%s534 + $0x58] sm:$0xff]
        %v3284 = vld [vmem:[%s534 + $0xa0] sm:$0xff]
        %v3285 = vld [vmem:[%s534 + $0xa8] sm:$0xff]
        %v3286 = vld [vmem:[%s534 + $0xb0] sm:$0xff]
        %v3287 = vld [vmem:[%s534 + $0xb8] sm:$0xff]
        %v3288 = vld [vmem:[%s534 + $0x100] sm:$0xff]
        %v3289 = vld [vmem:[%s534 + $0x108] sm:$0xff]
        %v3290 = vld [vmem:[%s534 + $0x110] sm:$0xff]
        %v3291 = vld [vmem:[%s534 + $0x118] sm:$0xff]
        %v3292 = vld [vmem:[%s534 + $0x160] sm:$0xff]
        %v3293 = vld [vmem:[%s534 + $0x168] sm:$0xff]
        %v3294 = vld [vmem:[%s534 + $0x170] sm:$0xff]
        %v3295 = vld [vmem:[%s534 + $0x178] sm:$0xff]
        %v3296 = vld [vmem:[%s534 + $0x1c0] sm:$0xff]
        %v3297 = vld [vmem:[%s534 + $0x1c8] sm:$0xff]
        %v3298 = vld [vmem:[%s534 + $0x1d0] sm:$0xff]
        %v3299 = vld [vmem:[%s534 + $0x1d8] sm:$0xff]
        %v3300 = vld [vmem:[%s534 + $0x220] sm:$0xff]
        %v3301 = vld [vmem:[%s534 + $0x228] sm:$0xff]
        %v3302 = vld [vmem:[%s534 + $0x230] sm:$0xff]
        %v3303 = vld [vmem:[%s534 + $0x238] sm:$0xff]
        %v3304 = vld [vmem:[%s534 + $0x280] sm:$0xff]
        %v3305 = vld [vmem:[%s534 + $0x288] sm:$0xff]
        %v3306 = vld [vmem:[%s534 + $0x290] sm:$0xff]
        %v3307 = vld [vmem:[%s534 + $0x298] sm:$0xff]
        %v3308 = vld [vmem:[%s534 + $0x2e0] sm:$0xff]
        %v3309 = vld [vmem:[%s534 + $0x2e8] sm:$0xff]
        %v3310 = vld [vmem:[%s534 + $0x2f0] sm:$0xff]
        %v3311 = vld [vmem:[%s534 + $0x2f8] sm:$0xff]
        %v3312 = vld [vmem:[%s534 + $0x340] sm:$0xff]
        %v3313 = vld [vmem:[%s534 + $0x348] sm:$0xff]
        %v3314 = vld [vmem:[%s534 + $0x350] sm:$0xff]
        %v3315 = vld [vmem:[%s534 + $0x358] sm:$0xff]
        %v3316 = vld [vmem:[%s534 + $0x3a0] sm:$0xff]
        %v3317 = vld [vmem:[%s534 + $0x3a8] sm:$0xff]
        %v3318 = vld [vmem:[%s534 + $0x3b0] sm:$0xff]
        %v3319 = vld [vmem:[%s534 + $0x3b8] sm:$0xff]
        %v3320 = vld [vmem:[%s534 + $0x400] sm:$0xff]
        %v3321 = vld [vmem:[%s534 + $0x408] sm:$0xff]
        %v3322 = vld [vmem:[%s534 + $0x410] sm:$0xff]
        %v3323 = vld [vmem:[%s534 + $0x418] sm:$0xff]
        %v3324 = vld [vmem:[%s534 + $0x460] sm:$0xff]
        %v3325 = vld [vmem:[%s534 + $0x468] sm:$0xff]
        %v3326 = vld [vmem:[%s534 + $0x470] sm:$0xff]
        %v3327 = vld [vmem:[%s534 + $0x478] sm:$0xff]
        %v3328 = vld [vmem:[%s534 + $0x4c0] sm:$0xff]
        %v3329 = vld [vmem:[%s534 + $0x4c8] sm:$0xff]
        %v3330 = vld [vmem:[%s534 + $0x4d0] sm:$0xff]
        %v3331 = vld [vmem:[%s534 + $0x4d8] sm:$0xff]
        %v3332 = vld [vmem:[%s534 + $0x520] sm:$0xff]
        %v3333 = vld [vmem:[%s534 + $0x528] sm:$0xff]
        %v3334 = vld [vmem:[%s534 + $0x530] sm:$0xff]
        %v3335 = vld [vmem:[%s534 + $0x538] sm:$0xff]
        %v3336 = vld [vmem:[%s534 + $0x580] sm:$0xff]
        %v3337 = vld [vmem:[%s534 + $0x588] sm:$0xff]
        %v3338 = vld [vmem:[%s534 + $0x590] sm:$0xff]
        %v3339 = vld [vmem:[%s534 + $0x598] sm:$0xff]
        %v3340 = vld [vmem:[%s534 + $0x5e0] sm:$0xff]
        %v3341 = vld [vmem:[%s534 + $0x5e8] sm:$0xff]
        %v3342 = vld [vmem:[%s534 + $0x5f0] sm:$0xff]
        %v3343 = vld [vmem:[%s534 + $0x5f8] sm:$0xff]
        %v3344 = vunpack.c.l.s8.bf16 %v3280
        %v3345 = vunpack.c.l.s8.bf16 %v3281
        %v3346 = vunpack.c.l.s8.bf16 %v3282
        %v3347 = vunpack.c.l.s8.bf16 %v3283
        %v3348 = vunpack.c.h.s8.bf16 %v3280
        %v3349 = vunpack.c.h.s8.bf16 %v3281
        %v3350 = vunpack.c.h.s8.bf16 %v3282
        %v3351 = vunpack.c.h.s8.bf16 %v3283
        %v3352 = vunpack.c.l.s8.bf16 %v3284
        %v3353 = vunpack.c.l.s8.bf16 %v3285
        %v3354 = vunpack.c.l.s8.bf16 %v3286
        %v3355 = vunpack.c.l.s8.bf16 %v3287
        %v3356 = vunpack.c.h.s8.bf16 %v3284
        %v3357 = vunpack.c.h.s8.bf16 %v3285
        %v3358 = vunpack.c.h.s8.bf16 %v3286
        %v3359 = vunpack.c.h.s8.bf16 %v3287
        %v3360 = vunpack.c.l.s8.bf16 %v3288
        %v3361 = vunpack.c.l.s8.bf16 %v3289
        %v3362 = vunpack.c.l.s8.bf16 %v3290
        %v3363 = vunpack.c.l.s8.bf16 %v3291
        %v3364 = vunpack.c.h.s8.bf16 %v3288
        %v3365 = vunpack.c.h.s8.bf16 %v3289
        %v3366 = vunpack.c.h.s8.bf16 %v3290
        %v3367 = vunpack.c.h.s8.bf16 %v3291
        %v3368 = vunpack.c.l.s8.bf16 %v3292
        %v3369 = vunpack.c.l.s8.bf16 %v3293
        %v3370 = vunpack.c.l.s8.bf16 %v3294
        %v3371 = vunpack.c.l.s8.bf16 %v3295
        %v3372 = vunpack.c.h.s8.bf16 %v3292
        %v3373 = vunpack.c.h.s8.bf16 %v3293
        %v3374 = vunpack.c.h.s8.bf16 %v3294
        %v3375 = vunpack.c.h.s8.bf16 %v3295
        %v3376 = vunpack.c.l.s8.bf16 %v3296
        %v3377 = vunpack.c.l.s8.bf16 %v3297
        %v3378 = vunpack.c.l.s8.bf16 %v3298
        %v3379 = vunpack.c.l.s8.bf16 %v3299
        %v3380 = vunpack.c.h.s8.bf16 %v3296
        %v3381 = vunpack.c.h.s8.bf16 %v3297
        %v3382 = vunpack.c.h.s8.bf16 %v3298
        %v3383 = vunpack.c.h.s8.bf16 %v3299
        %v3384 = vunpack.c.l.s8.bf16 %v3300
        %v3385 = vunpack.c.l.s8.bf16 %v3301
        %v3386 = vunpack.c.l.s8.bf16 %v3302
        %v3387 = vunpack.c.l.s8.bf16 %v3303
        %v3388 = vunpack.c.h.s8.bf16 %v3300
        %v3389 = vunpack.c.h.s8.bf16 %v3301
        %v3390 = vunpack.c.h.s8.bf16 %v3302
        %v3391 = vunpack.c.h.s8.bf16 %v3303
        %v3392 = vunpack.c.l.s8.bf16 %v3304
        %v3393 = vunpack.c.l.s8.bf16 %v3305
        %v3394 = vunpack.c.l.s8.bf16 %v3306
        %v3395 = vunpack.c.l.s8.bf16 %v3307
        %v3396 = vunpack.c.h.s8.bf16 %v3304
        %v3397 = vunpack.c.h.s8.bf16 %v3305
        %v3398 = vunpack.c.h.s8.bf16 %v3306
        %v3399 = vunpack.c.h.s8.bf16 %v3307
        %v3400 = vunpack.c.l.s8.bf16 %v3308
        %v3401 = vunpack.c.l.s8.bf16 %v3309
        %v3402 = vunpack.c.l.s8.bf16 %v3310
        %v3403 = vunpack.c.l.s8.bf16 %v3311
        %v3404 = vunpack.c.h.s8.bf16 %v3308
        %v3405 = vunpack.c.h.s8.bf16 %v3309
        %v3406 = vunpack.c.h.s8.bf16 %v3310
        %v3407 = vunpack.c.h.s8.bf16 %v3311
        %v3408 = vunpack.c.l.s8.bf16 %v3312
        %v3409 = vunpack.c.l.s8.bf16 %v3313
        %v3410 = vunpack.c.l.s8.bf16 %v3314
        %v3411 = vunpack.c.l.s8.bf16 %v3315
        %v3412 = vunpack.c.h.s8.bf16 %v3312
        %v3413 = vunpack.c.h.s8.bf16 %v3313
        %v3414 = vunpack.c.h.s8.bf16 %v3314
        %v3415 = vunpack.c.h.s8.bf16 %v3315
        %v3416 = vunpack.c.l.s8.bf16 %v3316
        %v3417 = vunpack.c.l.s8.bf16 %v3317
        %v3418 = vunpack.c.l.s8.bf16 %v3318
        %v3419 = vunpack.c.l.s8.bf16 %v3319
        %v3420 = vunpack.c.h.s8.bf16 %v3316
        %v3421 = vunpack.c.h.s8.bf16 %v3317
        %v3422 = vunpack.c.h.s8.bf16 %v3318
        %v3423 = vunpack.c.h.s8.bf16 %v3319
        %v3424 = vunpack.c.l.s8.bf16 %v3320
        %v3425 = vunpack.c.l.s8.bf16 %v3321
        %v3426 = vunpack.c.l.s8.bf16 %v3322
        %v3427 = vunpack.c.l.s8.bf16 %v3323
        %v3428 = vunpack.c.h.s8.bf16 %v3320
        %v3429 = vunpack.c.h.s8.bf16 %v3321
        %v3430 = vunpack.c.h.s8.bf16 %v3322
        %v3431 = vunpack.c.h.s8.bf16 %v3323
        %v3432 = vunpack.c.l.s8.bf16 %v3324
        %v3433 = vunpack.c.l.s8.bf16 %v3325
        %v3434 = vunpack.c.l.s8.bf16 %v3326
        %v3435 = vunpack.c.l.s8.bf16 %v3327
        %v3436 = vunpack.c.h.s8.bf16 %v3324
        %v3437 = vunpack.c.h.s8.bf16 %v3325
        %v3438 = vunpack.c.h.s8.bf16 %v3326
        %v3439 = vunpack.c.h.s8.bf16 %v3327
        %v3440 = vunpack.c.l.s8.bf16 %v3328
        %v3441 = vunpack.c.l.s8.bf16 %v3329
        %v3442 = vunpack.c.l.s8.bf16 %v3330
        %v3443 = vunpack.c.l.s8.bf16 %v3331
        %v3444 = vunpack.c.h.s8.bf16 %v3328
        %v3445 = vunpack.c.h.s8.bf16 %v3329
        %v3446 = vunpack.c.h.s8.bf16 %v3330
        %v3447 = vunpack.c.h.s8.bf16 %v3331
        %v3448 = vunpack.c.l.s8.bf16 %v3332
        %v3449 = vunpack.c.l.s8.bf16 %v3333
        %v3450 = vunpack.c.l.s8.bf16 %v3334
        %v3451 = vunpack.c.l.s8.bf16 %v3335
        %v3452 = vunpack.c.h.s8.bf16 %v3332
        %v3453 = vunpack.c.h.s8.bf16 %v3333
        %v3454 = vunpack.c.h.s8.bf16 %v3334
        %v3455 = vunpack.c.h.s8.bf16 %v3335
        %v3456 = vunpack.c.l.s8.bf16 %v3336
        %v3457 = vunpack.c.l.s8.bf16 %v3337
        %v3458 = vunpack.c.l.s8.bf16 %v3338
        %v3459 = vunpack.c.l.s8.bf16 %v3339
        %v3460 = vunpack.c.h.s8.bf16 %v3336
        %v3461 = vunpack.c.h.s8.bf16 %v3337
        %v3462 = vunpack.c.h.s8.bf16 %v3338
        %v3463 = vunpack.c.h.s8.bf16 %v3339
        %v3464 = vunpack.c.l.s8.bf16 %v3340
        %v3465 = vunpack.c.l.s8.bf16 %v3341
        %v3466 = vunpack.c.l.s8.bf16 %v3342
        %v3467 = vunpack.c.l.s8.bf16 %v3343
        %v3468 = vunpack.c.h.s8.bf16 %v3340
        %v3469 = vunpack.c.h.s8.bf16 %v3341
        %v3470 = vunpack.c.h.s8.bf16 %v3342
        %v3471 = vunpack.c.h.s8.bf16 %v3343
        %3472 = vmatprep.subr.bf16.mxu0 %v3373
        %3473 = vmatpush1.bf16.msra.mxu0 %v3372
        %3474 = vmatprep.subr.bf16.mxu0 %v3369
        %3475 = vmatpush1.bf16.msra.mxu0 %v3368
        %3476 = vmatprep.subr.bf16.mxu0 %v3365
        %3477 = vmatpush1.bf16.msra.mxu0 %v3364
        %3478 = vmatprep.subr.bf16.mxu0 %v3361
        %3479 = vmatpush1.bf16.msra.mxu0 %v3360
        %3480 = vmatprep.subr.bf16.mxu0 %v3357
        %3481 = vmatpush1.bf16.msra.mxu0 %v3356
        %3482 = vmatprep.subr.bf16.mxu0 %v3353
        %3483 = vmatpush1.bf16.msra.mxu0 %v3352
        %3484 = vmatprep.subr.bf16.mxu0 %v3349
        %3485 = vmatpush1.bf16.msra.mxu0 %v3348
        %3486 = vmatprep.subr.bf16.mxu0 %v3345
        %3487 = vmatpush1.bf16.msra.mxu0 %v3344
        %3488 = vmatprep.subr.bf16.mxu0 %v3405
        %3489 = vmatpush2.bf16.msra.mxu0 %v3404
        %3490 = vmatprep.subr.bf16.mxu0 %v3401
        %3491 = vmatpush2.bf16.msra.mxu0 %v3400
        %3492 = vmatprep.subr.bf16.mxu0 %v3397
        %3493 = vmatpush2.bf16.msra.mxu0 %v3396
        %3494 = vmatprep.subr.bf16.mxu0 %v3393
        %3495 = vmatpush2.bf16.msra.mxu0 %v3392
        %3496 = vmatprep.subr.bf16.mxu0 %v3389
        %3497 = vmatpush2.bf16.msra.mxu0 %v3388
        %3498 = vmatprep.subr.bf16.mxu0 %v3385
        %3499 = vmatpush2.bf16.msra.mxu0 %v3384
        %3500 = vmatprep.subr.bf16.mxu0 %v3381
        %3501 = vmatpush2.bf16.msra.mxu0 %v3380
        %3502 = vmatprep.subr.bf16.mxu0 %v3377
        %3503 = vmatpush2.bf16.msra.mxu0 %v3376
        %3504 = vmatprep.mubr.bf16.mxu0 %v2445
        %3505 = vmatmul.mubr.bf16.gmra.mxu0 %v2444
        %v3506 = vpop.f32.mrf.mxu0
        %v3507 = vadd.f32 0.0, %v3506
        %v3508 = vpop.f32.mrf.mxu0
        %v3509 = vadd.f32 0.0, %v3508
        %v3510 = vpop.f32.mrf.mxu0
        %v3511 = vpop.f32.mrf.mxu0
        %3512 = vdwg.mxu0
        %3513 = vmatprep.subr.bf16.mxu0 %v3437
        %3514 = vmatpush1.bf16.msra.mxu0 %v3436
        %3515 = vmatprep.subr.bf16.mxu0 %v3433
        %3516 = vmatpush1.bf16.msra.mxu0 %v3432
        %3517 = vmatprep.subr.bf16.mxu0 %v3429
        %3518 = vmatpush1.bf16.msra.mxu0 %v3428
        %3519 = vmatprep.subr.bf16.mxu0 %v3425
        %3520 = vmatpush1.bf16.msra.mxu0 %v3424
        %3521 = vmatprep.subr.bf16.mxu0 %v3421
        %3522 = vmatpush1.bf16.msra.mxu0 %v3420
        %3523 = vmatprep.subr.bf16.mxu0 %v3417
        %3524 = vmatpush1.bf16.msra.mxu0 %v3416
        %3525 = vmatprep.subr.bf16.mxu0 %v3413
        %3526 = vmatpush1.bf16.msra.mxu0 %v3412
        %3527 = vmatprep.subr.bf16.mxu0 %v3409
        %3528 = vmatpush1.bf16.msra.mxu0 %v3408
        %3529 = vmatprep.subr.bf16.mxu0 %v3469
        %3530 = vmatpush2.bf16.msra.mxu0 %v3468
        %3531 = vmatprep.subr.bf16.mxu0 %v3465
        %3532 = vmatpush2.bf16.msra.mxu0 %v3464
        %3533 = vmatprep.subr.bf16.mxu0 %v3461
        %3534 = vmatpush2.bf16.msra.mxu0 %v3460
        %3535 = vmatprep.subr.bf16.mxu0 %v3457
        %3536 = vmatpush2.bf16.msra.mxu0 %v3456
        %3537 = vmatprep.subr.bf16.mxu0 %v3453
        %3538 = vmatpush2.bf16.msra.mxu0 %v3452
        %3539 = vmatprep.subr.bf16.mxu0 %v3449
        %3540 = vmatpush2.bf16.msra.mxu0 %v3448
        %3541 = vmatprep.subr.bf16.mxu0 %v3445
        %3542 = vmatpush2.bf16.msra.mxu0 %v3444
        %3543 = vmatprep.subr.bf16.mxu0 %v3441
        %3544 = vmatpush2.bf16.msra.mxu0 %v3440
        %3545 = vmatprep.mubr.bf16.mxu0 %v2447
        %3546 = vmatmul.mubr.bf16.gmra.mxu0 %v2446
        %v3547 = vpop.f32.mrf.mxu0
        %v3548 = vadd.f32 %v3507, %v3547
        %v3549 = vpop.f32.mrf.mxu0
        %v3550 = vadd.f32 %v3509, %v3549
        %v3551 = vpop.f32.mrf.mxu0
        %v3552 = vpop.f32.mrf.mxu0
        %3553 = vdwg.mxu0
        %3554 = vmatprep.subr.bf16.mxu0 %v3375
        %3555 = vmatpush1.bf16.msra.mxu0 %v3374
        %3556 = vmatprep.subr.bf16.mxu0 %v3371
        %3557 = vmatpush1.bf16.msra.mxu0 %v3370
        %3558 = vmatprep.subr.bf16.mxu0 %v3367
        %3559 = vmatpush1.bf16.msra.mxu0 %v3366
        %3560 = vmatprep.subr.bf16.mxu0 %v3363
        %3561 = vmatpush1.bf16.msra.mxu0 %v3362
        %3562 = vmatprep.subr.bf16.mxu0 %v3359
        %3563 = vmatpush1.bf16.msra.mxu0 %v3358
        %3564 = vmatprep.subr.bf16.mxu0 %v3355
        %3565 = vmatpush1.bf16.msra.mxu0 %v3354
        %3566 = vmatprep.subr.bf16.mxu0 %v3351
        %3567 = vmatpush1.bf16.msra.mxu0 %v3350
        %3568 = vmatprep.subr.bf16.mxu0 %v3347
        %3569 = vmatpush1.bf16.msra.mxu0 %v3346
        %3570 = vmatprep.subr.bf16.mxu0 %v3407
        %3571 = vmatpush2.bf16.msra.mxu0 %v3406
        %3572 = vmatprep.subr.bf16.mxu0 %v3403
        %3573 = vmatpush2.bf16.msra.mxu0 %v3402
        %3574 = vmatprep.subr.bf16.mxu0 %v3399
        %3575 = vmatpush2.bf16.msra.mxu0 %v3398
        %3576 = vmatprep.subr.bf16.mxu0 %v3395
        %3577 = vmatpush2.bf16.msra.mxu0 %v3394
        %3578 = vmatprep.subr.bf16.mxu0 %v3391
        %3579 = vmatpush2.bf16.msra.mxu0 %v3390
        %3580 = vmatprep.subr.bf16.mxu0 %v3387
        %3581 = vmatpush2.bf16.msra.mxu0 %v3386
        %3582 = vmatprep.subr.bf16.mxu0 %v3383
        %3583 = vmatpush2.bf16.msra.mxu0 %v3382
        %3584 = vmatprep.subr.bf16.mxu0 %v3379
        %3585 = vmatpush2.bf16.msra.mxu0 %v3378
        %3586 = vmatprep.mubr.bf16.mxu0 %v2445
        %3587 = vmatmul.mubr.bf16.gmra.mxu0 %v2444
        %v3588 = vpop.f32.mrf.mxu0
        %v3589 = vadd.f32 0.0, %v3588
        %v3590 = vpop.f32.mrf.mxu0
        %v3591 = vadd.f32 0.0, %v3590
        %v3592 = vpop.f32.mrf.mxu0
        %v3593 = vpop.f32.mrf.mxu0
        %3594 = vdwg.mxu0
        %3595 = vmatprep.subr.bf16.mxu0 %v3439
        %3596 = vmatpush1.bf16.msra.mxu0 %v3438
        %3597 = vmatprep.subr.bf16.mxu0 %v3435
        %3598 = vmatpush1.bf16.msra.mxu0 %v3434
        %3599 = vmatprep.subr.bf16.mxu0 %v3431
        %3600 = vmatpush1.bf16.msra.mxu0 %v3430
        %3601 = vmatprep.subr.bf16.mxu0 %v3427
        %3602 = vmatpush1.bf16.msra.mxu0 %v3426
        %3603 = vmatprep.subr.bf16.mxu0 %v3423
        %3604 = vmatpush1.bf16.msra.mxu0 %v3422
        %3605 = vmatprep.subr.bf16.mxu0 %v3419
        %3606 = vmatpush1.bf16.msra.mxu0 %v3418
        %3607 = vmatprep.subr.bf16.mxu0 %v3415
        %3608 = vmatpush1.bf16.msra.mxu0 %v3414
        %3609 = vmatprep.subr.bf16.mxu0 %v3411
        %3610 = vmatpush1.bf16.msra.mxu0 %v3410
        %3611 = vmatprep.subr.bf16.mxu0 %v3471
        %3612 = vmatpush2.bf16.msra.mxu0 %v3470
        %3613 = vmatprep.subr.bf16.mxu0 %v3467
        %3614 = vmatpush2.bf16.msra.mxu0 %v3466
        %3615 = vmatprep.subr.bf16.mxu0 %v3463
        %3616 = vmatpush2.bf16.msra.mxu0 %v3462
        %3617 = vmatprep.subr.bf16.mxu0 %v3459
        %3618 = vmatpush2.bf16.msra.mxu0 %v3458
        %3619 = vmatprep.subr.bf16.mxu0 %v3455
        %3620 = vmatpush2.bf16.msra.mxu0 %v3454
        %3621 = vmatprep.subr.bf16.mxu0 %v3451
        %3622 = vmatpush2.bf16.msra.mxu0 %v3450
        %3623 = vmatprep.subr.bf16.mxu0 %v3447
        %3624 = vmatpush2.bf16.msra.mxu0 %v3446
        %3625 = vmatprep.subr.bf16.mxu0 %v3443
        %3626 = vmatpush2.bf16.msra.mxu0 %v3442
        %3627 = vmatprep.mubr.bf16.mxu0 %v2447
        %3628 = vmatmul.mubr.bf16.gmra.mxu0 %v2446
        %v3629 = vpop.f32.mrf.mxu0
        %v3630 = vadd.f32 %v3589, %v3629
        %v3631 = vpop.f32.mrf.mxu0
        %v3632 = vadd.f32 %v3591, %v3631
        %v3633 = vpop.f32.mrf.mxu0
        %v3634 = vpop.f32.mrf.mxu0
        %3635 = vdwg.mxu0
        %s3636 = scalar_lea.vmem %s543, 56 [#allocation13]
        %v3637 = vld [vmem:[%s3636] ss:$2 sm:$0xf]
        %s3638 = scalar_lea.vmem %s543, 57 [#allocation13]
        %v3639 = vld [vmem:[%s3638] ss:$2 sm:$0xf]
        %v3641 = vlaneseq
        %v3642 = vshrl.u32 %v3641, 7
        %v3643 = vsub.s32 0, %v3642
        %v3644 = vrot.slane %v3637, %v3643
        %v3645 = vlaneseq
        %v3646 = vshrl.u32 %v3645, 7
        %v3647 = vsub.s32 1, %v3646
        %v3648 = vrot.slane %v3637, %v3647
        %v3649 = vlaneseq
        %v3650 = vshrl.u32 %v3649, 7
        %v3651 = vsub.s32 2, %v3650
        %v3652 = vrot.slane %v3637, %v3651
        %v3653 = vlaneseq
        %v3654 = vshrl.u32 %v3653, 7
        %v3655 = vsub.s32 3, %v3654
        %v3656 = vrot.slane %v3637, %v3655
        %v3661 = vmul.f32 %v3548, %v3644
        %v3662 = vmul.f32 %v3550, %v3648
        %v3663 = vmul.f32 %v3630, %v3652
        %v3664 = vmul.f32 %v3632, %v3656
        %v3666 = vlaneseq
        %v3667 = vshrl.u32 %v3666, 7
        %v3668 = vsub.s32 0, %v3667
        %v3669 = vrot.slane %v3639, %v3668
        %v3670 = vlaneseq
        %v3671 = vshrl.u32 %v3670, 7
        %v3672 = vsub.s32 1, %v3671
        %v3673 = vrot.slane %v3639, %v3672
        %v3674 = vlaneseq
        %v3675 = vshrl.u32 %v3674, 7
        %v3676 = vsub.s32 2, %v3675
        %v3677 = vrot.slane %v3639, %v3676
        %v3678 = vlaneseq
        %v3679 = vshrl.u32 %v3678, 7
        %v3680 = vsub.s32 3, %v3679
        %v3681 = vrot.slane %v3639, %v3680
        %v3686 = vadd.f32 %v3661, %v3669
        %v3687 = vadd.f32 %v3662, %v3673
        %v3688 = vadd.f32 %v3663, %v3677
        %v3689 = vadd.f32 %v3664, %v3681
        %v3690 = vmax.f32 %v3686, 0.0
        %v3691 = vmax.f32 %v3687, 0.0
        %v3692 = vmax.f32 %v3688, 0.0
        %v3693 = vmax.f32 %v3689, 0.0
        %3694 = vst [vmem:[%s617] sm:$0xff] %v3690
        %3695 = vst [vmem:[%s617 + $0x8] sm:$0xff] %v3691
        %3696 = vst [vmem:[%s617 + $0x10] sm:$0xff] %v3692
        %3697 = vst [vmem:[%s617 + $0x18] sm:$0xff] %v3693
        %s3698 = sand.u32 %s245, 1
        %s3699 = scalar_lea.sflag [#allocation4], %s3698
        %s3700 = sand.u32 %s245, 1
        %s3701 = smul.addr %s3700, 32
        %s3702 = scalar_lea.vmem [#allocation14], %s3701
        %s3703 = sand.u32 %s39, 1
        %s3704 = scalar_lea.sflag [#allocation16], %s3703
        %s3705 = sand.u32 %s273, 1
        %s3706 = smul.addr %s3705, 32
        %s3707 = scalar_lea.vmem [#allocation15], %s3706
        %s3708 = sand.u32 %s39, 1
        %s3709 = scalar_lea.sflag [#allocation16], %s3708
        %s3710 = sand.u32 %s301, 1
        %s3711 = smul.addr %s3710, 32
        %s3712 = scalar_lea.vmem [#allocation17], %s3711
        // Predicated region
        $region77: #{tpu_custom_call.1} parent=47 // pred_check
          %p3713 = pneg %p255
        $region78: #{tpu_custom_call.1} parent=47 // pred_check_branch
          %3715 = sbr.rel (%p3713) target = $region80
        $region79: #{tpu_custom_call.1} parent=47 // pred_region
          %s3717 = ssub.s32 512, 512
          %3718 = vsyncadd %s3699, %s3717
          %s3719 = smul.addr %s44, 4
          %s3720 = smul.addr %s43, 4
          %s3721 = sadd.s32 %s3719, %s3720
          %s3722 = smul.addr %s3721, 128
          %s3723 = scalar_lea.hbm %s7, %s3722
          %s3725 = sshll.u32 %s3702, 4
          %s3726 = int_to_ptr.vmem [resolvable:$true] %s3725
          %3728 = dma.vmem_to_hbm [thread:$0]  %s3726, 512, %s3723, %s3699
        $region80: #{tpu_custom_call.1} parent=47 // pred_fallthru
          _
        // Predicated region
        $region81: #{tpu_custom_call.1} parent=47 // pred_check
          %p3729 = pneg %p283
        $region82: #{tpu_custom_call.1} parent=47 // pred_check_branch
          %3731 = sbr.rel (%p3729) target = $region84
        $region83: #{tpu_custom_call.1} parent=47 // pred_region
          %s3733 = ssub.s32 512, 512
          %3734 = vsyncadd %s3704, %s3733
          %s3735 = smul.addr %s44, 4
          %s3736 = smul.addr %s43, 4
          %s3737 = sadd.s32 %s3735, %s3736
          %s3738 = smul.addr %s3737, 128
          %s3739 = scalar_lea.hbm %s8, %s3738
          %s3741 = sshll.u32 %s3707, 4
          %s3742 = int_to_ptr.vmem [resolvable:$true] %s3741
          %3744 = dma.vmem_to_hbm [thread:$0]  %s3742, 512, %s3739, %s3704
        $region84: #{tpu_custom_call.1} parent=47 // pred_fallthru
          _
        // Predicated region
        $region85: #{tpu_custom_call.1} parent=47 // pred_check
          %p3745 = pneg %p311
        $region86: #{tpu_custom_call.1} parent=47 // pred_check_branch
          %3747 = sbr.rel (%p3745) target = $region88
        $region87: #{tpu_custom_call.1} parent=47 // pred_region
          %s3749 = ssub.s32 512, 512
          %3750 = vsyncadd %s3709, %s3749
          %s3751 = smul.addr %s44, 4
          %s3752 = smul.addr %s43, 4
          %s3753 = sadd.s32 %s3751, %s3752
          %s3754 = smul.addr %s3753, 128
          %s3755 = scalar_lea.hbm %s9, %s3754
          %s3757 = sshll.u32 %s3712, 4
          %s3758 = int_to_ptr.vmem [resolvable:$true] %s3757
          %3760 = dma.vmem_to_hbm [thread:$0]  %s3758, 512, %s3755, %s3709
        $region88: #{tpu_custom_call.1} parent=47 // pred_fallthru
          _
      $region48: #{tpu_custom_call.1} parent=5 // pred_fallthru
        _
      %p3761 = scmp.le.s32.totalorder 2, %s34
      // Predicated region
      $region89: #{tpu_custom_call.1} parent=5 // pred_check
        %p3762 = pneg %p3761
      $region90: #{tpu_custom_call.1} parent=5 // pred_check_branch
        %3764 = sbr.rel (%p3762) target = $region92
      $region91: #{tpu_custom_call.1} parent=5 // pred_region
        %s3765 = ssub.s32 %s34, 2
        // Predicated region
        $region93: #{tpu_custom_call.1} parent=91 // pred_check
          %p3766 = pneg %p261
        $region94: #{tpu_custom_call.1} parent=91 // pred_check_branch
          %3768 = sbr.rel (%p3766) target = $region96
        $region95: #{tpu_custom_call.1} parent=91 // pred_region
          %s3769 = sand.u32 %s246, 1
          %s3770 = scalar_lea.sflag [#allocation4], %s3769
          %s3771 = sand.u32 %s246, 1
          %s3772 = smul.addr %s3771, 32
          %s3773 = scalar_lea.vmem [#allocation14], %s3772
          %3774 = dma.done %s3770, 512
        $region96: #{tpu_custom_call.1} parent=91 // pred_fallthru
          _
        // Predicated region
        $region97: #{tpu_custom_call.1} parent=91 // pred_check
          %p3775 = pneg %p289
        $region98: #{tpu_custom_call.1} parent=91 // pred_check_branch
          %3777 = sbr.rel (%p3775) target = $region100
        $region99: #{tpu_custom_call.1} parent=91 // pred_region
          %s3778 = sand.u32 %s40, 1
          %s3779 = scalar_lea.sflag [#allocation16], %s3778
          %s3780 = sand.u32 %s274, 1
          %s3781 = smul.addr %s3780, 32
          %s3782 = scalar_lea.vmem [#allocation15], %s3781
          %3783 = dma.done %s3779, 512
        $region100: #{tpu_custom_call.1} parent=91 // pred_fallthru
          _
        // Predicated region
        $region101: #{tpu_custom_call.1} parent=91 // pred_check
          %p3784 = pneg %p317
        $region102: #{tpu_custom_call.1} parent=91 // pred_check_branch
          %3786 = sbr.rel (%p3784) target = $region104
        $region103: #{tpu_custom_call.1} parent=91 // pred_region
          %s3787 = sand.u32 %s40, 1
          %s3788 = scalar_lea.sflag [#allocation16], %s3787
          %s3789 = sand.u32 %s302, 1
          %s3790 = smul.addr %s3789, 32
          %s3791 = scalar_lea.vmem [#allocation17], %s3790
          %3792 = dma.done %s3788, 512
        $region104: #{tpu_custom_call.1} parent=91 // pred_fallthru
          _
      $region92: #{tpu_custom_call.1} parent=5 // pred_fallthru
        _
    $region6: #{tpu_custom_call.1} parent=1 // loop_footer
      %s38 = sadd.s32 1, %s34
    $region7: #{tpu_custom_call.1} parent=1 // loop_footer_branch
      %33 = sbr.rel target = $region3
    $region8: #{tpu_custom_call.1} parent=1 // loop_exit
      _
    %3793 = vsyncpa [#allocation3], 1
    %s3794 = scalar_lea.sflag [#allocation3], 1
    %3795 = vsyncpa %s3794, 1
    %3796 = vsyncpa [#allocation6], 1
    %s3797 = scalar_lea.sflag [#allocation6], 1
    %3798 = vsyncpa %s3797, 1
    %3799 = vsyncpa [#allocation9], 1
    %s3800 = scalar_lea.sflag [#allocation9], 1
    %3801 = vsyncpa %s3800, 1
    %3802 = vsyncpa [#allocation12], 1
    %s3803 = scalar_lea.sflag [#allocation12], 1
    %3804 = vsyncpa %s3803, 1
    %3805 = vsyncpa [#allocation4], 1
    %s3806 = scalar_lea.sflag [#allocation4], 1
    %3807 = vsyncpa %s3806, 1
    %3808 = vsyncpa [#allocation16], 1
    %s3809 = scalar_lea.sflag [#allocation16], 1
    %3810 = vsyncpa %s3809, 1

</llo_original>
